<compile_context>
chip_gen: v5e
topology: v5e:2x2
jax: 0.10.0
libtpu: 0.0.40
codegen_flags: <defaults>
</compile_context>

<pallas_src>
import jax
import jax.numpy as jnp
from jax import lax
from jax.experimental import pallas as pl
from jax.experimental.pallas import tpu as pltpu

LANE = 128
TM = 128          # rows per conv M-chunk; keeps acc + dot result ~32 vregs


def _round_up(x, m):
    return ((x + m - 1) // m) * m


# ---------------------------------------------------------------------------
# Kernel
# ---------------------------------------------------------------------------
def make_block_kernel(H, W, Cout_p, final):
    """Builds the kernel body for one batch element (flat spatial layout)."""
    n_convs = 3 if final else 2

    dims = []
    oh, ow = H, W
    for _ in range(n_convs):
        oh, ow = oh - 2, ow - 2                 # 3x3 VALID conv
        dims.append((oh, ow))
    PH, PW = oh // 2, ow // 2                   # MaxPool2d(2,2), floor
    M = [(h - 1) * W + w for (h, w) in dims]    # flat extent per conv layer

    tap_off = [kh * W + kw for kh in range(3) for kw in range(3)]

    def kernel(x_ref, w1_ref, b1_ref, w2_ref, b2_ref, o_ref, *y_refs):
        # ---- layer 1: im2col'd input, one K=9*Cin matmul per M-chunk -------
        def conv1(src_ref, w_ref, b_ref, m, y_ref):
            for m0 in range(0, m, TM):
                cm = min(TM, m - m0)
                acc = jnp.dot(src_ref[pl.ds(m0, cm), :], w_ref[...],
                              preferred_element_type=jnp.float32)
                y_ref[pl.ds(m0, cm), :] = jnp.maximum(
                    acc + b_ref[...], 0.0).astype(y_ref.dtype)

        # ---- deeper layers: 9 contiguous-slab taps, pure chain of dots -----
        def conv_taps(src_ref, w_ref, b_ref, m, y_ref):
            for m0 in range(0, m, TM):
                cm = min(TM, m - m0)
                acc = jnp.dot(src_ref[pl.ds(m0 + tap_off[0], cm), :], w_ref[0],
                              preferred_element_type=jnp.float32)
                for t in range(1, 9):
                    acc = acc + jnp.dot(
                        src_ref[pl.ds(m0 + tap_off[t], cm), :], w_ref[t],
                        preferred_element_type=jnp.float32)
                y_ref[pl.ds(m0, cm), :] = jnp.maximum(
                    acc + b_ref[...], 0.0).astype(y_ref.dtype)

        conv1(x_ref, w1_ref, b1_ref, M[0], y_refs[0])
        for li in range(1, n_convs):            # conv2 (applied twice if final)
            conv_taps(y_refs[li - 1], w2_ref, b2_ref, M[li], y_refs[li])

        # ---- MaxPool2d(2,2): stride-2 slices over valid positions only -----
        yL = y_refs[n_convs - 1]                # f32 scratch, last conv output
        for i in range(PH):
            r0 = 2 * i * W
            top = jnp.maximum(yL[pl.ds(r0, PW, stride=2), :],
                              yL[pl.ds(r0 + 1, PW, stride=2), :])
            bot = jnp.maximum(yL[pl.ds(r0 + W, PW, stride=2), :],
                              yL[pl.ds(r0 + W + 1, PW, stride=2), :])
            o_ref[i] = jnp.maximum(top, bot).astype(o_ref.dtype)

    return kernel, M, (PH, PW)


def block_forward(x_nhwc, w1_taps, b1, w2_taps, b2, *, final=False,
                  slice_output=True):
    """x_nhwc: (N,H,W,Cin) f32.  w*_taps: (3,3,K,Cout) folded conv+BN weights
    (HWIO), b*: (Cout,) folded bias.  Returns (N, PH, PW, Cout) bf16 NHWC
    (or the 128-lane padded (N, PH, PW, Cp) map when slice_output=False)."""
    N, H, W, Cin = x_nhwc.shape
    Cout = w1_taps.shape[-1]
    Cp = _round_up(Cout, LANE)
    K1 = 9 * Cin

    kernel, M, (PH, PW) = make_block_kernel(H, W, Cp, final)
    M0 = M[0]
    n_convs = 3 if final else 2

    # layer-1 weights in im2col layout (9*Cin, Cp); output lanes zero-padded.
    w1p = jnp.zeros((K1, Cp), jnp.float32).at[:, :Cout].set(
        w1_taps.reshape(K1, Cout)).astype(jnp.bfloat16)
    # layer-2 weights: 9 taps of (Cp, Cp).  Padded activation lanes are exactly
    # zero (zero weight columns + zero bias + ReLU), so padded K rows are inert.
    w2p = jnp.zeros((3, 3, Cp, Cp), jnp.float32).at[:, :, :Cout, :Cout].set(
        w2_taps).reshape(9, Cp, Cp).astype(jnp.bfloat16)
    b1p = jnp.zeros((1, Cp), jnp.float32).at[:, :Cout].set(b1[None, :])
    b2p = jnp.zeros((1, Cp), jnp.float32).at[:, :Cout].set(b2[None, :])

    # Wrapper-side im2col for layer 1 in the flat layout: output flat position
    # p gathers input flat positions p + kh*W + kw (slices stay in-bounds).
    x_flat = x_nhwc.reshape(N, H * W, Cin)
    x_cols = jnp.concatenate(
        [x_flat[:, kh * W + kw: kh * W + kw + M0, :]
         for kh in range(3) for kw in range(3)],
        axis=-1).astype(jnp.bfloat16)           # (N, M0, 9*Cin)

    # bf16 inter-layer scratch; last layer f32 (read only by the strided pool).
    scratch = [pltpu.VMEM((M[l], Cp),
                          jnp.float32 if l == n_convs - 1 else jnp.bfloat16)
               for l in range(n_convs)]

    grid_spec = pltpu.PrefetchScalarGridSpec(
        num_scalar_prefetch=0,
        grid=(N,),
        in_specs=[
            pl.BlockSpec((None, M0, K1), lambda b: (b, 0, 0)),
            pl.BlockSpec(w1p.shape, lambda b: (0, 0)),
            pl.BlockSpec(b1p.shape, lambda b: (0, 0)),
            pl.BlockSpec(w2p.shape, lambda b: (0, 0, 0)),
            pl.BlockSpec(b2p.shape, lambda b: (0, 0)),
        ],
        out_specs=pl.BlockSpec((None, PH, PW, Cp), lambda b: (b, 0, 0, 0)),
        scratch_shapes=scratch,
    )

    out = pl.pallas_call(
        kernel,
        out_shape=jax.ShapeDtypeStruct((N, PH, PW, Cp), jnp.bfloat16),
        grid_spec=grid_spec,
        compiler_params=pltpu.CompilerParams(
            dimension_semantics=("parallel",)),     # batch across TCs on v7x
    )(x_cols, w1p, b1p, w2p, b2p)

    return out[..., :Cout] if slice_output else out


# ---------------------------------------------------------------------------
# Parameter construction / BN folding (JAX glue)
# ---------------------------------------------------------------------------
def fold_conv_bn(conv_w, conv_b, gamma, beta, mean, var, eps=1e-5):
    """conv_w: (Cout,Cin,3,3) PyTorch OIHW.  Returns HWIO taps (3,3,Cin,Cout)
    with eval-mode BN folded in, and the folded per-channel bias (Cout,)."""
    s = gamma / jnp.sqrt(var + eps)
    w_hwio = jnp.transpose(conv_w, (2, 3, 1, 0)) * s
    b_eff = (conv_b - mean) * s + beta
    return w_hwio.astype(jnp.float32), b_eff.astype(jnp.float32)


def init_cbr_params(key, cin, cout):
    k = jax.random.split(key, 6)
    conv_w = 0.1 * jax.random.normal(k[0], (cout, cin, 3, 3), jnp.float32)
    conv_b = 0.1 * jax.random.normal(k[1], (cout,), jnp.float32)
    gamma = 1.0 + 0.1 * jax.random.normal(k[2], (cout,), jnp.float32)
    beta = 0.1 * jax.random.normal(k[3], (cout,), jnp.float32)
    mean = 0.1 * jax.random.normal(k[4], (cout,), jnp.float32)
    var = jax.random.uniform(k[5], (cout,), jnp.float32, 0.5, 1.5)
    return conv_w, conv_b, gamma, beta, mean, var


# ---------------------------------------------------------------------------
# Pure-JAX references (NHWC) for correctness checking
# ---------------------------------------------------------------------------
def _maxpool2x2(y):
    return lax.reduce_window(y, -jnp.inf, lax.max, (1, 2, 2, 1), (1, 2, 2, 1),
                             "VALID")


def ref_cbr(x, conv_w, conv_b, gamma, beta, mean, var, eps=1e-5):
    y = lax.conv_general_dilated(x, conv_w, (1, 1), "VALID",
                                 dimension_numbers=("NHWC", "OIHW", "NHWC"))
    y = (y + conv_b - mean) * (gamma / jnp.sqrt(var + eps)) + beta
    return jnp.maximum(y, 0.0)


def ref_block(x, p1, p2, *, final=False):
    y = ref_cbr(x, *p1)
    y = ref_cbr(y, *p2)
    if final:
        y = ref_cbr(y, *p2)
    return _maxpool2x2(y)


def ref_cbr_folded(x, w_taps, bias):
    y = lax.conv_general_dilated(x, w_taps, (1, 1), "VALID",
                                 dimension_numbers=("NHWC", "HWIO", "NHWC"))
    return jnp.maximum(y + bias, 0.0)


def ref_block_folded(x, w1, b1, w2, b2, *, final=False, round_bf16=False):
    rnd = (lambda a: a.astype(jnp.bfloat16).astype(jnp.float32)) if round_bf16 \
        else (lambda a: a)
    y = ref_cbr_folded(rnd(x), rnd(w1), b1)
    y = ref_cbr_folded(rnd(y), rnd(w2), b2)
    if final:
        y = ref_cbr_folded(rnd(y), rnd(w2), b2)
    return _maxpool2x2(y)


if __name__ == "__main__":
    N, Cin, Cout, H, W = 2, 4, 8, 16, 16

    key = jax.random.PRNGKey(0)
    kx, k1, k2 = jax.random.split(key, 3)
    x_nchw = jax.random.normal(kx, (N, Cin, H, W), jnp.float32)   # (2,4,16,16)
    x_nhwc = jnp.transpose(x_nchw, (0, 2, 3, 1))
    p1 = init_cbr_params(k1, Cin, Cout)
    p2 = init_cbr_params(k2, Cout, Cout)

    w1, b1 = fold_conv_bn(*p1)
    w2, b2 = fold_conv_bn(*p2)

    for final in (False, True):
        out = jax.block_until_ready(
            block_forward(x_nhwc, w1, b1, w2, b2, final=final))

        # (1) BN folding is exact (pure f32 check, no kernel involved).
        r_full = ref_block(x_nhwc, p1, p2, final=final)
        r_fold = ref_block_folded(x_nhwc, w1, b1, w2, b2, final=final)
        assert jnp.allclose(r_fold, r_full, atol=1e-4, rtol=1e-4)

        # (2) Kernel (bf16 weights/activations, f32 accumulation, bf16 output)
        #     matches the folded reference evaluated with bf16-rounded inputs.
        r_bf16 = ref_block_folded(x_nhwc, w1, b1, w2, b2, final=final,
                                  round_bf16=True)
        out_f32 = out.astype(jnp.float32)
        assert out_f32.shape == r_bf16.shape, (out_f32.shape, r_bf16.shape)
        err = float(jnp.max(jnp.abs(out_f32 - r_bf16) / (1.0 + jnp.abs(r_bf16))))
        assert err < 1e-2, err

    print("KERNEL_OK")
</pallas_src>

<mosaic_0001>
module attributes {stable_mosaic.version = 11 : i64} {
  func.func @kernel(%arg0: i32, %arg1: memref<1x222x36xbf16, #tpu.memory_space<vmem>>, %arg2: memref<36x128xbf16, #tpu.memory_space<vmem>>, %arg3: memref<1x128xf32, #tpu.memory_space<vmem>>, %arg4: memref<9x128x128xbf16, #tpu.memory_space<vmem>>, %arg5: memref<1x128xf32, #tpu.memory_space<vmem>>, %arg6: memref<1x6x6x128xbf16, #tpu.memory_space<vmem>>, %arg7: memref<222x128xbf16, #tpu.memory_space<vmem>>, %arg8: memref<188x128xf32, #tpu.memory_space<vmem>>) attributes {dimension_semantics = [#tpu.dimension_semantics<parallel>], iteration_bounds = array<i64: 2>, scalar_prefetch = 0 : i64, scratch_operands = 2 : i64, tpu.core_type = #tpu.core_type<tc>, window_params = [{transform_indices = @transform_0, window_bounds = array<i64: 1, 222, 36>}, {pipeline_mode = #tpu.pipeline_mode<synchronous>, transform_indices = @transform_1, window_bounds = array<i64: 36, 128>}, {pipeline_mode = #tpu.pipeline_mode<synchronous>, transform_indices = @transform_2, window_bounds = array<i64: 1, 128>}, {pipeline_mode = #tpu.pipeline_mode<synchronous>, transform_indices = @transform_3, window_bounds = array<i64: 9, 128, 128>}, {pipeline_mode = #tpu.pipeline_mode<synchronous>, transform_indices = @transform_4, window_bounds = array<i64: 1, 128>}, {transform_indices = @transform_5, window_bounds = array<i64: 1, 6, 6, 128>}]} {
    %c0 = arith.constant 0 : index
    %c0_0 = arith.constant 0 : index
    %c0_1 = arith.constant 0 : index
    %0 = vector.load %arg1[%c0, %c0_0, %c0_1] : memref<1x222x36xbf16, #tpu.memory_space<vmem>>, vector<1x128x36xbf16>
    %1 = vector.shape_cast %0 : vector<1x128x36xbf16> to vector<128x36xbf16>
    %c0_2 = arith.constant 0 : index
    %c0_3 = arith.constant 0 : index
    %2 = vector.load %arg2[%c0_2, %c0_3] : memref<36x128xbf16, #tpu.memory_space<vmem>>, vector<36x128xbf16>
    %cst = arith.constant dense<0.000000e+00> : vector<128x128xf32>
    %3 = tpu.matmul %1, %2, %cst {dimension_numbers = #tpu.dot_dimension_numbers<[1], [0], [0], [1], [0, 0, 1, 1], [], []>} : vector<128x36xbf16>, vector<36x128xbf16>, vector<128x128xf32> -> vector<128x128xf32>
    %c0_4 = arith.constant 0 : index
    %c0_5 = arith.constant 0 : index
    %4 = vector.load %arg3[%c0_4, %c0_5] : memref<1x128xf32, #tpu.memory_space<vmem>>, vector<1x128xf32>
    %5 = vector.broadcast %4 : vector<1x128xf32> to vector<128x128xf32>
    %6 = arith.addf %3, %5 : vector<128x128xf32>
    %cst_6 = arith.constant 0.000000e+00 : f32
    %7 = vector.broadcast %cst_6 : f32 to vector<128x128xf32>
    %8 = arith.maximumf %6, %7 : vector<128x128xf32>
    %9 = arith.truncf %8 : vector<128x128xf32> to vector<128x128xbf16>
    %c0_7 = arith.constant 0 : index
    %c0_8 = arith.constant 0 : index
    %10 = vector.load %arg7[%c0_7, %c0_8] : memref<222x128xbf16, #tpu.memory_space<vmem>>, vector<128x128xbf16>
    tpu.vector_store %arg7[%c0_7, %c0_8], %9 {strides = array<i32>} : memref<222x128xbf16, #tpu.memory_space<vmem>>, vector<128x128xbf16>,
    %c0_9 = arith.constant 0 : index
    %c128 = arith.constant 128 : index
    %c0_10 = arith.constant 0 : index
    %11 = vector.load %arg1[%c0_9, %c128, %c0_10] : memref<1x222x36xbf16, #tpu.memory_space<vmem>>, vector<1x94x36xbf16>
    %12 = vector.shape_cast %11 : vector<1x94x36xbf16> to vector<94x36xbf16>
    %c0_11 = arith.constant 0 : index
    %c0_12 = arith.constant 0 : index
    %13 = vector.load %arg2[%c0_11, %c0_12] : memref<36x128xbf16, #tpu.memory_space<vmem>>, vector<36x128xbf16>
    %cst_13 = arith.constant dense<0.000000e+00> : vector<94x128xf32>
    %14 = tpu.matmul %12, %13, %cst_13 {dimension_numbers = #tpu.dot_dimension_numbers<[1], [0], [0], [1], [0, 0, 1, 1], [], []>} : vector<94x36xbf16>, vector<36x128xbf16>, vector<94x128xf32> -> vector<94x128xf32>
    %c0_14 = arith.constant 0 : index
    %c0_15 = arith.constant 0 : index
    %15 = vector.load %arg3[%c0_14, %c0_15] : memref<1x128xf32, #tpu.memory_space<vmem>>, vector<1x128xf32>
    %16 = vector.broadcast %15 : vector<1x128xf32> to vector<94x128xf32>
    %17 = arith.addf %14, %16 : vector<94x128xf32>
    %cst_16 = arith.constant 0.000000e+00 : f32
    %18 = vector.broadcast %cst_16 : f32 to vector<94x128xf32>
    %19 = arith.maximumf %17, %18 : vector<94x128xf32>
    %20 = arith.truncf %19 : vector<94x128xf32> to vector<94x128xbf16>
    %c128_17 = arith.constant 128 : index
    %c0_18 = arith.constant 0 : index
    %21 = vector.load %arg7[%c128_17, %c0_18] : memref<222x128xbf16, #tpu.memory_space<vmem>>, vector<94x128xbf16>
    tpu.vector_store %arg7[%c128_17, %c0_18], %20 {strides = array<i32>} : memref<222x128xbf16, #tpu.memory_space<vmem>>, vector<94x128xbf16>,
    %c0_19 = arith.constant 0 : index
    %c0_20 = arith.constant 0 : index
    %22 = vector.load %arg7[%c0_19, %c0_20] : memref<222x128xbf16, #tpu.memory_space<vmem>>, vector<128x128xbf16>
    %c0_21 = arith.constant 0 : index
    %c0_22 = arith.constant 0 : index
    %c0_23 = arith.constant 0 : index
    %23 = vector.load %arg4[%c0_21, %c0_22, %c0_23] : memref<9x128x128xbf16, #tpu.memory_space<vmem>>, vector<1x128x128xbf16>
    %24 = vector.shape_cast %23 : vector<1x128x128xbf16> to vector<128x128xbf16>
    %cst_24 = arith.constant dense<0.000000e+00> : vector<128x128xf32>
    %25 = tpu.matmul %22, %24, %cst_24 {dimension_numbers = #tpu.dot_dimension_numbers<[1], [0], [0], [1], [0, 0, 1, 1], [], []>} : vector<128x128xbf16>, vector<128x128xbf16>, vector<128x128xf32> -> vector<128x128xf32>
    %c1 = arith.constant 1 : index
    %c0_25 = arith.constant 0 : index
    %26 = vector.load %arg7[%c1, %c0_25] : memref<222x128xbf16, #tpu.memory_space<vmem>>, vector<128x128xbf16>
    %c1_26 = arith.constant 1 : index
    %c0_27 = arith.constant 0 : index
    %c0_28 = arith.constant 0 : index
    %27 = vector.load %arg4[%c1_26, %c0_27, %c0_28] : memref<9x128x128xbf16, #tpu.memory_space<vmem>>, vector<1x128x128xbf16>
    %28 = vector.shape_cast %27 : vector<1x128x128xbf16> to vector<128x128xbf16>
    %cst_29 = arith.constant dense<0.000000e+00> : vector<128x128xf32>
    %29 = tpu.matmul %26, %28, %cst_29 {dimension_numbers = #tpu.dot_dimension_numbers<[1], [0], [0], [1], [0, 0, 1, 1], [], []>} : vector<128x128xbf16>, vector<128x128xbf16>, vector<128x128xf32> -> vector<128x128xf32>
    %30 = arith.addf %25, %29 : vector<128x128xf32>
    %c2 = arith.constant 2 : index
    %c0_30 = arith.constant 0 : index
    %31 = vector.load %arg7[%c2, %c0_30] : memref<222x128xbf16, #tpu.memory_space<vmem>>, vector<128x128xbf16>
    %c2_31 = arith.constant 2 : index
    %c0_32 = arith.constant 0 : index
    %c0_33 = arith.constant 0 : index
    %32 = vector.load %arg4[%c2_31, %c0_32, %c0_33] : memref<9x128x128xbf16, #tpu.memory_space<vmem>>, vector<1x128x128xbf16>
    %33 = vector.shape_cast %32 : vector<1x128x128xbf16> to vector<128x128xbf16>
    %cst_34 = arith.constant dense<0.000000e+00> : vector<128x128xf32>
    %34 = tpu.matmul %31, %33, %cst_34 {dimension_numbers = #tpu.dot_dimension_numbers<[1], [0], [0], [1], [0, 0, 1, 1], [], []>} : vector<128x128xbf16>, vector<128x128xbf16>, vector<128x128xf32> -> vector<128x128xf32>
    %35 = arith.addf %30, %34 : vector<128x128xf32>
    %c16 = arith.constant 16 : index
    %c0_35 = arith.constant 0 : index
    %36 = vector.load %arg7[%c16, %c0_35] : memref<222x128xbf16, #tpu.memory_space<vmem>>, vector<128x128xbf16>
    %c3 = arith.constant 3 : index
    %c0_36 = arith.constant 0 : index
    %c0_37 = arith.constant 0 : index
    %37 = vector.load %arg4[%c3, %c0_36, %c0_37] : memref<9x128x128xbf16, #tpu.memory_space<vmem>>, vector<1x128x128xbf16>
    %38 = vector.shape_cast %37 : vector<1x128x128xbf16> to vector<128x128xbf16>
    %cst_38 = arith.constant dense<0.000000e+00> : vector<128x128xf32>
    %39 = tpu.matmul %36, %38, %cst_38 {dimension_numbers = #tpu.dot_dimension_numbers<[1], [0], [0], [1], [0, 0, 1, 1], [], []>} : vector<128x128xbf16>, vector<128x128xbf16>, vector<128x128xf32> -> vector<128x128xf32>
    %40 = arith.addf %35, %39 : vector<128x128xf32>
    %c17 = arith.constant 17 : index
    %c0_39 = arith.constant 0 : index
    %41 = vector.load %arg7[%c17, %c0_39] : memref<222x128xbf16, #tpu.memory_space<vmem>>, vector<128x128xbf16>
    %c4 = arith.constant 4 : index
    %c0_40 = arith.constant 0 : index
    %c0_41 = arith.constant 0 : index
    %42 = vector.load %arg4[%c4, %c0_40, %c0_41] : memref<9x128x128xbf16, #tpu.memory_space<vmem>>, vector<1x128x128xbf16>
    %43 = vector.shape_cast %42 : vector<1x128x128xbf16> to vector<128x128xbf16>
    %cst_42 = arith.constant dense<0.000000e+00> : vector<128x128xf32>
    %44 = tpu.matmul %41, %43, %cst_42 {dimension_numbers = #tpu.dot_dimension_numbers<[1], [0], [0], [1], [0, 0, 1, 1], [], []>} : vector<128x128xbf16>, vector<128x128xbf16>, vector<128x128xf32> -> vector<128x128xf32>
    %45 = arith.addf %40, %44 : vector<128x128xf32>
    %c18 = arith.constant 18 : index
    %c0_43 = arith.constant 0 : index
    %46 = vector.load %arg7[%c18, %c0_43] : memref<222x128xbf16, #tpu.memory_space<vmem>>, vector<128x128xbf16>
    %c5 = arith.constant 5 : index
    %c0_44 = arith.constant 0 : index
    %c0_45 = arith.constant 0 : index
    %47 = vector.load %arg4[%c5, %c0_44, %c0_45] : memref<9x128x128xbf16, #tpu.memory_space<vmem>>, vector<1x128x128xbf16>
    %48 = vector.shape_cast %47 : vector<1x128x128xbf16> to vector<128x128xbf16>
    %cst_46 = arith.constant dense<0.000000e+00> : vector<128x128xf32>
    %49 = tpu.matmul %46, %48, %cst_46 {dimension_numbers = #tpu.dot_dimension_numbers<[1], [0], [0], [1], [0, 0, 1, 1], [], []>} : vector<128x128xbf16>, vector<128x128xbf16>, vector<128x128xf32> -> vector<128x128xf32>
    %50 = arith.addf %45, %49 : vector<128x128xf32>
    %c32 = arith.constant 32 : index
    %c0_47 = arith.constant 0 : index
    %51 = vector.load %arg7[%c32, %c0_47] : memref<222x128xbf16, #tpu.memory_space<vmem>>, vector<128x128xbf16>
    %c6 = arith.constant 6 : index
    %c0_48 = arith.constant 0 : index
    %c0_49 = arith.constant 0 : index
    %52 = vector.load %arg4[%c6, %c0_48, %c0_49] : memref<9x128x128xbf16, #tpu.memory_space<vmem>>, vector<1x128x128xbf16>
    %53 = vector.shape_cast %52 : vector<1x128x128xbf16> to vector<128x128xbf16>
    %cst_50 = arith.constant dense<0.000000e+00> : vector<128x128xf32>
    %54 = tpu.matmul %51, %53, %cst_50 {dimension_numbers = #tpu.dot_dimension_numbers<[1], [0], [0], [1], [0, 0, 1, 1], [], []>} : vector<128x128xbf16>, vector<128x128xbf16>, vector<128x128xf32> -> vector<128x128xf32>
    %55 = arith.addf %50, %54 : vector<128x128xf32>
    %c33 = arith.constant 33 : index
    %c0_51 = arith.constant 0 : index
    %56 = vector.load %arg7[%c33, %c0_51] : memref<222x128xbf16, #tpu.memory_space<vmem>>, vector<128x128xbf16>
    %c7 = arith.constant 7 : index
    %c0_52 = arith.constant 0 : index
    %c0_53 = arith.constant 0 : index
    %57 = vector.load %arg4[%c7, %c0_52, %c0_53] : memref<9x128x128xbf16, #tpu.memory_space<vmem>>, vector<1x128x128xbf16>
    %58 = vector.shape_cast %57 : vector<1x128x128xbf16> to vector<128x128xbf16>
    %cst_54 = arith.constant dense<0.000000e+00> : vector<128x128xf32>
    %59 = tpu.matmul %56, %58, %cst_54 {dimension_numbers = #tpu.dot_dimension_numbers<[1], [0], [0], [1], [0, 0, 1, 1], [], []>} : vector<128x128xbf16>, vector<128x128xbf16>, vector<128x128xf32> -> vector<128x128xf32>
    %60 = arith.addf %55, %59 : vector<128x128xf32>
    %c34 = arith.constant 34 : index
    %c0_55 = arith.constant 0 : index
    %61 = vector.load %arg7[%c34, %c0_55] : memref<222x128xbf16, #tpu.memory_space<vmem>>, vector<128x128xbf16>
    %c8 = arith.constant 8 : index
    %c0_56 = arith.constant 0 : index
    %c0_57 = arith.constant 0 : index
    %62 = vector.load %arg4[%c8, %c0_56, %c0_57] : memref<9x128x128xbf16, #tpu.memory_space<vmem>>, vector<1x128x128xbf16>
    %63 = vector.shape_cast %62 : vector<1x128x128xbf16> to vector<128x128xbf16>
    %cst_58 = arith.constant dense<0.000000e+00> : vector<128x128xf32>
    %64 = tpu.matmul %61, %63, %cst_58 {dimension_numbers = #tpu.dot_dimension_numbers<[1], [0], [0], [1], [0, 0, 1, 1], [], []>} : vector<128x128xbf16>, vector<128x128xbf16>, vector<128x128xf32> -> vector<128x128xf32>
    %65 = arith.addf %60, %64 : vector<128x128xf32>
    %c0_59 = arith.constant 0 : index
    %c0_60 = arith.constant 0 : index
    %66 = vector.load %arg5[%c0_59, %c0_60] : memref<1x128xf32, #tpu.memory_space<vmem>>, vector<1x128xf32>
    %67 = vector.broadcast %66 : vector<1x128xf32> to vector<128x128xf32>
    %68 = arith.addf %65, %67 : vector<128x128xf32>
    %cst_61 = arith.constant 0.000000e+00 : f32
    %69 = vector.broadcast %cst_61 : f32 to vector<128x128xf32>
    %70 = arith.maximumf %68, %69 : vector<128x128xf32>
    %c0_62 = arith.constant 0 : index
    %c0_63 = arith.constant 0 : index
    %71 = vector.load %arg8[%c0_62, %c0_63] : memref<188x128xf32, #tpu.memory_space<vmem>>, vector<128x128xf32>
    tpu.vector_store %arg8[%c0_62, %c0_63], %70 {strides = array<i32>} : memref<188x128xf32, #tpu.memory_space<vmem>>, vector<128x128xf32>,
    %c128_64 = arith.constant 128 : index
    %c0_65 = arith.constant 0 : index
    %72 = vector.load %arg7[%c128_64, %c0_65] : memref<222x128xbf16, #tpu.memory_space<vmem>>, vector<60x128xbf16>
    %c0_66 = arith.constant 0 : index
    %c0_67 = arith.constant 0 : index
    %c0_68 = arith.constant 0 : index
    %73 = vector.load %arg4[%c0_66, %c0_67, %c0_68] : memref<9x128x128xbf16, #tpu.memory_space<vmem>>, vector<1x128x128xbf16>
    %74 = vector.shape_cast %73 : vector<1x128x128xbf16> to vector<128x128xbf16>
    %cst_69 = arith.constant dense<0.000000e+00> : vector<60x128xf32>
    %75 = tpu.matmul %72, %74, %cst_69 {dimension_numbers = #tpu.dot_dimension_numbers<[1], [0], [0], [1], [0, 0, 1, 1], [], []>} : vector<60x128xbf16>, vector<128x128xbf16>, vector<60x128xf32> -> vector<60x128xf32>
    %c129 = arith.constant 129 : index
    %c0_70 = arith.constant 0 : index
    %76 = vector.load %arg7[%c129, %c0_70] : memref<222x128xbf16, #tpu.memory_space<vmem>>, vector<60x128xbf16>
    %c1_71 = arith.constant 1 : index
    %c0_72 = arith.constant 0 : index
    %c0_73 = arith.constant 0 : index
    %77 = vector.load %arg4[%c1_71, %c0_72, %c0_73] : memref<9x128x128xbf16, #tpu.memory_space<vmem>>, vector<1x128x128xbf16>
    %78 = vector.shape_cast %77 : vector<1x128x128xbf16> to vector<128x128xbf16>
    %cst_74 = arith.constant dense<0.000000e+00> : vector<60x128xf32>
    %79 = tpu.matmul %76, %78, %cst_74 {dimension_numbers = #tpu.dot_dimension_numbers<[1], [0], [0], [1], [0, 0, 1, 1], [], []>} : vector<60x128xbf16>, vector<128x128xbf16>, vector<60x128xf32> -> vector<60x128xf32>
    %80 = arith.addf %75, %79 : vector<60x128xf32>
    %c130 = arith.constant 130 : index
    %c0_75 = arith.constant 0 : index
    %81 = vector.load %arg7[%c130, %c0_75] : memref<222x128xbf16, #tpu.memory_space<vmem>>, vector<60x128xbf16>
    %c2_76 = arith.constant 2 : index
    %c0_77 = arith.constant 0 : index
    %c0_78 = arith.constant 0 : index
    %82 = vector.load %arg4[%c2_76, %c0_77, %c0_78] : memref<9x128x128xbf16, #tpu.memory_space<vmem>>, vector<1x128x128xbf16>
    %83 = vector.shape_cast %82 : vector<1x128x128xbf16> to vector<128x128xbf16>
    %cst_79 = arith.constant dense<0.000000e+00> : vector<60x128xf32>
    %84 = tpu.matmul %81, %83, %cst_79 {dimension_numbers = #tpu.dot_dimension_numbers<[1], [0], [0], [1], [0, 0, 1, 1], [], []>} : vector<60x128xbf16>, vector<128x128xbf16>, vector<60x128xf32> -> vector<60x128xf32>
    %85 = arith.addf %80, %84 : vector<60x128xf32>
    %c144 = arith.constant 144 : index
    %c0_80 = arith.constant 0 : index
    %86 = vector.load %arg7[%c144, %c0_80] : memref<222x128xbf16, #tpu.memory_space<vmem>>, vector<60x128xbf16>
    %c3_81 = arith.constant 3 : index
    %c0_82 = arith.constant 0 : index
    %c0_83 = arith.constant 0 : index
    %87 = vector.load %arg4[%c3_81, %c0_82, %c0_83] : memref<9x128x128xbf16, #tpu.memory_space<vmem>>, vector<1x128x128xbf16>
    %88 = vector.shape_cast %87 : vector<1x128x128xbf16> to vector<128x128xbf16>
    %cst_84 = arith.constant dense<0.000000e+00> : vector<60x128xf32>
    %89 = tpu.matmul %86, %88, %cst_84 {dimension_numbers = #tpu.dot_dimension_numbers<[1], [0], [0], [1], [0, 0, 1, 1], [], []>} : vector<60x128xbf16>, vector<128x128xbf16>, vector<60x128xf32> -> vector<60x128xf32>
    %90 = arith.addf %85, %89 : vector<60x128xf32>
    %c145 = arith.constant 145 : index
    %c0_85 = arith.constant 0 : index
    %91 = vector.load %arg7[%c145, %c0_85] : memref<222x128xbf16, #tpu.memory_space<vmem>>, vector<60x128xbf16>
    %c4_86 = arith.constant 4 : index
    %c0_87 = arith.constant 0 : index
    %c0_88 = arith.constant 0 : index
    %92 = vector.load %arg4[%c4_86, %c0_87, %c0_88] : memref<9x128x128xbf16, #tpu.memory_space<vmem>>, vector<1x128x128xbf16>
    %93 = vector.shape_cast %92 : vector<1x128x128xbf16> to vector<128x128xbf16>
    %cst_89 = arith.constant dense<0.000000e+00> : vector<60x128xf32>
    %94 = tpu.matmul %91, %93, %cst_89 {dimension_numbers = #tpu.dot_dimension_numbers<[1], [0], [0], [1], [0, 0, 1, 1], [], []>} : vector<60x128xbf16>, vector<128x128xbf16>, vector<60x128xf32> -> vector<60x128xf32>
    %95 = arith.addf %90, %94 : vector<60x128xf32>
    %c146 = arith.constant 146 : index
    %c0_90 = arith.constant 0 : index
    %96 = vector.load %arg7[%c146, %c0_90] : memref<222x128xbf16, #tpu.memory_space<vmem>>, vector<60x128xbf16>
    %c5_91 = arith.constant 5 : index
    %c0_92 = arith.constant 0 : index
    %c0_93 = arith.constant 0 : index
    %97 = vector.load %arg4[%c5_91, %c0_92, %c0_93] : memref<9x128x128xbf16, #tpu.memory_space<vmem>>, vector<1x128x128xbf16>
    %98 = vector.shape_cast %97 : vector<1x128x128xbf16> to vector<128x128xbf16>
    %cst_94 = arith.constant dense<0.000000e+00> : vector<60x128xf32>
    %99 = tpu.matmul %96, %98, %cst_94 {dimension_numbers = #tpu.dot_dimension_numbers<[1], [0], [0], [1], [0, 0, 1, 1], [], []>} : vector<60x128xbf16>, vector<128x128xbf16>, vector<60x128xf32> -> vector<60x128xf32>
    %100 = arith.addf %95, %99 : vector<60x128xf32>
    %c160 = arith.constant 160 : index
    %c0_95 = arith.constant 0 : index
    %101 = vector.load %arg7[%c160, %c0_95] : memref<222x128xbf16, #tpu.memory_space<vmem>>, vector<60x128xbf16>
    %c6_96 = arith.constant 6 : index
    %c0_97 = arith.constant 0 : index
    %c0_98 = arith.constant 0 : index
    %102 = vector.load %arg4[%c6_96, %c0_97, %c0_98] : memref<9x128x128xbf16, #tpu.memory_space<vmem>>, vector<1x128x128xbf16>
    %103 = vector.shape_cast %102 : vector<1x128x128xbf16> to vector<128x128xbf16>
    %cst_99 = arith.constant dense<0.000000e+00> : vector<60x128xf32>
    %104 = tpu.matmul %101, %103, %cst_99 {dimension_numbers = #tpu.dot_dimension_numbers<[1], [0], [0], [1], [0, 0, 1, 1], [], []>} : vector<60x128xbf16>, vector<128x128xbf16>, vector<60x128xf32> -> vector<60x128xf32>
    %105 = arith.addf %100, %104 : vector<60x128xf32>
    %c161 = arith.constant 161 : index
    %c0_100 = arith.constant 0 : index
    %106 = vector.load %arg7[%c161, %c0_100] : memref<222x128xbf16, #tpu.memory_space<vmem>>, vector<60x128xbf16>
    %c7_101 = arith.constant 7 : index
    %c0_102 = arith.constant 0 : index
    %c0_103 = arith.constant 0 : index
    %107 = vector.load %arg4[%c7_101, %c0_102, %c0_103] : memref<9x128x128xbf16, #tpu.memory_space<vmem>>, vector<1x128x128xbf16>
    %108 = vector.shape_cast %107 : vector<1x128x128xbf16> to vector<128x128xbf16>
    %cst_104 = arith.constant dense<0.000000e+00> : vector<60x128xf32>
    %109 = tpu.matmul %106, %108, %cst_104 {dimension_numbers = #tpu.dot_dimension_numbers<[1], [0], [0], [1], [0, 0, 1, 1], [], []>} : vector<60x128xbf16>, vector<128x128xbf16>, vector<60x128xf32> -> vector<60x128xf32>
    %110 = arith.addf %105, %109 : vector<60x128xf32>
    %c162 = arith.constant 162 : index
    %c0_105 = arith.constant 0 : index
    %111 = vector.load %arg7[%c162, %c0_105] : memref<222x128xbf16, #tpu.memory_space<vmem>>, vector<60x128xbf16>
    %c8_106 = arith.constant 8 : index
    %c0_107 = arith.constant 0 : index
    %c0_108 = arith.constant 0 : index
    %112 = vector.load %arg4[%c8_106, %c0_107, %c0_108] : memref<9x128x128xbf16, #tpu.memory_space<vmem>>, vector<1x128x128xbf16>
    %113 = vector.shape_cast %112 : vector<1x128x128xbf16> to vector<128x128xbf16>
    %cst_109 = arith.constant dense<0.000000e+00> : vector<60x128xf32>
    %114 = tpu.matmul %111, %113, %cst_109 {dimension_numbers = #tpu.dot_dimension_numbers<[1], [0], [0], [1], [0, 0, 1, 1], [], []>} : vector<60x128xbf16>, vector<128x128xbf16>, vector<60x128xf32> -> vector<60x128xf32>
    %115 = arith.addf %110, %114 : vector<60x128xf32>
    %c0_110 = arith.constant 0 : index
    %c0_111 = arith.constant 0 : index
    %116 = vector.load %arg5[%c0_110, %c0_111] : memref<1x128xf32, #tpu.memory_space<vmem>>, vector<1x128xf32>
    %117 = vector.broadcast %116 : vector<1x128xf32> to vector<60x128xf32>
    %118 = arith.addf %115, %117 : vector<60x128xf32>
    %cst_112 = arith.constant 0.000000e+00 : f32
    %119 = vector.broadcast %cst_112 : f32 to vector<60x128xf32>
    %120 = arith.maximumf %118, %119 : vector<60x128xf32>
    %c128_113 = arith.constant 128 : index
    %c0_114 = arith.constant 0 : index
    %121 = vector.load %arg8[%c128_113, %c0_114] : memref<188x128xf32, #tpu.memory_space<vmem>>, vector<60x128xf32>
    tpu.vector_store %arg8[%c128_113, %c0_114], %120 {strides = array<i32>} : memref<188x128xf32, #tpu.memory_space<vmem>>, vector<60x128xf32>,
    %c0_115 = arith.constant 0 : index
    %c0_116 = arith.constant 0 : index
    %122 = tpu.strided_load %arg8[%c0_115, %c0_116] {strides = array<i32: 2, 1>} : memref<188x128xf32, #tpu.memory_space<vmem>>, vector<6x128xf32>
    %c1_117 = arith.constant 1 : index
    %c0_118 = arith.constant 0 : index
    %123 = tpu.strided_load %arg8[%c1_117, %c0_118] {strides = array<i32: 2, 1>} : memref<188x128xf32, #tpu.memory_space<vmem>>, vector<6x128xf32>
    %124 = arith.maximumf %122, %123 : vector<6x128xf32>
    %c16_119 = arith.constant 16 : index
    %c0_120 = arith.constant 0 : index
    %125 = tpu.strided_load %arg8[%c16_119, %c0_120] {strides = array<i32: 2, 1>} : memref<188x128xf32, #tpu.memory_space<vmem>>, vector<6x128xf32>
    %c17_121 = arith.constant 17 : index
    %c0_122 = arith.constant 0 : index
    %126 = tpu.strided_load %arg8[%c17_121, %c0_122] {strides = array<i32: 2, 1>} : memref<188x128xf32, #tpu.memory_space<vmem>>, vector<6x128xf32>
    %127 = arith.maximumf %125, %126 : vector<6x128xf32>
    %128 = arith.maximumf %124, %127 : vector<6x128xf32>
    %129 = arith.truncf %128 : vector<6x128xf32> to vector<6x128xbf16>
    %c0_123 = arith.constant 0 : index
    %c0_124 = arith.constant 0 : index
    %c0_125 = arith.constant 0 : index
    %c0_126 = arith.constant 0 : index
    %130 = vector.load %arg6[%c0_123, %c0_124, %c0_125, %c0_126] : memref<1x6x6x128xbf16, #tpu.memory_space<vmem>>, vector<1x1x6x128xbf16>
    %131 = vector.shape_cast %130 : vector<1x1x6x128xbf16> to vector<6x128xbf16>
    %132 = vector.shape_cast %129 : vector<6x128xbf16> to vector<1x1x6x128xbf16>
    tpu.vector_store %arg6[%c0_123, %c0_124, %c0_125, %c0_126], %132 {strides = array<i32>} : memref<1x6x6x128xbf16, #tpu.memory_space<vmem>>, vector<1x1x6x128xbf16>,
    %c32_127 = arith.constant 32 : index
    %c0_128 = arith.constant 0 : index
    %133 = tpu.strided_load %arg8[%c32_127, %c0_128] {strides = array<i32: 2, 1>} : memref<188x128xf32, #tpu.memory_space<vmem>>, vector<6x128xf32>
    %c33_129 = arith.constant 33 : index
    %c0_130 = arith.constant 0 : index
    %134 = tpu.strided_load %arg8[%c33_129, %c0_130] {strides = array<i32: 2, 1>} : memref<188x128xf32, #tpu.memory_space<vmem>>, vector<6x128xf32>
    %135 = arith.maximumf %133, %134 : vector<6x128xf32>
    %c48 = arith.constant 48 : index
    %c0_131 = arith.constant 0 : index
    %136 = tpu.strided_load %arg8[%c48, %c0_131] {strides = array<i32: 2, 1>} : memref<188x128xf32, #tpu.memory_space<vmem>>, vector<6x128xf32>
    %c49 = arith.constant 49 : index
    %c0_132 = arith.constant 0 : index
    %137 = tpu.strided_load %arg8[%c49, %c0_132] {strides = array<i32: 2, 1>} : memref<188x128xf32, #tpu.memory_space<vmem>>, vector<6x128xf32>
    %138 = arith.maximumf %136, %137 : vector<6x128xf32>
    %139 = arith.maximumf %135, %138 : vector<6x128xf32>
    %140 = arith.truncf %139 : vector<6x128xf32> to vector<6x128xbf16>
    %c0_133 = arith.constant 0 : index
    %c1_134 = arith.constant 1 : index
    %c0_135 = arith.constant 0 : index
    %c0_136 = arith.constant 0 : index
    %141 = vector.load %arg6[%c0_133, %c1_134, %c0_135, %c0_136] : memref<1x6x6x128xbf16, #tpu.memory_space<vmem>>, vector<1x1x6x128xbf16>
    %142 = vector.shape_cast %141 : vector<1x1x6x128xbf16> to vector<6x128xbf16>
    %143 = vector.shape_cast %140 : vector<6x128xbf16> to vector<1x1x6x128xbf16>
    tpu.vector_store %arg6[%c0_133, %c1_134, %c0_135, %c0_136], %143 {strides = array<i32>} : memref<1x6x6x128xbf16, #tpu.memory_space<vmem>>, vector<1x1x6x128xbf16>,
    %c64 = arith.constant 64 : index
    %c0_137 = arith.constant 0 : index
    %144 = tpu.strided_load %arg8[%c64, %c0_137] {strides = array<i32: 2, 1>} : memref<188x128xf32, #tpu.memory_space<vmem>>, vector<6x128xf32>
    %c65 = arith.constant 65 : index
    %c0_138 = arith.constant 0 : index
    %145 = tpu.strided_load %arg8[%c65, %c0_138] {strides = array<i32: 2, 1>} : memref<188x128xf32, #tpu.memory_space<vmem>>, vector<6x128xf32>
    %146 = arith.maximumf %144, %145 : vector<6x128xf32>
    %c80 = arith.constant 80 : index
    %c0_139 = arith.constant 0 : index
    %147 = tpu.strided_load %arg8[%c80, %c0_139] {strides = array<i32: 2, 1>} : memref<188x128xf32, #tpu.memory_space<vmem>>, vector<6x128xf32>
    %c81 = arith.constant 81 : index
    %c0_140 = arith.constant 0 : index
    %148 = tpu.strided_load %arg8[%c81, %c0_140] {strides = array<i32: 2, 1>} : memref<188x128xf32, #tpu.memory_space<vmem>>, vector<6x128xf32>
    %149 = arith.maximumf %147, %148 : vector<6x128xf32>
    %150 = arith.maximumf %146, %149 : vector<6x128xf32>
    %151 = arith.truncf %150 : vector<6x128xf32> to vector<6x128xbf16>
    %c0_141 = arith.constant 0 : index
    %c2_142 = arith.constant 2 : index
    %c0_143 = arith.constant 0 : index
    %c0_144 = arith.constant 0 : index
    %152 = vector.load %arg6[%c0_141, %c2_142, %c0_143, %c0_144] : memref<1x6x6x128xbf16, #tpu.memory_space<vmem>>, vector<1x1x6x128xbf16>
    %153 = vector.shape_cast %152 : vector<1x1x6x128xbf16> to vector<6x128xbf16>
    %154 = vector.shape_cast %151 : vector<6x128xbf16> to vector<1x1x6x128xbf16>
    tpu.vector_store %arg6[%c0_141, %c2_142, %c0_143, %c0_144], %154 {strides = array<i32>} : memref<1x6x6x128xbf16, #tpu.memory_space<vmem>>, vector<1x1x6x128xbf16>,
    %c96 = arith.constant 96 : index
    %c0_145 = arith.constant 0 : index
    %155 = tpu.strided_load %arg8[%c96, %c0_145] {strides = array<i32: 2, 1>} : memref<188x128xf32, #tpu.memory_space<vmem>>, vector<6x128xf32>
    %c97 = arith.constant 97 : index
    %c0_146 = arith.constant 0 : index
    %156 = tpu.strided_load %arg8[%c97, %c0_146] {strides = array<i32: 2, 1>} : memref<188x128xf32, #tpu.memory_space<vmem>>, vector<6x128xf32>
    %157 = arith.maximumf %155, %156 : vector<6x128xf32>
    %c112 = arith.constant 112 : index
    %c0_147 = arith.constant 0 : index
    %158 = tpu.strided_load %arg8[%c112, %c0_147] {strides = array<i32: 2, 1>} : memref<188x128xf32, #tpu.memory_space<vmem>>, vector<6x128xf32>
    %c113 = arith.constant 113 : index
    %c0_148 = arith.constant 0 : index
    %159 = tpu.strided_load %arg8[%c113, %c0_148] {strides = array<i32: 2, 1>} : memref<188x128xf32, #tpu.memory_space<vmem>>, vector<6x128xf32>
    %160 = arith.maximumf %158, %159 : vector<6x128xf32>
    %161 = arith.maximumf %157, %160 : vector<6x128xf32>
    %162 = arith.truncf %161 : vector<6x128xf32> to vector<6x128xbf16>
    %c0_149 = arith.constant 0 : index
    %c3_150 = arith.constant 3 : index
    %c0_151 = arith.constant 0 : index
    %c0_152 = arith.constant 0 : index
    %163 = vector.load %arg6[%c0_149, %c3_150, %c0_151, %c0_152] : memref<1x6x6x128xbf16, #tpu.memory_space<vmem>>, vector<1x1x6x128xbf16>
    %164 = vector.shape_cast %163 : vector<1x1x6x128xbf16> to vector<6x128xbf16>
    %165 = vector.shape_cast %162 : vector<6x128xbf16> to vector<1x1x6x128xbf16>
    tpu.vector_store %arg6[%c0_149, %c3_150, %c0_151, %c0_152], %165 {strides = array<i32>} : memref<1x6x6x128xbf16, #tpu.memory_space<vmem>>, vector<1x1x6x128xbf16>,
    %c128_153 = arith.constant 128 : index
    %c0_154 = arith.constant 0 : index
    %166 = tpu.strided_load %arg8[%c128_153, %c0_154] {strides = array<i32: 2, 1>} : memref<188x128xf32, #tpu.memory_space<vmem>>, vector<6x128xf32>
    %c129_155 = arith.constant 129 : index
    %c0_156 = arith.constant 0 : index
    %167 = tpu.strided_load %arg8[%c129_155, %c0_156] {strides = array<i32: 2, 1>} : memref<188x128xf32, #tpu.memory_space<vmem>>, vector<6x128xf32>
    %168 = arith.maximumf %166, %167 : vector<6x128xf32>
    %c144_157 = arith.constant 144 : index
    %c0_158 = arith.constant 0 : index
    %169 = tpu.strided_load %arg8[%c144_157, %c0_158] {strides = array<i32: 2, 1>} : memref<188x128xf32, #tpu.memory_space<vmem>>, vector<6x128xf32>
    %c145_159 = arith.constant 145 : index
    %c0_160 = arith.constant 0 : index
    %170 = tpu.strided_load %arg8[%c145_159, %c0_160] {strides = array<i32: 2, 1>} : memref<188x128xf32, #tpu.memory_space<vmem>>, vector<6x128xf32>
    %171 = arith.maximumf %169, %170 : vector<6x128xf32>
    %172 = arith.maximumf %168, %171 : vector<6x128xf32>
    %173 = arith.truncf %172 : vector<6x128xf32> to vector<6x128xbf16>
    %c0_161 = arith.constant 0 : index
    %c4_162 = arith.constant 4 : index
    %c0_163 = arith.constant 0 : index
    %c0_164 = arith.constant 0 : index
    %174 = vector.load %arg6[%c0_161, %c4_162, %c0_163, %c0_164] : memref<1x6x6x128xbf16, #tpu.memory_space<vmem>>, vector<1x1x6x128xbf16>
    %175 = vector.shape_cast %174 : vector<1x1x6x128xbf16> to vector<6x128xbf16>
    %176 = vector.shape_cast %173 : vector<6x128xbf16> to vector<1x1x6x128xbf16>
    tpu.vector_store %arg6[%c0_161, %c4_162, %c0_163, %c0_164], %176 {strides = array<i32>} : memref<1x6x6x128xbf16, #tpu.memory_space<vmem>>, vector<1x1x6x128xbf16>,
    %c160_165 = arith.constant 160 : index
    %c0_166 = arith.constant 0 : index
    %177 = tpu.strided_load %arg8[%c160_165, %c0_166] {strides = array<i32: 2, 1>} : memref<188x128xf32, #tpu.memory_space<vmem>>, vector<6x128xf32>
    %c161_167 = arith.constant 161 : index
    %c0_168 = arith.constant 0 : index
    %178 = tpu.strided_load %arg8[%c161_167, %c0_168] {strides = array<i32: 2, 1>} : memref<188x128xf32, #tpu.memory_space<vmem>>, vector<6x128xf32>
    %179 = arith.maximumf %177, %178 : vector<6x128xf32>
    %c176 = arith.constant 176 : index
    %c0_169 = arith.constant 0 : index
    %180 = tpu.strided_load %arg8[%c176, %c0_169] {strides = array<i32: 2, 1>} : memref<188x128xf32, #tpu.memory_space<vmem>>, vector<6x128xf32>
    %c177 = arith.constant 177 : index
    %c0_170 = arith.constant 0 : index
    %181 = tpu.strided_load %arg8[%c177, %c0_170] {strides = array<i32: 2, 1>} : memref<188x128xf32, #tpu.memory_space<vmem>>, vector<6x128xf32>
    %182 = arith.maximumf %180, %181 : vector<6x128xf32>
    %183 = arith.maximumf %179, %182 : vector<6x128xf32>
    %184 = arith.truncf %183 : vector<6x128xf32> to vector<6x128xbf16>
    %c0_171 = arith.constant 0 : index
    %c5_172 = arith.constant 5 : index
    %c0_173 = arith.constant 0 : index
    %c0_174 = arith.constant 0 : index
    %185 = vector.load %arg6[%c0_171, %c5_172, %c0_173, %c0_174] : memref<1x6x6x128xbf16, #tpu.memory_space<vmem>>, vector<1x1x6x128xbf16>
    %186 = vector.shape_cast %185 : vector<1x1x6x128xbf16> to vector<6x128xbf16>
    %187 = vector.shape_cast %184 : vector<6x128xbf16> to vector<1x1x6x128xbf16>
    tpu.vector_store %arg6[%c0_171, %c5_172, %c0_173, %c0_174], %187 {strides = array<i32>} : memref<1x6x6x128xbf16, #tpu.memory_space<vmem>>, vector<1x1x6x128xbf16>,
    return
  }
  func.func @transform_0(%arg0: i32) -> (i32, i32, i32) {
    %c0_i32 = arith.constant 0 : i32
    %c0_i32_0 = arith.constant 0 : i32
    %c0_i32_1 = arith.constant 0 : i32
    return %arg0, %c0_i32, %c0_i32_0 : i32, i32, i32
  }
  func.func @transform_1(%arg0: i32) -> (i32, i32) {
    %c0_i32 = arith.constant 0 : i32
    %c0_i32_0 = arith.constant 0 : i32
    %c0_i32_1 = arith.constant 0 : i32
    return %c0_i32, %c0_i32_0 : i32, i32
  }
  func.func @transform_2(%arg0: i32) -> (i32, i32) {
    %c0_i32 = arith.constant 0 : i32
    %c0_i32_0 = arith.constant 0 : i32
    %c0_i32_1 = arith.constant 0 : i32
    return %c0_i32, %c0_i32_0 : i32, i32
  }
  func.func @transform_3(%arg0: i32) -> (i32, i32, i32) {
    %c0_i32 = arith.constant 0 : i32
    %c0_i32_0 = arith.constant 0 : i32
    %c0_i32_1 = arith.constant 0 : i32
    %c0_i32_2 = arith.constant 0 : i32
    return %c0_i32, %c0_i32_0, %c0_i32_1 : i32, i32, i32
  }
  func.func @transform_4(%arg0: i32) -> (i32, i32) {
    %c0_i32 = arith.constant 0 : i32
    %c0_i32_0 = arith.constant 0 : i32
    %c0_i32_1 = arith.constant 0 : i32
    return %c0_i32, %c0_i32_0 : i32, i32
  }
  func.func @transform_5(%arg0: i32) -> (i32, i32, i32, i32) {
    %c0_i32 = arith.constant 0 : i32
    %c0_i32_0 = arith.constant 0 : i32
    %c0_i32_1 = arith.constant 0 : i32
    %c0_i32_2 = arith.constant 0 : i32
    return %arg0, %c0_i32, %c0_i32_0, %c0_i32_1 : i32, i32, i32, i32
  }
}

</mosaic_0001>

<llo_original>
// kernel: tpu_custom_call.1
$region0: #{tpu_custom_call.1}
  #allocation0 [shape = 'u32[]', space=smem, size = 0x4, offset = 0x4, fixed_abs, tag = 'smem constant byte address 0x4 - core index']
  #allocation1 [shape = 'u32[72,128]{1,0:T(1,128)}', space=vmem, size = 0x9000, scoped, tag = 'internal scratch']
  #allocation2 [shape = 'bf16[222,128]{1,0:T(8,128)(2,1)}', space=vmem, size = 0xe000, scoped, tag = 'scratch operand']
  #allocation3 [shape = 'f32[188,128]{1,0:T(8,128)}', space=vmem, size = 0x18000, scoped, tag = 'scratch operand']
  %s0 = inlined_call_operand.vmem [shape: bf16[2,222,36], index: 0, kind: input, shape index: {}]
  %s1 = inlined_call_operand.vmem [shape: bf16[36,128], index: 1, kind: input, shape index: {}]
  %s2 = inlined_call_operand.vmem [shape: f32[1,128], index: 2, kind: input, shape index: {}]
  %s3 = inlined_call_operand.hbm [shape: bf16[9,128,128], index: 3, kind: input, shape index: {}]
  %s4 = inlined_call_operand.vmem [shape: f32[1,128], index: 4, kind: input, shape index: {}]
  %s5 = inlined_call_operand.vmem [shape: bf16[2,6,6,128], index: 5, kind: output, shape index: {}]
  %s6 = sld [smem:[#allocation0]]
  $region57: #{tpu_custom_call.1} parent=0
    _
  %s8 = ssub.s32 1, %s6
  %s9 = scalar_select 0, %s8, %s6
  $region1: #{tpu_custom_call.1} parent=0
    #allocation4 [shape = 'u8[294912]{0}', space=vmem, size = 0x48000, scoped, tag = 'input window, operand 3, single buffered']
    #allocation5 [shape = 's32[2]{0}', space=sflag, size = 0x8, scoped, tag = 'scoped memory for tpu_custom_call.1']
    %10 = vsyncpa [#allocation5], 0
    loop: start=0, step=1, limit=4
    $region2: #{tpu_custom_call.1} parent=1 // loop_pre_header
      _
    $region3: #{tpu_custom_call.1} parent=1 // loop_header
      %s12 = sphi 0, %s16
      %p13 = scmp.ge.s32.totalorder %s12, 4
      %s22 = sphi 0, %s24
      %s25 = sphi 0, %s22
      %s26 = sphi 0, %s25
      %s42 = sphi 0, %s26
      %s46 = sphi 0, %s46
      %s48 = sphi 0, %s46
      %s49 = sphi 0, %s48
      %s63 = sphi 0, %s49
      %s67 = sphi 0, %s67
      %s69 = sphi 0, %s67
      %s70 = sphi 0, %s69
      %s84 = sphi 0, %s70
      %s88 = sphi 0, %s88
      %s90 = sphi 0, %s88
      %s91 = sphi 0, %s90
      %s105 = sphi 0, %s91
      %s109 = sphi 0, %s109
      %s111 = sphi 0, %s109
      %s112 = sphi 0, %s111
      %s126 = sphi 0, %s112
      %s132 = sphi 0, %s134
      %s135 = sphi 0, %s132
      %s136 = sphi 0, %s135
      %s152 = sphi 0, %s136
    $region4: #{tpu_custom_call.1} parent=1 // loop_header_branch
      %15 = sbr.rel (%p13) target = $region8
    $region5: #{tpu_custom_call.1} parent=1 // loop_body
      %s17 = ssub.s32 %s12, 1
      %s18 = ssub.s32 %s12, 2
      %s19 = sadd.s32 %s12, 1
      %s20 = ssub.s32 %s12, %s19
      %p21 = scmp.eq.s32.totalorder %s20, 0
      %s23 = sadd.s32 %s22, 1
      %s24 = scalar_select %p21, %s22, %s23
      %p27 = pneg %p21
      %p28 = scmp.eq.s32.totalorder %s12, 1
      %p29 = por %p27, %p28
      %p30 = scmp.ne.s32.totalorder %s22, %s25
      %p31 = scmp.eq.s32.totalorder %s12, 0
      %p32 = por %p30, %p31
      %p33 = scmp.ne.s32.totalorder %s22, %s25
      %p34 = scmp.eq.s32.totalorder %s17, 1
      %p35 = por %p33, %p34
      %p36 = scmp.ne.s32.totalorder %s25, %s26
      %p37 = scmp.eq.s32.totalorder %s17, 0
      %p38 = por %p36, %p37
      %p39 = scmp.ne.s32.totalorder %s25, %s26
      %p40 = scmp.eq.s32.totalorder %s18, 1
      %p41 = por %p39, %p40
      %p43 = scmp.ne.s32.totalorder %s26, %s42
      %p44 = scmp.eq.s32.totalorder %s18, 0
      %p45 = por %p43, %p44
      %s47 = sadd.s32 %s46, 1
      %p50 = scmp.eq.s32.totalorder %s12, 1
      %p51 = scmp.ne.s32.totalorder %s46, %s48
      %p52 = scmp.eq.s32.totalorder %s12, 0
      %p53 = por %p51, %p52
      %p54 = scmp.ne.s32.totalorder %s46, %s48
      %p55 = scmp.eq.s32.totalorder %s17, 1
      %p56 = por %p54, %p55
      %p57 = scmp.ne.s32.totalorder %s48, %s49
      %p58 = scmp.eq.s32.totalorder %s17, 0
      %p59 = por %p57, %p58
      %p60 = scmp.ne.s32.totalorder %s48, %s49
      %p61 = scmp.eq.s32.totalorder %s18, 1
      %p62 = por %p60, %p61
      %p64 = scmp.ne.s32.totalorder %s49, %s63
      %p65 = scmp.eq.s32.totalorder %s18, 0
      %p66 = por %p64, %p65
      %s68 = sadd.s32 %s67, 1
      %p71 = scmp.eq.s32.totalorder %s12, 1
      %p72 = scmp.ne.s32.totalorder %s67, %s69
      %p73 = scmp.eq.s32.totalorder %s12, 0
      %p74 = por %p72, %p73
      %p75 = scmp.ne.s32.totalorder %s67, %s69
      %p76 = scmp.eq.s32.totalorder %s17, 1
      %p77 = por %p75, %p76
      %p78 = scmp.ne.s32.totalorder %s69, %s70
      %p79 = scmp.eq.s32.totalorder %s17, 0
      %p80 = por %p78, %p79
      %p81 = scmp.ne.s32.totalorder %s69, %s70
      %p82 = scmp.eq.s32.totalorder %s18, 1
      %p83 = por %p81, %p82
      %p85 = scmp.ne.s32.totalorder %s70, %s84
      %p86 = scmp.eq.s32.totalorder %s18, 0
      %p87 = por %p85, %p86
      %s89 = sadd.s32 %s88, 1
      %p92 = scmp.eq.s32.totalorder %s12, 1
      %p93 = scmp.ne.s32.totalorder %s88, %s90
      %p94 = scmp.eq.s32.totalorder %s12, 0
      %p95 = por %p93, %p94
      %p96 = scmp.ne.s32.totalorder %s88, %s90
      %p97 = scmp.eq.s32.totalorder %s17, 1
      %p98 = por %p96, %p97
      %p99 = scmp.ne.s32.totalorder %s90, %s91
      %p100 = scmp.eq.s32.totalorder %s17, 0
      %p101 = por %p99, %p100
      %p102 = scmp.ne.s32.totalorder %s90, %s91
      %p103 = scmp.eq.s32.totalorder %s18, 1
      %p104 = por %p102, %p103
      %p106 = scmp.ne.s32.totalorder %s91, %s105
      %p107 = scmp.eq.s32.totalorder %s18, 0
      %p108 = por %p106, %p107
      %s110 = sadd.s32 %s109, 1
      %p113 = scmp.eq.s32.totalorder %s12, 1
      %p114 = scmp.ne.s32.totalorder %s109, %s111
      %p115 = scmp.eq.s32.totalorder %s12, 0
      %p116 = por %p114, %p115
      %p117 = scmp.ne.s32.totalorder %s109, %s111
      %p118 = scmp.eq.s32.totalorder %s17, 1
      %p119 = por %p117, %p118
      %p120 = scmp.ne.s32.totalorder %s111, %s112
      %p121 = scmp.eq.s32.totalorder %s17, 0
      %p122 = por %p120, %p121
      %p123 = scmp.ne.s32.totalorder %s111, %s112
      %p124 = scmp.eq.s32.totalorder %s18, 1
      %p125 = por %p123, %p124
      %p127 = scmp.ne.s32.totalorder %s112, %s126
      %p128 = scmp.eq.s32.totalorder %s18, 0
      %p129 = por %p127, %p128
      %s130 = ssub.s32 %s12, %s19
      %p131 = scmp.eq.s32.totalorder %s130, 0
      %s133 = sadd.s32 %s132, 1
      %s134 = scalar_select %p131, %s132, %s133
      %p137 = pneg %p131
      %p138 = scmp.eq.s32.totalorder %s12, 1
      %p139 = por %p137, %p138
      %p140 = scmp.ne.s32.totalorder %s132, %s135
      %p141 = scmp.eq.s32.totalorder %s12, 0
      %p142 = por %p140, %p141
      %p143 = scmp.ne.s32.totalorder %s132, %s135
      %p144 = scmp.eq.s32.totalorder %s17, 1
      %p145 = por %p143, %p144
      %p146 = scmp.ne.s32.totalorder %s135, %s136
      %p147 = scmp.eq.s32.totalorder %s17, 0
      %p148 = por %p146, %p147
      %p149 = scmp.ne.s32.totalorder %s135, %s136
      %p150 = scmp.eq.s32.totalorder %s18, 1
      %p151 = por %p149, %p150
      %p153 = scmp.ne.s32.totalorder %s136, %s152
      %p154 = scmp.eq.s32.totalorder %s18, 0
      %p155 = por %p153, %p154
      %p156 = scmp.le.s32.totalorder 1, %s12
      %p157 = scmp.lt.s32.totalorder %s12, 3
      %p158 = pnand %p156, %p157
      %p159 = pneg %p158
      // Predicated region
      $region9: #{tpu_custom_call.1} parent=5 // pred_check
        _
      $region10: #{tpu_custom_call.1} parent=5 // pred_check_branch
        %161 = sbr.rel (%p158) target = $region12
      $region11: #{tpu_custom_call.1} parent=5 // pred_region
        %s162 = ssub.s32 %s12, 1
        // Predicated region
        $region13: #{tpu_custom_call.1} parent=11 // pred_check
          %p163 = pneg %p59
        $region14: #{tpu_custom_call.1} parent=11 // pred_check_branch
          %165 = sbr.rel (%p163) target = $region16
        $region15: #{tpu_custom_call.1} parent=11 // pred_region
          _
        $region16: #{tpu_custom_call.1} parent=11 // pred_fallthru
          _
        // Predicated region
        $region17: #{tpu_custom_call.1} parent=11 // pred_check
          %p166 = pneg %p80
        $region18: #{tpu_custom_call.1} parent=11 // pred_check_branch
          %168 = sbr.rel (%p166) target = $region20
        $region19: #{tpu_custom_call.1} parent=11 // pred_region
          _
        $region20: #{tpu_custom_call.1} parent=11 // pred_fallthru
          _
        // Predicated region
        $region21: #{tpu_custom_call.1} parent=11 // pred_check
          %p169 = pneg %p101
        $region22: #{tpu_custom_call.1} parent=11 // pred_check_branch
          %171 = sbr.rel (%p169) target = $region24
        $region23: #{tpu_custom_call.1} parent=11 // pred_region
          %173 = vsyncadd [#allocation5], 0
          %s174 = sshll.u32 %s3, 4
          %s175 = int_to_ptr.hbm [resolvable:$true] %s174
          %s176 = sshll.u32 [#allocation4], 4
          %s177 = int_to_ptr.vmem [resolvable:$true] %s176
          %182 = dma.hbm_to_vmem [thread:$0]  %s175, 9216, %s177, [#allocation5], 64, 64, 4
        $region24: #{tpu_custom_call.1} parent=11 // pred_fallthru
          _
        // Predicated region
        $region25: #{tpu_custom_call.1} parent=11 // pred_check
          %p183 = pneg %p122
        $region26: #{tpu_custom_call.1} parent=11 // pred_check_branch
          %185 = sbr.rel (%p183) target = $region28
        $region27: #{tpu_custom_call.1} parent=11 // pred_region
          _
        $region28: #{tpu_custom_call.1} parent=11 // pred_fallthru
          _
      $region12: #{tpu_custom_call.1} parent=5 // pred_fallthru
        _
      %p186 = scmp.lt.s32.totalorder %s12, 2
      // Predicated region
      $region29: #{tpu_custom_call.1} parent=5 // pred_check
        %p187 = pneg %p186
      $region30: #{tpu_custom_call.1} parent=5 // pred_check_branch
        %189 = sbr.rel (%p187) target = $region32
      $region31: #{tpu_custom_call.1} parent=5 // pred_region
        // Predicated region
        $region33: #{tpu_custom_call.1} parent=31 // pred_check
          %p190 = pneg %p32
        $region34: #{tpu_custom_call.1} parent=31 // pred_check_branch
          %192 = sbr.rel (%p190) target = $region36
        $region35: #{tpu_custom_call.1} parent=31 // pred_region
          %p193 = scmp.lt.s32.totalorder %s12, 1
          %s194 = scalar_select %p193, %s12, 1
          %s195 = smul.addr %s194, 28
          %s196 = smul.addr %s195, 4
          %s197 = scalar_lea.vmem %s0, %s196
        $region36: #{tpu_custom_call.1} parent=31 // pred_fallthru
          _
      $region32: #{tpu_custom_call.1} parent=5 // pred_fallthru
        _
      %p198 = scmp.le.s32.totalorder 1, %s12
      %p199 = scmp.lt.s32.totalorder %s12, 3
      %p200 = pnand %p198, %p199
      %p201 = pneg %p200
      // Predicated region
      $region37: #{tpu_custom_call.1} parent=5 // pred_check
        _
      $region38: #{tpu_custom_call.1} parent=5 // pred_check_branch
        %203 = sbr.rel (%p200) target = $region40
      $region39: #{tpu_custom_call.1} parent=5 // pred_region
        %s204 = ssub.s32 %s12, 1
        // Predicated region
        $region41: #{tpu_custom_call.1} parent=39 // pred_check
          %p205 = pneg %p101
        $region42: #{tpu_custom_call.1} parent=39 // pred_check_branch
          %207 = sbr.rel (%p205) target = $region44
        $region43: #{tpu_custom_call.1} parent=39 // pred_region
          %209 = dma.done [#allocation5], 9216
        $region44: #{tpu_custom_call.1} parent=39 // pred_fallthru
          _
        %p210 = scmp.lt.s32.totalorder %s17, 1
        %s211 = scalar_select %p210, %s17, 1
        %s212 = smul.addr %s211, 28
        %s213 = smul.addr %s212, 4
        %s214 = scalar_lea.vmem %s0, %s213
        %p215 = pneg %p38
        %p216 = pneg %p35
        %p217 = pneg %p59
        %p218 = pneg %p56
        %p219 = pneg %p80
        %p220 = pneg %p77
        %p221 = pneg %p101
        %p222 = pneg %p98
        %p223 = pneg %p122
        %p224 = pneg %p119
        %p225 = pneg %p148
        %p226 = pneg %p145
        %p227 = scmp.lt.s32.totalorder %s17, 1
        %s228 = scalar_select %p227, %s17, 1
        %s229 = smul.addr %s228, 6
        %s230 = smul.addr %s229, 4
        %s231 = scalar_lea.vmem %s5, %s230
        %p232 = scmp.lt.s32.totalorder %s17, 1
        %s233 = scalar_select %p232, %s17, 1
        %s234 = smul.addr %s233, 28
        %s235 = smul.addr %s234, 4
        %s236 = scalar_lea.vmem %s0, %s235
        %p237 = scmp.lt.s32.totalorder %s17, 1
        %s238 = scalar_select %p237, %s17, 1
        %s239 = smul.addr %s238, 6
        %s240 = smul.addr %s239, 4
        %s241 = scalar_lea.vmem %s5, %s240
        %v243 = vld [vmem:[%s236] sm:$0xf]
        %v244 = vld [vmem:[%s236 + $0x4] sm:$0xf]
        %v245 = vld [vmem:[%s236 + $0x8] sm:$0xf]
        %v246 = vld [vmem:[%s236 + $0xc] sm:$0xf]
        %v247 = vld [vmem:[%s236 + $0x10] sm:$0xf]
        %v248 = vld [vmem:[%s236 + $0x14] sm:$0xf]
        %v249 = vld [vmem:[%s236 + $0x18] sm:$0xf]
        %v250 = vld [vmem:[%s236 + $0x1c] sm:$0xf]
        %v251 = vld [vmem:[%s236 + $0x20] sm:$0xf]
        %v252 = vld [vmem:[%s236 + $0x24] sm:$0xf]
        %v253 = vld [vmem:[%s236 + $0x28] sm:$0xf]
        %v254 = vld [vmem:[%s236 + $0x2c] sm:$0xf]
        %v255 = vld [vmem:[%s236 + $0x30] sm:$0xf]
        %v256 = vld [vmem:[%s236 + $0x34] sm:$0xf]
        %v257 = vld [vmem:[%s236 + $0x38] sm:$0xf]
        %v258 = vld [vmem:[%s236 + $0x3c] sm:$0xf]
        %v259 = vld [vmem:[%s1] sm:$0xf]
        %v260 = vld [vmem:[%s1 + $0x4] sm:$0xf]
        %v261 = vld [vmem:[%s1 + $0x8] sm:$0xf]
        %v262 = vld [vmem:[%s1 + $0xc] sm:$0xf]
        %v263 = vld [vmem:[%s1 + $0x10] sm:$0x3]
        %v264 = vld [vmem:[%s2] sm:$0x1]
        %v266 = vperm.slane %v264, 0
        %v284 = vunpack.c.l.b16 %v243
        %v285 = vunpack.c.l.b16 %v244
        %v286 = vunpack.c.l.b16 %v245
        %v287 = vunpack.c.l.b16 %v246
        %v288 = vunpack.c.l.b16 %v247
        %v289 = vunpack.c.l.b16 %v248
        %v290 = vunpack.c.l.b16 %v249
        %v291 = vunpack.c.l.b16 %v250
        %v292 = vunpack.c.l.b16 %v251
        %v293 = vunpack.c.l.b16 %v252
        %v294 = vunpack.c.l.b16 %v253
        %v295 = vunpack.c.l.b16 %v254
        %v296 = vunpack.c.l.b16 %v255
        %v297 = vunpack.c.l.b16 %v256
        %v298 = vunpack.c.l.b16 %v257
        %v299 = vunpack.c.l.b16 %v258
        %v300 = vpack.c.b16 %v285, %v284
        %v301 = vpack.c.b16 %v287, %v286
        %v302 = vpack.c.b16 %v289, %v288
        %v303 = vpack.c.b16 %v291, %v290
        %v304 = vpack.c.b16 %v293, %v292
        %v305 = vpack.c.b16 %v295, %v294
        %v306 = vpack.c.b16 %v297, %v296
        %v307 = vpack.c.b16 %v299, %v298
        %v313 = vunpack.c.l.b16 %v259
        %v314 = vunpack.c.l.b16 %v260
        %v315 = vunpack.c.l.b16 %v261
        %v316 = vunpack.c.l.b16 %v262
        %v317 = vunpack.c.l.b16 %v263
        %v318 = vpack.c.b16 %v314, %v313
        %v319 = vpack.c.b16 %v316, %v315
        %v320 = vpack.c.b16 %v317, %v317
        %vm323 = vcmask 293888
        %v325 = vsel %vm323, %v300, 0
        %v328 = vsel %vm323, %v301, 0
        %v331 = vsel %vm323, %v302, 0
        %v334 = vsel %vm323, %v303, 0
        %v337 = vsel %vm323, %v304, 0
        %v340 = vsel %vm323, %v305, 0
        %v343 = vsel %vm323, %v306, 0
        %v346 = vsel %vm323, %v307, 0
        %vm348 = vcmask 1041408
        %v350 = vsel %vm348, %v320, 0
        %352 = vmatpush.bf16.msra.mxu0 0
        %353 = vmatpush.bf16.msra.mxu0 0
        %354 = vmatpush.bf16.msra.mxu0 0
        %355 = vmatpush.bf16.msra.mxu0 0
        %356 = vmatpush.bf16.msra.mxu0 0
        %357 = vmatpush.bf16.msra.mxu0 %v350
        %358 = vmatpush.bf16.msra.mxu0 %v319
        %359 = vmatpush.bf16.msra.mxu0 %v318
        %360 = vmatmul.bf16.gmra.mxu0 %v325
        %v361 = vpop.f32.mrf.mxu0
        %v362 = vadd.f32 %v266, %v361
        %v363 = vpop.f32.mrf.mxu0
        %v364 = vadd.f32 %v266, %v363
        %365 = vmatmul.bf16.gmra.mxu0 %v328
        %v366 = vpop.f32.mrf.mxu0
        %v367 = vadd.f32 %v266, %v366
        %v368 = vpop.f32.mrf.mxu0
        %v369 = vadd.f32 %v266, %v368
        %370 = vmatmul.bf16.gmra.mxu0 %v331
        %v371 = vpop.f32.mrf.mxu0
        %v372 = vadd.f32 %v266, %v371
        %v373 = vpop.f32.mrf.mxu0
        %v374 = vadd.f32 %v266, %v373
        %375 = vmatmul.bf16.gmra.mxu0 %v334
        %v376 = vpop.f32.mrf.mxu0
        %v377 = vadd.f32 %v266, %v376
        %v378 = vpop.f32.mrf.mxu0
        %v379 = vadd.f32 %v266, %v378
        %380 = vmatmul.bf16.gmra.mxu0 %v337
        %v381 = vpop.f32.mrf.mxu0
        %v382 = vadd.f32 %v266, %v381
        %v383 = vpop.f32.mrf.mxu0
        %v384 = vadd.f32 %v266, %v383
        %385 = vmatmul.bf16.gmra.mxu0 %v340
        %v386 = vpop.f32.mrf.mxu0
        %v387 = vadd.f32 %v266, %v386
        %v388 = vpop.f32.mrf.mxu0
        %v389 = vadd.f32 %v266, %v388
        %390 = vmatmul.bf16.gmra.mxu0 %v343
        %v391 = vpop.f32.mrf.mxu0
        %v392 = vadd.f32 %v266, %v391
        %v393 = vpop.f32.mrf.mxu0
        %v394 = vadd.f32 %v266, %v393
        %395 = vmatmul.bf16.gmra.mxu0 %v346
        %v396 = vpop.f32.mrf.mxu0
        %v397 = vadd.f32 %v266, %v396
        %v398 = vpop.f32.mrf.mxu0
        %v399 = vadd.f32 %v266, %v398
        %400 = vdwg.mxu0
        %v401 = vmax.f32 %v362, 0.0
        %v402 = vmax.f32 %v364, 0.0
        %v403 = vmax.f32 %v367, 0.0
        %v404 = vmax.f32 %v369, 0.0
        %v405 = vmax.f32 %v372, 0.0
        %v406 = vmax.f32 %v374, 0.0
        %v407 = vmax.f32 %v377, 0.0
        %v408 = vmax.f32 %v379, 0.0
        %v409 = vmax.f32 %v382, 0.0
        %v410 = vmax.f32 %v384, 0.0
        %v411 = vmax.f32 %v387, 0.0
        %v412 = vmax.f32 %v389, 0.0
        %v413 = vmax.f32 %v392, 0.0
        %v414 = vmax.f32 %v394, 0.0
        %v415 = vmax.f32 %v397, 0.0
        %v416 = vmax.f32 %v399, 0.0
        %v417 = vpack.c.bf16 %v401, %v401
        %v418 = vpack.c.bf16 %v402, %v402
        %v419 = vpack.c.bf16 %v403, %v403
        %v420 = vpack.c.bf16 %v404, %v404
        %v421 = vpack.c.bf16 %v405, %v405
        %v422 = vpack.c.bf16 %v406, %v406
        %v423 = vpack.c.bf16 %v407, %v407
        %v424 = vpack.c.bf16 %v408, %v408
        %v425 = vpack.c.bf16 %v409, %v409
        %v426 = vpack.c.bf16 %v410, %v410
        %v427 = vpack.c.bf16 %v411, %v411
        %v428 = vpack.c.bf16 %v412, %v412
        %v429 = vpack.c.bf16 %v413, %v413
        %v430 = vpack.c.bf16 %v414, %v414
        %v431 = vpack.c.bf16 %v415, %v415
        %v432 = vpack.c.bf16 %v416, %v416
        %433 = vst [vmem:[#allocation2] sm:$0xf] %v417
        %434 = vst [vmem:[#allocation2 + $0x4] sm:$0xf] %v418
        %435 = vst [vmem:[#allocation2 + $0x8] sm:$0xf] %v419
        %436 = vst [vmem:[#allocation2 + $0xc] sm:$0xf] %v420
        %437 = vst [vmem:[#allocation2 + $0x10] sm:$0xf] %v421
        %438 = vst [vmem:[#allocation2 + $0x14] sm:$0xf] %v422
        %439 = vst [vmem:[#allocation2 + $0x18] sm:$0xf] %v423
        %440 = vst [vmem:[#allocation2 + $0x1c] sm:$0xf] %v424
        %441 = vst [vmem:[#allocation2 + $0x20] sm:$0xf] %v425
        %442 = vst [vmem:[#allocation2 + $0x24] sm:$0xf] %v426
        %443 = vst [vmem:[#allocation2 + $0x28] sm:$0xf] %v427
        %444 = vst [vmem:[#allocation2 + $0x2c] sm:$0xf] %v428
        %445 = vst [vmem:[#allocation2 + $0x30] sm:$0xf] %v429
        %446 = vst [vmem:[#allocation2 + $0x34] sm:$0xf] %v430
        %447 = vst [vmem:[#allocation2 + $0x38] sm:$0xf] %v431
        %448 = vst [vmem:[#allocation2 + $0x3c] sm:$0xf] %v432
        %v449 = vld [vmem:[%s236 + $0x40] sm:$0xf]
        %v450 = vld [vmem:[%s236 + $0x44] sm:$0xf]
        %v451 = vld [vmem:[%s236 + $0x48] sm:$0xf]
        %v452 = vld [vmem:[%s236 + $0x4c] sm:$0xf]
        %v453 = vld [vmem:[%s236 + $0x50] sm:$0xf]
        %v454 = vld [vmem:[%s236 + $0x54] sm:$0xf]
        %v455 = vld [vmem:[%s236 + $0x58] sm:$0xf]
        %v456 = vld [vmem:[%s236 + $0x5c] sm:$0xf]
        %v457 = vld [vmem:[%s236 + $0x60] sm:$0xf]
        %v458 = vld [vmem:[%s236 + $0x64] sm:$0xf]
        %v459 = vld [vmem:[%s236 + $0x68] sm:$0xf]
        %v460 = vld [vmem:[%s236 + $0x6c] sm:$0x7]
        %v461 = vld [vmem:[%s1] sm:$0xf]
        %v462 = vld [vmem:[%s1 + $0x4] sm:$0xf]
        %v463 = vld [vmem:[%s1 + $0x8] sm:$0xf]
        %v464 = vld [vmem:[%s1 + $0xc] sm:$0xf]
        %v465 = vld [vmem:[%s1 + $0x10] sm:$0x3]
        %v466 = vld [vmem:[%s2] sm:$0x1]
        %v468 = vperm.slane %v466, 0
        %v482 = vunpack.c.l.b16 %v449
        %v483 = vunpack.c.l.b16 %v450
        %v484 = vunpack.c.l.b16 %v451
        %v485 = vunpack.c.l.b16 %v452
        %v486 = vunpack.c.l.b16 %v453
        %v487 = vunpack.c.l.b16 %v454
        %v488 = vunpack.c.l.b16 %v455
        %v489 = vunpack.c.l.b16 %v456
        %v490 = vunpack.c.l.b16 %v457
        %v491 = vunpack.c.l.b16 %v458
        %v492 = vunpack.c.l.b16 %v459
        %v493 = vunpack.c.l.b16 %v460
        %v494 = vpack.c.b16 %v483, %v482
        %v495 = vpack.c.b16 %v485, %v484
        %v496 = vpack.c.b16 %v487, %v486
        %v497 = vpack.c.b16 %v489, %v488
        %v498 = vpack.c.b16 %v491, %v490
        %v499 = vpack.c.b16 %v493, %v492
        %v505 = vunpack.c.l.b16 %v461
        %v506 = vunpack.c.l.b16 %v462
        %v507 = vunpack.c.l.b16 %v463
        %v508 = vunpack.c.l.b16 %v464
        %v509 = vunpack.c.l.b16 %v465
        %v510 = vpack.c.b16 %v506, %v505
        %v511 = vpack.c.b16 %v508, %v507
        %v512 = vpack.c.b16 %v509, %v509
        %v516 = vsel %vm323, %v494, 0
        %v519 = vsel %vm323, %v495, 0
        %v522 = vsel %vm323, %v496, 0
        %v525 = vsel %vm323, %v497, 0
        %v528 = vsel %vm323, %v498, 0
        %v531 = vsel %vm323, %v499, 0
        %v534 = vsel %vm348, %v512, 0
        %536 = vmatpush.bf16.msra.mxu0 0
        %537 = vmatpush.bf16.msra.mxu0 0
        %538 = vmatpush.bf16.msra.mxu0 0
        %539 = vmatpush.bf16.msra.mxu0 0
        %540 = vmatpush.bf16.msra.mxu0 0
        %541 = vmatpush.bf16.msra.mxu0 %v534
        %542 = vmatpush.bf16.msra.mxu0 %v511
        %543 = vmatpush.bf16.msra.mxu0 %v510
        %544 = vmatmul.bf16.gmra.mxu0 %v516
        %v545 = vpop.f32.mrf.mxu0
        %v546 = vadd.f32 %v468, %v545
        %v547 = vpop.f32.mrf.mxu0
        %v548 = vadd.f32 %v468, %v547
        %549 = vmatmul.bf16.gmra.mxu0 %v519
        %v550 = vpop.f32.mrf.mxu0
        %v551 = vadd.f32 %v468, %v550
        %v552 = vpop.f32.mrf.mxu0
        %v553 = vadd.f32 %v468, %v552
        %554 = vmatmul.bf16.gmra.mxu0 %v522
        %v555 = vpop.f32.mrf.mxu0
        %v556 = vadd.f32 %v468, %v555
        %v557 = vpop.f32.mrf.mxu0
        %v558 = vadd.f32 %v468, %v557
        %559 = vmatmul.bf16.gmra.mxu0 %v525
        %v560 = vpop.f32.mrf.mxu0
        %v561 = vadd.f32 %v468, %v560
        %v562 = vpop.f32.mrf.mxu0
        %v563 = vadd.f32 %v468, %v562
        %564 = vmatmul.bf16.gmra.mxu0 %v528
        %v565 = vpop.f32.mrf.mxu0
        %v566 = vadd.f32 %v468, %v565
        %v567 = vpop.f32.mrf.mxu0
        %v568 = vadd.f32 %v468, %v567
        %569 = vmatmul.bf16.gmra.mxu0 %v531
        %v570 = vpop.f32.mrf.mxu0
        %v571 = vadd.f32 %v468, %v570
        %v572 = vpop.f32.mrf.mxu0
        %v573 = vadd.f32 %v468, %v572
        %574 = vdwg.mxu0
        %v575 = vmax.f32 %v546, 0.0
        %v576 = vmax.f32 %v548, 0.0
        %v577 = vmax.f32 %v551, 0.0
        %v578 = vmax.f32 %v553, 0.0
        %v579 = vmax.f32 %v556, 0.0
        %v580 = vmax.f32 %v558, 0.0
        %v581 = vmax.f32 %v561, 0.0
        %v582 = vmax.f32 %v563, 0.0
        %v583 = vmax.f32 %v566, 0.0
        %v584 = vmax.f32 %v568, 0.0
        %v585 = vmax.f32 %v571, 0.0
        %v586 = vmax.f32 %v573, 0.0
        %v587 = vpack.c.bf16 %v575, %v575
        %v588 = vpack.c.bf16 %v576, %v576
        %v589 = vpack.c.bf16 %v577, %v577
        %v590 = vpack.c.bf16 %v578, %v578
        %v591 = vpack.c.bf16 %v579, %v579
        %v592 = vpack.c.bf16 %v580, %v580
        %v593 = vpack.c.bf16 %v581, %v581
        %v594 = vpack.c.bf16 %v582, %v582
        %v595 = vpack.c.bf16 %v583, %v583
        %v596 = vpack.c.bf16 %v584, %v584
        %v597 = vpack.c.bf16 %v585, %v585
        %v598 = vpack.c.bf16 %v586, %v586
        %599 = vst [vmem:[#allocation2 + $0x40] sm:$0xf] %v587
        %600 = vst [vmem:[#allocation2 + $0x44] sm:$0xf] %v588
        %601 = vst [vmem:[#allocation2 + $0x48] sm:$0xf] %v589
        %602 = vst [vmem:[#allocation2 + $0x4c] sm:$0xf] %v590
        %603 = vst [vmem:[#allocation2 + $0x50] sm:$0xf] %v591
        %604 = vst [vmem:[#allocation2 + $0x54] sm:$0xf] %v592
        %605 = vst [vmem:[#allocation2 + $0x58] sm:$0xf] %v593
        %606 = vst [vmem:[#allocation2 + $0x5c] sm:$0xf] %v594
        %607 = vst [vmem:[#allocation2 + $0x60] sm:$0xf] %v595
        %608 = vst [vmem:[#allocation2 + $0x64] sm:$0xf] %v596
        %609 = vst [vmem:[#allocation2 + $0x68] sm:$0xf] %v597
        %610 = vst [vmem:[#allocation2 + $0x6c] sm:$0x7] %v598
        %v611 = vld [vmem:[#allocation2] sm:$0xf]
        %v612 = vld [vmem:[#allocation2 + $0x4] sm:$0xf]
        %v613 = vld [vmem:[#allocation2 + $0x8] sm:$0xf]
        %v614 = vld [vmem:[#allocation2 + $0xc] sm:$0xf]
        %v615 = vld [vmem:[#allocation2 + $0x10] sm:$0xf]
        %v616 = vld [vmem:[#allocation2 + $0x14] sm:$0xf]
        %v617 = vld [vmem:[#allocation2 + $0x18] sm:$0xf]
        %v618 = vld [vmem:[#allocation2 + $0x1c] sm:$0xf]
        %v619 = vld [vmem:[#allocation2 + $0x20] sm:$0xf]
        %v620 = vld [vmem:[#allocation2 + $0x24] sm:$0xf]
        %v621 = vld [vmem:[#allocation2 + $0x28] sm:$0xf]
        %v622 = vld [vmem:[#allocation2 + $0x2c] sm:$0xf]
        %v623 = vld [vmem:[#allocation2 + $0x30] sm:$0xf]
        %v624 = vld [vmem:[#allocation2 + $0x34] sm:$0xf]
        %v625 = vld [vmem:[#allocation2 + $0x38] sm:$0xf]
        %v626 = vld [vmem:[#allocation2 + $0x3c] sm:$0xf]
        %v627 = vld [vmem:[#allocation4] sm:$0xf]
        %v628 = vld [vmem:[#allocation4 + $0x4] sm:$0xf]
        %v629 = vld [vmem:[#allocation4 + $0x8] sm:$0xf]
        %v630 = vld [vmem:[#allocation4 + $0xc] sm:$0xf]
        %v631 = vld [vmem:[#allocation4 + $0x10] sm:$0xf]
        %v632 = vld [vmem:[#allocation4 + $0x14] sm:$0xf]
        %v633 = vld [vmem:[#allocation4 + $0x18] sm:$0xf]
        %v634 = vld [vmem:[#allocation4 + $0x1c] sm:$0xf]
        %v635 = vld [vmem:[#allocation4 + $0x20] sm:$0xf]
        %v636 = vld [vmem:[#allocation4 + $0x24] sm:$0xf]
        %v637 = vld [vmem:[#allocation4 + $0x28] sm:$0xf]
        %v638 = vld [vmem:[#allocation4 + $0x2c] sm:$0xf]
        %v639 = vld [vmem:[#allocation4 + $0x30] sm:$0xf]
        %v640 = vld [vmem:[#allocation4 + $0x34] sm:$0xf]
        %v641 = vld [vmem:[#allocation4 + $0x38] sm:$0xf]
        %v642 = vld [vmem:[#allocation4 + $0x3c] sm:$0xf]
        %v643 = vld [vmem:[#allocation2 + $0x40] sm:$0x1]
        %s644 = scalar_lea.vmem [#allocation4], 64
        %v645 = vld [vmem:[%s644] sm:$0xf]
        %v646 = vld [vmem:[%s644 + $0x4] sm:$0xf]
        %v647 = vld [vmem:[%s644 + $0x8] sm:$0xf]
        %v648 = vld [vmem:[%s644 + $0xc] sm:$0xf]
        %v649 = vld [vmem:[%s644 + $0x10] sm:$0xf]
        %v650 = vld [vmem:[%s644 + $0x14] sm:$0xf]
        %v651 = vld [vmem:[%s644 + $0x18] sm:$0xf]
        %v652 = vld [vmem:[%s644 + $0x1c] sm:$0xf]
        %v653 = vld [vmem:[%s644 + $0x20] sm:$0xf]
        %v654 = vld [vmem:[%s644 + $0x24] sm:$0xf]
        %v655 = vld [vmem:[%s644 + $0x28] sm:$0xf]
        %v656 = vld [vmem:[%s644 + $0x2c] sm:$0xf]
        %v657 = vld [vmem:[%s644 + $0x30] sm:$0xf]
        %v658 = vld [vmem:[%s644 + $0x34] sm:$0xf]
        %v659 = vld [vmem:[%s644 + $0x38] sm:$0xf]
        %v660 = vld [vmem:[%s644 + $0x3c] sm:$0xf]
        %v678 = vunpack.c.l.b16 %v611
        %v679 = vunpack.c.l.b16 %v612
        %v680 = vunpack.c.l.b16 %v613
        %v681 = vunpack.c.l.b16 %v614
        %v682 = vunpack.c.l.b16 %v615
        %v683 = vunpack.c.l.b16 %v616
        %v684 = vunpack.c.l.b16 %v617
        %v685 = vunpack.c.l.b16 %v618
        %v686 = vunpack.c.l.b16 %v619
        %v687 = vunpack.c.l.b16 %v620
        %v688 = vunpack.c.l.b16 %v621
        %v689 = vunpack.c.l.b16 %v622
        %v690 = vunpack.c.l.b16 %v623
        %v691 = vunpack.c.l.b16 %v624
        %v692 = vunpack.c.l.b16 %v625
        %v693 = vunpack.c.l.b16 %v626
        %v694 = vunpack.c.l.b16 %v643
        %v695 = vpack.c.b16 %v679, %v678
        %v696 = vpack.c.b16 %v681, %v680
        %v697 = vpack.c.b16 %v683, %v682
        %v698 = vpack.c.b16 %v685, %v684
        %v699 = vpack.c.b16 %v687, %v686
        %v700 = vpack.c.b16 %v689, %v688
        %v701 = vpack.c.b16 %v691, %v690
        %v702 = vpack.c.b16 %v693, %v692
        %v703 = vpack.c.b16 %v694, %v694
        %vm704 = vsmask.f32 7424
        %v706 = vshrl.u32 %v695, 16
        %v708 = vshll.u32 %v695, 16
        %v710 = vrot.slane %v708, 1
        %v711 = vor.u32 %v706, %v710
        %v713 = vshll.u32 %v696, 16
        %v715 = vrot.slane %v713, 1
        %v716 = vsel %vm704, %v711, %v715
        %v717 = vshrl.u32 %v696, 16
        %v719 = vor.u32 %v717, %v715
        %v721 = vshll.u32 %v697, 16
        %v723 = vrot.slane %v721, 1
        %v724 = vsel %vm704, %v719, %v723
        %v725 = vshrl.u32 %v697, 16
        %v727 = vor.u32 %v725, %v723
        %v729 = vshll.u32 %v698, 16
        %v731 = vrot.slane %v729, 1
        %v732 = vsel %vm704, %v727, %v731
        %v733 = vshrl.u32 %v698, 16
        %v735 = vor.u32 %v733, %v731
        %v737 = vshll.u32 %v699, 16
        %v739 = vrot.slane %v737, 1
        %v740 = vsel %vm704, %v735, %v739
        %v741 = vshrl.u32 %v699, 16
        %v743 = vor.u32 %v741, %v739
        %v745 = vshll.u32 %v700, 16
        %v747 = vrot.slane %v745, 1
        %v748 = vsel %vm704, %v743, %v747
        %v749 = vshrl.u32 %v700, 16
        %v751 = vor.u32 %v749, %v747
        %v753 = vshll.u32 %v701, 16
        %v755 = vrot.slane %v753, 1
        %v756 = vsel %vm704, %v751, %v755
        %v757 = vshrl.u32 %v701, 16
        %v759 = vor.u32 %v757, %v755
        %v761 = vshll.u32 %v702, 16
        %v763 = vrot.slane %v761, 1
        %v764 = vsel %vm704, %v759, %v763
        %v765 = vshrl.u32 %v702, 16
        %v767 = vor.u32 %v765, %v763
        %v769 = vshll.u32 %v703, 16
        %v771 = vrot.slane %v769, 1
        %v772 = vsel %vm704, %v767, %v771
        %v797 = vunpack.c.l.b16 %v645
        %v798 = vunpack.c.l.b16 %v646
        %v799 = vunpack.c.l.b16 %v647
        %v800 = vunpack.c.l.b16 %v648
        %v801 = vunpack.c.l.b16 %v649
        %v802 = vunpack.c.l.b16 %v650
        %v803 = vunpack.c.l.b16 %v651
        %v804 = vunpack.c.l.b16 %v652
        %v805 = vunpack.c.l.b16 %v653
        %v806 = vunpack.c.l.b16 %v654
        %v807 = vunpack.c.l.b16 %v655
        %v808 = vunpack.c.l.b16 %v656
        %v809 = vunpack.c.l.b16 %v657
        %v810 = vunpack.c.l.b16 %v658
        %v811 = vunpack.c.l.b16 %v659
        %v812 = vunpack.c.l.b16 %v660
        %v813 = vpack.c.b16 %v798, %v797
        %v814 = vpack.c.b16 %v800, %v799
        %v815 = vpack.c.b16 %v802, %v801
        %v816 = vpack.c.b16 %v804, %v803
        %v817 = vpack.c.b16 %v806, %v805
        %v818 = vpack.c.b16 %v808, %v807
        %v819 = vpack.c.b16 %v810, %v809
        %v820 = vpack.c.b16 %v812, %v811
        %829 = vmatpush.bf16.msra.mxu0 %v820
        %830 = vmatpush.bf16.msra.mxu0 %v819
        %831 = vmatpush.bf16.msra.mxu0 %v818
        %832 = vmatpush.bf16.msra.mxu0 %v817
        %833 = vmatpush.bf16.msra.mxu0 %v816
        %834 = vmatpush.bf16.msra.mxu0 %v815
        %835 = vmatpush.bf16.msra.mxu0 %v814
        %836 = vmatpush.bf16.msra.mxu0 %v813
        %837 = vmatmul.bf16.gmra.mxu0 %v716
        %v838 = vpop.f32.mrf.mxu0
        %v839 = vadd.f32 0.0, %v838
        %v840 = vpop.f32.mrf.mxu0
        %v841 = vadd.f32 0.0, %v840
        %842 = vmatmul.bf16.gmra.mxu0 %v724
        %v843 = vpop.f32.mrf.mxu0
        %v844 = vadd.f32 0.0, %v843
        %v845 = vpop.f32.mrf.mxu0
        %v846 = vadd.f32 0.0, %v845
        %847 = vmatmul.bf16.gmra.mxu0 %v732
        %v848 = vpop.f32.mrf.mxu0
        %v849 = vadd.f32 0.0, %v848
        %v850 = vpop.f32.mrf.mxu0
        %v851 = vadd.f32 0.0, %v850
        %852 = vmatmul.bf16.gmra.mxu0 %v740
        %v853 = vpop.f32.mrf.mxu0
        %v854 = vadd.f32 0.0, %v853
        %v855 = vpop.f32.mrf.mxu0
        %v856 = vadd.f32 0.0, %v855
        %857 = vmatmul.bf16.gmra.mxu0 %v748
        %v858 = vpop.f32.mrf.mxu0
        %v859 = vadd.f32 0.0, %v858
        %v860 = vpop.f32.mrf.mxu0
        %v861 = vadd.f32 0.0, %v860
        %862 = vmatmul.bf16.gmra.mxu0 %v756
        %v863 = vpop.f32.mrf.mxu0
        %v864 = vadd.f32 0.0, %v863
        %v865 = vpop.f32.mrf.mxu0
        %v866 = vadd.f32 0.0, %v865
        %867 = vmatmul.bf16.gmra.mxu0 %v764
        %v868 = vpop.f32.mrf.mxu0
        %v869 = vadd.f32 0.0, %v868
        %v870 = vpop.f32.mrf.mxu0
        %v871 = vadd.f32 0.0, %v870
        %872 = vmatmul.bf16.gmra.mxu0 %v772
        %v873 = vpop.f32.mrf.mxu0
        %v874 = vadd.f32 0.0, %v873
        %v875 = vpop.f32.mrf.mxu0
        %v876 = vadd.f32 0.0, %v875
        %877 = vdwg.mxu0
        %v902 = vunpack.c.l.b16 %v627
        %v903 = vunpack.c.l.b16 %v628
        %v904 = vunpack.c.l.b16 %v629
        %v905 = vunpack.c.l.b16 %v630
        %v906 = vunpack.c.l.b16 %v631
        %v907 = vunpack.c.l.b16 %v632
        %v908 = vunpack.c.l.b16 %v633
        %v909 = vunpack.c.l.b16 %v634
        %v910 = vunpack.c.l.b16 %v635
        %v911 = vunpack.c.l.b16 %v636
        %v912 = vunpack.c.l.b16 %v637
        %v913 = vunpack.c.l.b16 %v638
        %v914 = vunpack.c.l.b16 %v639
        %v915 = vunpack.c.l.b16 %v640
        %v916 = vunpack.c.l.b16 %v641
        %v917 = vunpack.c.l.b16 %v642
        %v918 = vpack.c.b16 %v903, %v902
        %v919 = vpack.c.b16 %v905, %v904
        %v920 = vpack.c.b16 %v907, %v906
        %v921 = vpack.c.b16 %v909, %v908
        %v922 = vpack.c.b16 %v911, %v910
        %v923 = vpack.c.b16 %v913, %v912
        %v924 = vpack.c.b16 %v915, %v914
        %v925 = vpack.c.b16 %v917, %v916
        %934 = vmatpush.bf16.msra.mxu0 %v925
        %935 = vmatpush.bf16.msra.mxu0 %v924
        %936 = vmatpush.bf16.msra.mxu0 %v923
        %937 = vmatpush.bf16.msra.mxu0 %v922
        %938 = vmatpush.bf16.msra.mxu0 %v921
        %939 = vmatpush.bf16.msra.mxu0 %v920
        %940 = vmatpush.bf16.msra.mxu0 %v919
        %941 = vmatpush.bf16.msra.mxu0 %v918
        %942 = vmatmul.bf16.gmra.mxu0 %v695
        %v943 = vpop.f32.mrf.mxu0
        %v944 = vadd.f32 %v839, %v943
        %v945 = vpop.f32.mrf.mxu0
        %v946 = vadd.f32 %v841, %v945
        %947 = vmatmul.bf16.gmra.mxu0 %v696
        %v948 = vpop.f32.mrf.mxu0
        %v949 = vadd.f32 %v844, %v948
        %v950 = vpop.f32.mrf.mxu0
        %v951 = vadd.f32 %v846, %v950
        %952 = vmatmul.bf16.gmra.mxu0 %v697
        %v953 = vpop.f32.mrf.mxu0
        %v954 = vadd.f32 %v849, %v953
        %v955 = vpop.f32.mrf.mxu0
        %v956 = vadd.f32 %v851, %v955
        %957 = vmatmul.bf16.gmra.mxu0 %v698
        %v958 = vpop.f32.mrf.mxu0
        %v959 = vadd.f32 %v854, %v958
        %v960 = vpop.f32.mrf.mxu0
        %v961 = vadd.f32 %v856, %v960
        %962 = vmatmul.bf16.gmra.mxu0 %v699
        %v963 = vpop.f32.mrf.mxu0
        %v964 = vadd.f32 %v859, %v963
        %v965 = vpop.f32.mrf.mxu0
        %v966 = vadd.f32 %v861, %v965
        %967 = vmatmul.bf16.gmra.mxu0 %v700
        %v968 = vpop.f32.mrf.mxu0
        %v969 = vadd.f32 %v864, %v968
        %v970 = vpop.f32.mrf.mxu0
        %v971 = vadd.f32 %v866, %v970
        %972 = vmatmul.bf16.gmra.mxu0 %v701
        %v973 = vpop.f32.mrf.mxu0
        %v974 = vadd.f32 %v869, %v973
        %v975 = vpop.f32.mrf.mxu0
        %v976 = vadd.f32 %v871, %v975
        %977 = vmatmul.bf16.gmra.mxu0 %v702
        %v978 = vpop.f32.mrf.mxu0
        %v979 = vadd.f32 %v874, %v978
        %v980 = vpop.f32.mrf.mxu0
        %v981 = vadd.f32 %v876, %v980
        %982 = vdwg.mxu0
        %v983 = vld [vmem:[#allocation2] sm:$0xe]
        %s984 = scalar_lea.vmem [#allocation4], 128
        %v985 = vld [vmem:[%s984] sm:$0xf]
        %v986 = vld [vmem:[%s984 + $0x4] sm:$0xf]
        %v987 = vld [vmem:[%s984 + $0x8] sm:$0xf]
        %v988 = vld [vmem:[%s984 + $0xc] sm:$0xf]
        %v989 = vld [vmem:[%s984 + $0x10] sm:$0xf]
        %v990 = vld [vmem:[%s984 + $0x14] sm:$0xf]
        %v991 = vld [vmem:[%s984 + $0x18] sm:$0xf]
        %v992 = vld [vmem:[%s984 + $0x1c] sm:$0xf]
        %v993 = vld [vmem:[%s984 + $0x20] sm:$0xf]
        %v994 = vld [vmem:[%s984 + $0x24] sm:$0xf]
        %v995 = vld [vmem:[%s984 + $0x28] sm:$0xf]
        %v996 = vld [vmem:[%s984 + $0x2c] sm:$0xf]
        %v997 = vld [vmem:[%s984 + $0x30] sm:$0xf]
        %v998 = vld [vmem:[%s984 + $0x34] sm:$0xf]
        %v999 = vld [vmem:[%s984 + $0x38] sm:$0xf]
        %v1000 = vld [vmem:[%s984 + $0x3c] sm:$0xf]
        %v1002 = vunpack.c.l.b16 %v983
        %v1003 = vpack.c.b16 %v679, %v1002
        %vm1004 = vcmask 1046528
        %v1005 = vrot.slane %v1003, 1
        %v1006 = vrot.slane %v696, 1
        %v1007 = vsel %vm1004, %v1005, %v1006
        %v1008 = vrot.slane %v697, 1
        %v1009 = vsel %vm1004, %v1006, %v1008
        %v1010 = vrot.slane %v698, 1
        %v1011 = vsel %vm1004, %v1008, %v1010
        %v1012 = vrot.slane %v699, 1
        %v1013 = vsel %vm1004, %v1010, %v1012
        %v1014 = vrot.slane %v700, 1
        %v1015 = vsel %vm1004, %v1012, %v1014
        %v1016 = vrot.slane %v701, 1
        %v1017 = vsel %vm1004, %v1014, %v1016
        %v1018 = vrot.slane %v702, 1
        %v1019 = vsel %vm1004, %v1016, %v1018
        %v1020 = vrot.slane %v703, 1
        %v1021 = vsel %vm1004, %v1018, %v1020
        %v1046 = vunpack.c.l.b16 %v985
        %v1047 = vunpack.c.l.b16 %v986
        %v1048 = vunpack.c.l.b16 %v987
        %v1049 = vunpack.c.l.b16 %v988
        %v1050 = vunpack.c.l.b16 %v989
        %v1051 = vunpack.c.l.b16 %v990
        %v1052 = vunpack.c.l.b16 %v991
        %v1053 = vunpack.c.l.b16 %v992
        %v1054 = vunpack.c.l.b16 %v993
        %v1055 = vunpack.c.l.b16 %v994
        %v1056 = vunpack.c.l.b16 %v995
        %v1057 = vunpack.c.l.b16 %v996
        %v1058 = vunpack.c.l.b16 %v997
        %v1059 = vunpack.c.l.b16 %v998
        %v1060 = vunpack.c.l.b16 %v999
        %v1061 = vunpack.c.l.b16 %v1000
        %v1062 = vpack.c.b16 %v1047, %v1046
        %v1063 = vpack.c.b16 %v1049, %v1048
        %v1064 = vpack.c.b16 %v1051, %v1050
        %v1065 = vpack.c.b16 %v1053, %v1052
        %v1066 = vpack.c.b16 %v1055, %v1054
        %v1067 = vpack.c.b16 %v1057, %v1056
        %v1068 = vpack.c.b16 %v1059, %v1058
        %v1069 = vpack.c.b16 %v1061, %v1060
        %1078 = vmatpush.bf16.msra.mxu0 %v1069
        %1079 = vmatpush.bf16.msra.mxu0 %v1068
        %1080 = vmatpush.bf16.msra.mxu0 %v1067
        %1081 = vmatpush.bf16.msra.mxu0 %v1066
        %1082 = vmatpush.bf16.msra.mxu0 %v1065
        %1083 = vmatpush.bf16.msra.mxu0 %v1064
        %1084 = vmatpush.bf16.msra.mxu0 %v1063
        %1085 = vmatpush.bf16.msra.mxu0 %v1062
        %1086 = vmatmul.bf16.gmra.mxu0 %v1007
        %v1087 = vpop.f32.mrf.mxu0
        %v1088 = vadd.f32 0.0, %v1087
        %v1089 = vpop.f32.mrf.mxu0
        %v1090 = vadd.f32 0.0, %v1089
        %1091 = vmatmul.bf16.gmra.mxu0 %v1009
        %v1092 = vpop.f32.mrf.mxu0
        %v1093 = vadd.f32 0.0, %v1092
        %v1094 = vpop.f32.mrf.mxu0
        %v1095 = vadd.f32 0.0, %v1094
        %1096 = vmatmul.bf16.gmra.mxu0 %v1011
        %v1097 = vpop.f32.mrf.mxu0
        %v1098 = vadd.f32 0.0, %v1097
        %v1099 = vpop.f32.mrf.mxu0
        %v1100 = vadd.f32 0.0, %v1099
        %1101 = vmatmul.bf16.gmra.mxu0 %v1013
        %v1102 = vpop.f32.mrf.mxu0
        %v1103 = vadd.f32 0.0, %v1102
        %v1104 = vpop.f32.mrf.mxu0
        %v1105 = vadd.f32 0.0, %v1104
        %1106 = vmatmul.bf16.gmra.mxu0 %v1015
        %v1107 = vpop.f32.mrf.mxu0
        %v1108 = vadd.f32 0.0, %v1107
        %v1109 = vpop.f32.mrf.mxu0
        %v1110 = vadd.f32 0.0, %v1109
        %1111 = vmatmul.bf16.gmra.mxu0 %v1017
        %v1112 = vpop.f32.mrf.mxu0
        %v1113 = vadd.f32 0.0, %v1112
        %v1114 = vpop.f32.mrf.mxu0
        %v1115 = vadd.f32 0.0, %v1114
        %1116 = vmatmul.bf16.gmra.mxu0 %v1019
        %v1117 = vpop.f32.mrf.mxu0
        %v1118 = vadd.f32 0.0, %v1117
        %v1119 = vpop.f32.mrf.mxu0
        %v1120 = vadd.f32 0.0, %v1119
        %1121 = vmatmul.bf16.gmra.mxu0 %v1021
        %v1122 = vpop.f32.mrf.mxu0
        %v1123 = vadd.f32 0.0, %v1122
        %v1124 = vpop.f32.mrf.mxu0
        %v1125 = vadd.f32 0.0, %v1124
        %1126 = vdwg.mxu0
        %v1127 = vadd.f32 %v944, %v1088
        %v1128 = vadd.f32 %v946, %v1090
        %v1129 = vadd.f32 %v949, %v1093
        %v1130 = vadd.f32 %v951, %v1095
        %v1131 = vadd.f32 %v954, %v1098
        %v1132 = vadd.f32 %v956, %v1100
        %v1133 = vadd.f32 %v959, %v1103
        %v1134 = vadd.f32 %v961, %v1105
        %v1135 = vadd.f32 %v964, %v1108
        %v1136 = vadd.f32 %v966, %v1110
        %v1137 = vadd.f32 %v969, %v1113
        %v1138 = vadd.f32 %v971, %v1115
        %v1139 = vadd.f32 %v974, %v1118
        %v1140 = vadd.f32 %v976, %v1120
        %v1141 = vadd.f32 %v979, %v1123
        %v1142 = vadd.f32 %v981, %v1125
        %v1143 = vld [vmem:[#allocation2 + $0x8] sm:$0xf]
        %v1144 = vld [vmem:[#allocation2 + $0xc] sm:$0xf]
        %v1145 = vld [vmem:[#allocation2 + $0x10] sm:$0xf]
        %v1146 = vld [vmem:[#allocation2 + $0x14] sm:$0xf]
        %v1147 = vld [vmem:[#allocation2 + $0x18] sm:$0xf]
        %v1148 = vld [vmem:[#allocation2 + $0x1c] sm:$0xf]
        %v1149 = vld [vmem:[#allocation2 + $0x20] sm:$0xf]
        %v1150 = vld [vmem:[#allocation2 + $0x24] sm:$0xf]
        %v1151 = vld [vmem:[#allocation2 + $0x28] sm:$0xf]
        %v1152 = vld [vmem:[#allocation2 + $0x2c] sm:$0xf]
        %v1153 = vld [vmem:[#allocation2 + $0x30] sm:$0xf]
        %v1154 = vld [vmem:[#allocation2 + $0x34] sm:$0xf]
        %v1155 = vld [vmem:[#allocation2 + $0x38] sm:$0xf]
        %v1156 = vld [vmem:[#allocation2 + $0x3c] sm:$0xf]
        %v1157 = vld [vmem:[#allocation2 + $0x40] sm:$0xf]
        %v1158 = vld [vmem:[#allocation2 + $0x44] sm:$0xf]
        %s1159 = scalar_lea.vmem [#allocation4], 192
        %v1160 = vld [vmem:[%s1159] sm:$0xf]
        %v1161 = vld [vmem:[%s1159 + $0x4] sm:$0xf]
        %v1162 = vld [vmem:[%s1159 + $0x8] sm:$0xf]
        %v1163 = vld [vmem:[%s1159 + $0xc] sm:$0xf]
        %v1164 = vld [vmem:[%s1159 + $0x10] sm:$0xf]
        %v1165 = vld [vmem:[%s1159 + $0x14] sm:$0xf]
        %v1166 = vld [vmem:[%s1159 + $0x18] sm:$0xf]
        %v1167 = vld [vmem:[%s1159 + $0x1c] sm:$0xf]
        %v1168 = vld [vmem:[%s1159 + $0x20] sm:$0xf]
        %v1169 = vld [vmem:[%s1159 + $0x24] sm:$0xf]
        %v1170 = vld [vmem:[%s1159 + $0x28] sm:$0xf]
        %v1171 = vld [vmem:[%s1159 + $0x2c] sm:$0xf]
        %v1172 = vld [vmem:[%s1159 + $0x30] sm:$0xf]
        %v1173 = vld [vmem:[%s1159 + $0x34] sm:$0xf]
        %v1174 = vld [vmem:[%s1159 + $0x38] sm:$0xf]
        %v1175 = vld [vmem:[%s1159 + $0x3c] sm:$0xf]
        %v1192 = vunpack.c.l.b16 %v1143
        %v1193 = vunpack.c.l.b16 %v1144
        %v1194 = vunpack.c.l.b16 %v1145
        %v1195 = vunpack.c.l.b16 %v1146
        %v1196 = vunpack.c.l.b16 %v1147
        %v1197 = vunpack.c.l.b16 %v1148
        %v1198 = vunpack.c.l.b16 %v1149
        %v1199 = vunpack.c.l.b16 %v1150
        %v1200 = vunpack.c.l.b16 %v1151
        %v1201 = vunpack.c.l.b16 %v1152
        %v1202 = vunpack.c.l.b16 %v1153
        %v1203 = vunpack.c.l.b16 %v1154
        %v1204 = vunpack.c.l.b16 %v1155
        %v1205 = vunpack.c.l.b16 %v1156
        %v1206 = vunpack.c.l.b16 %v1157
        %v1207 = vunpack.c.l.b16 %v1158
        %v1208 = vpack.c.b16 %v1193, %v1192
        %v1209 = vpack.c.b16 %v1195, %v1194
        %v1210 = vpack.c.b16 %v1197, %v1196
        %v1211 = vpack.c.b16 %v1199, %v1198
        %v1212 = vpack.c.b16 %v1201, %v1200
        %v1213 = vpack.c.b16 %v1203, %v1202
        %v1214 = vpack.c.b16 %v1205, %v1204
        %v1215 = vpack.c.b16 %v1207, %v1206
        %v1240 = vunpack.c.l.b16 %v1160
        %v1241 = vunpack.c.l.b16 %v1161
        %v1242 = vunpack.c.l.b16 %v1162
        %v1243 = vunpack.c.l.b16 %v1163
        %v1244 = vunpack.c.l.b16 %v1164
        %v1245 = vunpack.c.l.b16 %v1165
        %v1246 = vunpack.c.l.b16 %v1166
        %v1247 = vunpack.c.l.b16 %v1167
        %v1248 = vunpack.c.l.b16 %v1168
        %v1249 = vunpack.c.l.b16 %v1169
        %v1250 = vunpack.c.l.b16 %v1170
        %v1251 = vunpack.c.l.b16 %v1171
        %v1252 = vunpack.c.l.b16 %v1172
        %v1253 = vunpack.c.l.b16 %v1173
        %v1254 = vunpack.c.l.b16 %v1174
        %v1255 = vunpack.c.l.b16 %v1175
        %v1256 = vpack.c.b16 %v1241, %v1240
        %v1257 = vpack.c.b16 %v1243, %v1242
        %v1258 = vpack.c.b16 %v1245, %v1244
        %v1259 = vpack.c.b16 %v1247, %v1246
        %v1260 = vpack.c.b16 %v1249, %v1248
        %v1261 = vpack.c.b16 %v1251, %v1250
        %v1262 = vpack.c.b16 %v1253, %v1252
        %v1263 = vpack.c.b16 %v1255, %v1254
        %1272 = vmatpush.bf16.msra.mxu0 %v1263
        %1273 = vmatpush.bf16.msra.mxu0 %v1262
        %1274 = vmatpush.bf16.msra.mxu0 %v1261
        %1275 = vmatpush.bf16.msra.mxu0 %v1260
        %1276 = vmatpush.bf16.msra.mxu0 %v1259
        %1277 = vmatpush.bf16.msra.mxu0 %v1258
        %1278 = vmatpush.bf16.msra.mxu0 %v1257
        %1279 = vmatpush.bf16.msra.mxu0 %v1256
        %1280 = vmatmul.bf16.gmra.mxu0 %v1208
        %v1281 = vpop.f32.mrf.mxu0
        %v1282 = vadd.f32 0.0, %v1281
        %v1283 = vpop.f32.mrf.mxu0
        %v1284 = vadd.f32 0.0, %v1283
        %1285 = vmatmul.bf16.gmra.mxu0 %v1209
        %v1286 = vpop.f32.mrf.mxu0
        %v1287 = vadd.f32 0.0, %v1286
        %v1288 = vpop.f32.mrf.mxu0
        %v1289 = vadd.f32 0.0, %v1288
        %1290 = vmatmul.bf16.gmra.mxu0 %v1210
        %v1291 = vpop.f32.mrf.mxu0
        %v1292 = vadd.f32 0.0, %v1291
        %v1293 = vpop.f32.mrf.mxu0
        %v1294 = vadd.f32 0.0, %v1293
        %1295 = vmatmul.bf16.gmra.mxu0 %v1211
        %v1296 = vpop.f32.mrf.mxu0
        %v1297 = vadd.f32 0.0, %v1296
        %v1298 = vpop.f32.mrf.mxu0
        %v1299 = vadd.f32 0.0, %v1298
        %1300 = vmatmul.bf16.gmra.mxu0 %v1212
        %v1301 = vpop.f32.mrf.mxu0
        %v1302 = vadd.f32 0.0, %v1301
        %v1303 = vpop.f32.mrf.mxu0
        %v1304 = vadd.f32 0.0, %v1303
        %1305 = vmatmul.bf16.gmra.mxu0 %v1213
        %v1306 = vpop.f32.mrf.mxu0
        %v1307 = vadd.f32 0.0, %v1306
        %v1308 = vpop.f32.mrf.mxu0
        %v1309 = vadd.f32 0.0, %v1308
        %1310 = vmatmul.bf16.gmra.mxu0 %v1214
        %v1311 = vpop.f32.mrf.mxu0
        %v1312 = vadd.f32 0.0, %v1311
        %v1313 = vpop.f32.mrf.mxu0
        %v1314 = vadd.f32 0.0, %v1313
        %1315 = vmatmul.bf16.gmra.mxu0 %v1215
        %v1316 = vpop.f32.mrf.mxu0
        %v1317 = vadd.f32 0.0, %v1316
        %v1318 = vpop.f32.mrf.mxu0
        %v1319 = vadd.f32 0.0, %v1318
        %1320 = vdwg.mxu0
        %v1321 = vadd.f32 %v1127, %v1282
        %v1322 = vadd.f32 %v1128, %v1284
        %v1323 = vadd.f32 %v1129, %v1287
        %v1324 = vadd.f32 %v1130, %v1289
        %v1325 = vadd.f32 %v1131, %v1292
        %v1326 = vadd.f32 %v1132, %v1294
        %v1327 = vadd.f32 %v1133, %v1297
        %v1328 = vadd.f32 %v1134, %v1299
        %v1329 = vadd.f32 %v1135, %v1302
        %v1330 = vadd.f32 %v1136, %v1304
        %v1331 = vadd.f32 %v1137, %v1307
        %v1332 = vadd.f32 %v1138, %v1309
        %v1333 = vadd.f32 %v1139, %v1312
        %v1334 = vadd.f32 %v1140, %v1314
        %v1335 = vadd.f32 %v1141, %v1317
        %v1336 = vadd.f32 %v1142, %v1319
        %v1337 = vld [vmem:[#allocation2 + $0x8] sm:$0xf]
        %v1338 = vld [vmem:[#allocation2 + $0xc] sm:$0xf]
        %v1339 = vld [vmem:[#allocation2 + $0x10] sm:$0xf]
        %v1340 = vld [vmem:[#allocation2 + $0x14] sm:$0xf]
        %v1341 = vld [vmem:[#allocation2 + $0x18] sm:$0xf]
        %v1342 = vld [vmem:[#allocation2 + $0x1c] sm:$0xf]
        %v1343 = vld [vmem:[#allocation2 + $0x20] sm:$0xf]
        %v1344 = vld [vmem:[#allocation2 + $0x24] sm:$0xf]
        %v1345 = vld [vmem:[#allocation2 + $0x28] sm:$0xf]
        %v1346 = vld [vmem:[#allocation2 + $0x2c] sm:$0xf]
        %v1347 = vld [vmem:[#allocation2 + $0x30] sm:$0xf]
        %v1348 = vld [vmem:[#allocation2 + $0x34] sm:$0xf]
        %v1349 = vld [vmem:[#allocation2 + $0x38] sm:$0xf]
        %v1350 = vld [vmem:[#allocation2 + $0x3c] sm:$0xf]
        %v1351 = vld [vmem:[#allocation2 + $0x40] sm:$0xf]
        %v1352 = vld [vmem:[#allocation2 + $0x44] sm:$0xf]
        %v1353 = vld [vmem:[#allocation2 + $0x48] sm:$0x1]
        %s1354 = scalar_lea.vmem [#allocation4], 256
        %v1355 = vld [vmem:[%s1354] sm:$0xf]
        %v1356 = vld [vmem:[%s1354 + $0x4] sm:$0xf]
        %v1357 = vld [vmem:[%s1354 + $0x8] sm:$0xf]
        %v1358 = vld [vmem:[%s1354 + $0xc] sm:$0xf]
        %v1359 = vld [vmem:[%s1354 + $0x10] sm:$0xf]
        %v1360 = vld [vmem:[%s1354 + $0x14] sm:$0xf]
        %v1361 = vld [vmem:[%s1354 + $0x18] sm:$0xf]
        %v1362 = vld [vmem:[%s1354 + $0x1c] sm:$0xf]
        %v1363 = vld [vmem:[%s1354 + $0x20] sm:$0xf]
        %v1364 = vld [vmem:[%s1354 + $0x24] sm:$0xf]
        %v1365 = vld [vmem:[%s1354 + $0x28] sm:$0xf]
        %v1366 = vld [vmem:[%s1354 + $0x2c] sm:$0xf]
        %v1367 = vld [vmem:[%s1354 + $0x30] sm:$0xf]
        %v1368 = vld [vmem:[%s1354 + $0x34] sm:$0xf]
        %v1369 = vld [vmem:[%s1354 + $0x38] sm:$0xf]
        %v1370 = vld [vmem:[%s1354 + $0x3c] sm:$0xf]
        %v1388 = vunpack.c.l.b16 %v1337
        %v1389 = vunpack.c.l.b16 %v1338
        %v1390 = vunpack.c.l.b16 %v1339
        %v1391 = vunpack.c.l.b16 %v1340
        %v1392 = vunpack.c.l.b16 %v1341
        %v1393 = vunpack.c.l.b16 %v1342
        %v1394 = vunpack.c.l.b16 %v1343
        %v1395 = vunpack.c.l.b16 %v1344
        %v1396 = vunpack.c.l.b16 %v1345
        %v1397 = vunpack.c.l.b16 %v1346
        %v1398 = vunpack.c.l.b16 %v1347
        %v1399 = vunpack.c.l.b16 %v1348
        %v1400 = vunpack.c.l.b16 %v1349
        %v1401 = vunpack.c.l.b16 %v1350
        %v1402 = vunpack.c.l.b16 %v1351
        %v1403 = vunpack.c.l.b16 %v1352
        %v1404 = vunpack.c.l.b16 %v1353
        %v1405 = vpack.c.b16 %v1389, %v1388
        %v1406 = vpack.c.b16 %v1391, %v1390
        %v1407 = vpack.c.b16 %v1393, %v1392
        %v1408 = vpack.c.b16 %v1395, %v1394
        %v1409 = vpack.c.b16 %v1397, %v1396
        %v1410 = vpack.c.b16 %v1399, %v1398
        %v1411 = vpack.c.b16 %v1401, %v1400
        %v1412 = vpack.c.b16 %v1403, %v1402
        %v1413 = vpack.c.b16 %v1404, %v1404
        %v1415 = vshrl.u32 %v1405, 16
        %v1417 = vshll.u32 %v1405, 16
        %v1419 = vrot.slane %v1417, 1
        %v1420 = vor.u32 %v1415, %v1419
        %v1422 = vshll.u32 %v1406, 16
        %v1424 = vrot.slane %v1422, 1
        %v1425 = vsel %vm704, %v1420, %v1424
        %v1426 = vshrl.u32 %v1406, 16
        %v1428 = vor.u32 %v1426, %v1424
        %v1430 = vshll.u32 %v1407, 16
        %v1432 = vrot.slane %v1430, 1
        %v1433 = vsel %vm704, %v1428, %v1432
        %v1434 = vshrl.u32 %v1407, 16
        %v1436 = vor.u32 %v1434, %v1432
        %v1438 = vshll.u32 %v1408, 16
        %v1440 = vrot.slane %v1438, 1
        %v1441 = vsel %vm704, %v1436, %v1440
        %v1442 = vshrl.u32 %v1408, 16
        %v1444 = vor.u32 %v1442, %v1440
        %v1446 = vshll.u32 %v1409, 16
        %v1448 = vrot.slane %v1446, 1
        %v1449 = vsel %vm704, %v1444, %v1448
        %v1450 = vshrl.u32 %v1409, 16
        %v1452 = vor.u32 %v1450, %v1448
        %v1454 = vshll.u32 %v1410, 16
        %v1456 = vrot.slane %v1454, 1
        %v1457 = vsel %vm704, %v1452, %v1456
        %v1458 = vshrl.u32 %v1410, 16
        %v1460 = vor.u32 %v1458, %v1456
        %v1462 = vshll.u32 %v1411, 16
        %v1464 = vrot.slane %v1462, 1
        %v1465 = vsel %vm704, %v1460, %v1464
        %v1466 = vshrl.u32 %v1411, 16
        %v1468 = vor.u32 %v1466, %v1464
        %v1470 = vshll.u32 %v1412, 16
        %v1472 = vrot.slane %v1470, 1
        %v1473 = vsel %vm704, %v1468, %v1472
        %v1474 = vshrl.u32 %v1412, 16
        %v1476 = vor.u32 %v1474, %v1472
        %v1478 = vshll.u32 %v1413, 16
        %v1480 = vrot.slane %v1478, 1
        %v1481 = vsel %vm704, %v1476, %v1480
        %v1506 = vunpack.c.l.b16 %v1355
        %v1507 = vunpack.c.l.b16 %v1356
        %v1508 = vunpack.c.l.b16 %v1357
        %v1509 = vunpack.c.l.b16 %v1358
        %v1510 = vunpack.c.l.b16 %v1359
        %v1511 = vunpack.c.l.b16 %v1360
        %v1512 = vunpack.c.l.b16 %v1361
        %v1513 = vunpack.c.l.b16 %v1362
        %v1514 = vunpack.c.l.b16 %v1363
        %v1515 = vunpack.c.l.b16 %v1364
        %v1516 = vunpack.c.l.b16 %v1365
        %v1517 = vunpack.c.l.b16 %v1366
        %v1518 = vunpack.c.l.b16 %v1367
        %v1519 = vunpack.c.l.b16 %v1368
        %v1520 = vunpack.c.l.b16 %v1369
        %v1521 = vunpack.c.l.b16 %v1370
        %v1522 = vpack.c.b16 %v1507, %v1506
        %v1523 = vpack.c.b16 %v1509, %v1508
        %v1524 = vpack.c.b16 %v1511, %v1510
        %v1525 = vpack.c.b16 %v1513, %v1512
        %v1526 = vpack.c.b16 %v1515, %v1514
        %v1527 = vpack.c.b16 %v1517, %v1516
        %v1528 = vpack.c.b16 %v1519, %v1518
        %v1529 = vpack.c.b16 %v1521, %v1520
        %1538 = vmatpush.bf16.msra.mxu0 %v1529
        %1539 = vmatpush.bf16.msra.mxu0 %v1528
        %1540 = vmatpush.bf16.msra.mxu0 %v1527
        %1541 = vmatpush.bf16.msra.mxu0 %v1526
        %1542 = vmatpush.bf16.msra.mxu0 %v1525
        %1543 = vmatpush.bf16.msra.mxu0 %v1524
        %1544 = vmatpush.bf16.msra.mxu0 %v1523
        %1545 = vmatpush.bf16.msra.mxu0 %v1522
        %1546 = vmatmul.bf16.gmra.mxu0 %v1425
        %v1547 = vpop.f32.mrf.mxu0
        %v1548 = vadd.f32 0.0, %v1547
        %v1549 = vpop.f32.mrf.mxu0
        %v1550 = vadd.f32 0.0, %v1549
        %1551 = vmatmul.bf16.gmra.mxu0 %v1433
        %v1552 = vpop.f32.mrf.mxu0
        %v1553 = vadd.f32 0.0, %v1552
        %v1554 = vpop.f32.mrf.mxu0
        %v1555 = vadd.f32 0.0, %v1554
        %1556 = vmatmul.bf16.gmra.mxu0 %v1441
        %v1557 = vpop.f32.mrf.mxu0
        %v1558 = vadd.f32 0.0, %v1557
        %v1559 = vpop.f32.mrf.mxu0
        %v1560 = vadd.f32 0.0, %v1559
        %1561 = vmatmul.bf16.gmra.mxu0 %v1449
        %v1562 = vpop.f32.mrf.mxu0
        %v1563 = vadd.f32 0.0, %v1562
        %v1564 = vpop.f32.mrf.mxu0
        %v1565 = vadd.f32 0.0, %v1564
        %1566 = vmatmul.bf16.gmra.mxu0 %v1457
        %v1567 = vpop.f32.mrf.mxu0
        %v1568 = vadd.f32 0.0, %v1567
        %v1569 = vpop.f32.mrf.mxu0
        %v1570 = vadd.f32 0.0, %v1569
        %1571 = vmatmul.bf16.gmra.mxu0 %v1465
        %v1572 = vpop.f32.mrf.mxu0
        %v1573 = vadd.f32 0.0, %v1572
        %v1574 = vpop.f32.mrf.mxu0
        %v1575 = vadd.f32 0.0, %v1574
        %1576 = vmatmul.bf16.gmra.mxu0 %v1473
        %v1577 = vpop.f32.mrf.mxu0
        %v1578 = vadd.f32 0.0, %v1577
        %v1579 = vpop.f32.mrf.mxu0
        %v1580 = vadd.f32 0.0, %v1579
        %1581 = vmatmul.bf16.gmra.mxu0 %v1481
        %v1582 = vpop.f32.mrf.mxu0
        %v1583 = vadd.f32 0.0, %v1582
        %v1584 = vpop.f32.mrf.mxu0
        %v1585 = vadd.f32 0.0, %v1584
        %1586 = vdwg.mxu0
        %v1587 = vadd.f32 %v1321, %v1548
        %v1588 = vadd.f32 %v1322, %v1550
        %v1589 = vadd.f32 %v1323, %v1553
        %v1590 = vadd.f32 %v1324, %v1555
        %v1591 = vadd.f32 %v1325, %v1558
        %v1592 = vadd.f32 %v1326, %v1560
        %v1593 = vadd.f32 %v1327, %v1563
        %v1594 = vadd.f32 %v1328, %v1565
        %v1595 = vadd.f32 %v1329, %v1568
        %v1596 = vadd.f32 %v1330, %v1570
        %v1597 = vadd.f32 %v1331, %v1573
        %v1598 = vadd.f32 %v1332, %v1575
        %v1599 = vadd.f32 %v1333, %v1578
        %v1600 = vadd.f32 %v1334, %v1580
        %v1601 = vadd.f32 %v1335, %v1583
        %v1602 = vadd.f32 %v1336, %v1585
        %v1603 = vld [vmem:[#allocation2 + $0x8] sm:$0xe]
        %s1604 = scalar_lea.vmem [#allocation4], 320
        %v1605 = vld [vmem:[%s1604] sm:$0xf]
        %v1606 = vld [vmem:[%s1604 + $0x4] sm:$0xf]
        %v1607 = vld [vmem:[%s1604 + $0x8] sm:$0xf]
        %v1608 = vld [vmem:[%s1604 + $0xc] sm:$0xf]
        %v1609 = vld [vmem:[%s1604 + $0x10] sm:$0xf]
        %v1610 = vld [vmem:[%s1604 + $0x14] sm:$0xf]
        %v1611 = vld [vmem:[%s1604 + $0x18] sm:$0xf]
        %v1612 = vld [vmem:[%s1604 + $0x1c] sm:$0xf]
        %v1613 = vld [vmem:[%s1604 + $0x20] sm:$0xf]
        %v1614 = vld [vmem:[%s1604 + $0x24] sm:$0xf]
        %v1615 = vld [vmem:[%s1604 + $0x28] sm:$0xf]
        %v1616 = vld [vmem:[%s1604 + $0x2c] sm:$0xf]
        %v1617 = vld [vmem:[%s1604 + $0x30] sm:$0xf]
        %v1618 = vld [vmem:[%s1604 + $0x34] sm:$0xf]
        %v1619 = vld [vmem:[%s1604 + $0x38] sm:$0xf]
        %v1620 = vld [vmem:[%s1604 + $0x3c] sm:$0xf]
        %v1622 = vunpack.c.l.b16 %v1603
        %v1623 = vpack.c.b16 %v1389, %v1622
        %v1624 = vrot.slane %v1623, 1
        %v1625 = vrot.slane %v1406, 1
        %v1626 = vsel %vm1004, %v1624, %v1625
        %v1627 = vrot.slane %v1407, 1
        %v1628 = vsel %vm1004, %v1625, %v1627
        %v1629 = vrot.slane %v1408, 1
        %v1630 = vsel %vm1004, %v1627, %v1629
        %v1631 = vrot.slane %v1409, 1
        %v1632 = vsel %vm1004, %v1629, %v1631
        %v1633 = vrot.slane %v1410, 1
        %v1634 = vsel %vm1004, %v1631, %v1633
        %v1635 = vrot.slane %v1411, 1
        %v1636 = vsel %vm1004, %v1633, %v1635
        %v1637 = vrot.slane %v1412, 1
        %v1638 = vsel %vm1004, %v1635, %v1637
        %v1639 = vrot.slane %v1413, 1
        %v1640 = vsel %vm1004, %v1637, %v1639
        %v1665 = vunpack.c.l.b16 %v1605
        %v1666 = vunpack.c.l.b16 %v1606
        %v1667 = vunpack.c.l.b16 %v1607
        %v1668 = vunpack.c.l.b16 %v1608
        %v1669 = vunpack.c.l.b16 %v1609
        %v1670 = vunpack.c.l.b16 %v1610
        %v1671 = vunpack.c.l.b16 %v1611
        %v1672 = vunpack.c.l.b16 %v1612
        %v1673 = vunpack.c.l.b16 %v1613
        %v1674 = vunpack.c.l.b16 %v1614
        %v1675 = vunpack.c.l.b16 %v1615
        %v1676 = vunpack.c.l.b16 %v1616
        %v1677 = vunpack.c.l.b16 %v1617
        %v1678 = vunpack.c.l.b16 %v1618
        %v1679 = vunpack.c.l.b16 %v1619
        %v1680 = vunpack.c.l.b16 %v1620
        %v1681 = vpack.c.b16 %v1666, %v1665
        %v1682 = vpack.c.b16 %v1668, %v1667
        %v1683 = vpack.c.b16 %v1670, %v1669
        %v1684 = vpack.c.b16 %v1672, %v1671
        %v1685 = vpack.c.b16 %v1674, %v1673
        %v1686 = vpack.c.b16 %v1676, %v1675
        %v1687 = vpack.c.b16 %v1678, %v1677
        %v1688 = vpack.c.b16 %v1680, %v1679
        %1697 = vmatpush.bf16.msra.mxu0 %v1688
        %1698 = vmatpush.bf16.msra.mxu0 %v1687
        %1699 = vmatpush.bf16.msra.mxu0 %v1686
        %1700 = vmatpush.bf16.msra.mxu0 %v1685
        %1701 = vmatpush.bf16.msra.mxu0 %v1684
        %1702 = vmatpush.bf16.msra.mxu0 %v1683
        %1703 = vmatpush.bf16.msra.mxu0 %v1682
        %1704 = vmatpush.bf16.msra.mxu0 %v1681
        %1705 = vmatmul.bf16.gmra.mxu0 %v1626
        %v1706 = vpop.f32.mrf.mxu0
        %v1707 = vadd.f32 0.0, %v1706
        %v1708 = vpop.f32.mrf.mxu0
        %v1709 = vadd.f32 0.0, %v1708
        %1710 = vmatmul.bf16.gmra.mxu0 %v1628
        %v1711 = vpop.f32.mrf.mxu0
        %v1712 = vadd.f32 0.0, %v1711
        %v1713 = vpop.f32.mrf.mxu0
        %v1714 = vadd.f32 0.0, %v1713
        %1715 = vmatmul.bf16.gmra.mxu0 %v1630
        %v1716 = vpop.f32.mrf.mxu0
        %v1717 = vadd.f32 0.0, %v1716
        %v1718 = vpop.f32.mrf.mxu0
        %v1719 = vadd.f32 0.0, %v1718
        %1720 = vmatmul.bf16.gmra.mxu0 %v1632
        %v1721 = vpop.f32.mrf.mxu0
        %v1722 = vadd.f32 0.0, %v1721
        %v1723 = vpop.f32.mrf.mxu0
        %v1724 = vadd.f32 0.0, %v1723
        %1725 = vmatmul.bf16.gmra.mxu0 %v1634
        %v1726 = vpop.f32.mrf.mxu0
        %v1727 = vadd.f32 0.0, %v1726
        %v1728 = vpop.f32.mrf.mxu0
        %v1729 = vadd.f32 0.0, %v1728
        %1730 = vmatmul.bf16.gmra.mxu0 %v1636
        %v1731 = vpop.f32.mrf.mxu0
        %v1732 = vadd.f32 0.0, %v1731
        %v1733 = vpop.f32.mrf.mxu0
        %v1734 = vadd.f32 0.0, %v1733
        %1735 = vmatmul.bf16.gmra.mxu0 %v1638
        %v1736 = vpop.f32.mrf.mxu0
        %v1737 = vadd.f32 0.0, %v1736
        %v1738 = vpop.f32.mrf.mxu0
        %v1739 = vadd.f32 0.0, %v1738
        %1740 = vmatmul.bf16.gmra.mxu0 %v1640
        %v1741 = vpop.f32.mrf.mxu0
        %v1742 = vadd.f32 0.0, %v1741
        %v1743 = vpop.f32.mrf.mxu0
        %v1744 = vadd.f32 0.0, %v1743
        %1745 = vdwg.mxu0
        %v1746 = vadd.f32 %v1587, %v1707
        %v1747 = vadd.f32 %v1588, %v1709
        %v1748 = vadd.f32 %v1589, %v1712
        %v1749 = vadd.f32 %v1590, %v1714
        %v1750 = vadd.f32 %v1591, %v1717
        %v1751 = vadd.f32 %v1592, %v1719
        %v1752 = vadd.f32 %v1593, %v1722
        %v1753 = vadd.f32 %v1594, %v1724
        %v1754 = vadd.f32 %v1595, %v1727
        %v1755 = vadd.f32 %v1596, %v1729
        %v1756 = vadd.f32 %v1597, %v1732
        %v1757 = vadd.f32 %v1598, %v1734
        %v1758 = vadd.f32 %v1599, %v1737
        %v1759 = vadd.f32 %v1600, %v1739
        %v1760 = vadd.f32 %v1601, %v1742
        %v1761 = vadd.f32 %v1602, %v1744
        %v1762 = vld [vmem:[#allocation2 + $0x10] sm:$0xf]
        %v1763 = vld [vmem:[#allocation2 + $0x14] sm:$0xf]
        %v1764 = vld [vmem:[#allocation2 + $0x18] sm:$0xf]
        %v1765 = vld [vmem:[#allocation2 + $0x1c] sm:$0xf]
        %v1766 = vld [vmem:[#allocation2 + $0x20] sm:$0xf]
        %v1767 = vld [vmem:[#allocation2 + $0x24] sm:$0xf]
        %v1768 = vld [vmem:[#allocation2 + $0x28] sm:$0xf]
        %v1769 = vld [vmem:[#allocation2 + $0x2c] sm:$0xf]
        %v1770 = vld [vmem:[#allocation2 + $0x30] sm:$0xf]
        %v1771 = vld [vmem:[#allocation2 + $0x34] sm:$0xf]
        %v1772 = vld [vmem:[#allocation2 + $0x38] sm:$0xf]
        %v1773 = vld [vmem:[#allocation2 + $0x3c] sm:$0xf]
        %v1774 = vld [vmem:[#allocation2 + $0x40] sm:$0xf]
        %v1775 = vld [vmem:[#allocation2 + $0x44] sm:$0xf]
        %v1776 = vld [vmem:[#allocation2 + $0x48] sm:$0xf]
        %v1777 = vld [vmem:[#allocation2 + $0x4c] sm:$0xf]
        %s1778 = scalar_lea.vmem [#allocation4], 384
        %v1779 = vld [vmem:[%s1778] sm:$0xf]
        %v1780 = vld [vmem:[%s1778 + $0x4] sm:$0xf]
        %v1781 = vld [vmem:[%s1778 + $0x8] sm:$0xf]
        %v1782 = vld [vmem:[%s1778 + $0xc] sm:$0xf]
        %v1783 = vld [vmem:[%s1778 + $0x10] sm:$0xf]
        %v1784 = vld [vmem:[%s1778 + $0x14] sm:$0xf]
        %v1785 = vld [vmem:[%s1778 + $0x18] sm:$0xf]
        %v1786 = vld [vmem:[%s1778 + $0x1c] sm:$0xf]
        %v1787 = vld [vmem:[%s1778 + $0x20] sm:$0xf]
        %v1788 = vld [vmem:[%s1778 + $0x24] sm:$0xf]
        %v1789 = vld [vmem:[%s1778 + $0x28] sm:$0xf]
        %v1790 = vld [vmem:[%s1778 + $0x2c] sm:$0xf]
        %v1791 = vld [vmem:[%s1778 + $0x30] sm:$0xf]
        %v1792 = vld [vmem:[%s1778 + $0x34] sm:$0xf]
        %v1793 = vld [vmem:[%s1778 + $0x38] sm:$0xf]
        %v1794 = vld [vmem:[%s1778 + $0x3c] sm:$0xf]
        %v1811 = vunpack.c.l.b16 %v1762
        %v1812 = vunpack.c.l.b16 %v1763
        %v1813 = vunpack.c.l.b16 %v1764
        %v1814 = vunpack.c.l.b16 %v1765
        %v1815 = vunpack.c.l.b16 %v1766
        %v1816 = vunpack.c.l.b16 %v1767
        %v1817 = vunpack.c.l.b16 %v1768
        %v1818 = vunpack.c.l.b16 %v1769
        %v1819 = vunpack.c.l.b16 %v1770
        %v1820 = vunpack.c.l.b16 %v1771
        %v1821 = vunpack.c.l.b16 %v1772
        %v1822 = vunpack.c.l.b16 %v1773
        %v1823 = vunpack.c.l.b16 %v1774
        %v1824 = vunpack.c.l.b16 %v1775
        %v1825 = vunpack.c.l.b16 %v1776
        %v1826 = vunpack.c.l.b16 %v1777
        %v1827 = vpack.c.b16 %v1812, %v1811
        %v1828 = vpack.c.b16 %v1814, %v1813
        %v1829 = vpack.c.b16 %v1816, %v1815
        %v1830 = vpack.c.b16 %v1818, %v1817
        %v1831 = vpack.c.b16 %v1820, %v1819
        %v1832 = vpack.c.b16 %v1822, %v1821
        %v1833 = vpack.c.b16 %v1824, %v1823
        %v1834 = vpack.c.b16 %v1826, %v1825
        %v1859 = vunpack.c.l.b16 %v1779
        %v1860 = vunpack.c.l.b16 %v1780
        %v1861 = vunpack.c.l.b16 %v1781
        %v1862 = vunpack.c.l.b16 %v1782
        %v1863 = vunpack.c.l.b16 %v1783
        %v1864 = vunpack.c.l.b16 %v1784
        %v1865 = vunpack.c.l.b16 %v1785
        %v1866 = vunpack.c.l.b16 %v1786
        %v1867 = vunpack.c.l.b16 %v1787
        %v1868 = vunpack.c.l.b16 %v1788
        %v1869 = vunpack.c.l.b16 %v1789
        %v1870 = vunpack.c.l.b16 %v1790
        %v1871 = vunpack.c.l.b16 %v1791
        %v1872 = vunpack.c.l.b16 %v1792
        %v1873 = vunpack.c.l.b16 %v1793
        %v1874 = vunpack.c.l.b16 %v1794
        %v1875 = vpack.c.b16 %v1860, %v1859
        %v1876 = vpack.c.b16 %v1862, %v1861
        %v1877 = vpack.c.b16 %v1864, %v1863
        %v1878 = vpack.c.b16 %v1866, %v1865
        %v1879 = vpack.c.b16 %v1868, %v1867
        %v1880 = vpack.c.b16 %v1870, %v1869
        %v1881 = vpack.c.b16 %v1872, %v1871
        %v1882 = vpack.c.b16 %v1874, %v1873
        %1891 = vmatpush.bf16.msra.mxu0 %v1882
        %1892 = vmatpush.bf16.msra.mxu0 %v1881
        %1893 = vmatpush.bf16.msra.mxu0 %v1880
        %1894 = vmatpush.bf16.msra.mxu0 %v1879
        %1895 = vmatpush.bf16.msra.mxu0 %v1878
        %1896 = vmatpush.bf16.msra.mxu0 %v1877
        %1897 = vmatpush.bf16.msra.mxu0 %v1876
        %1898 = vmatpush.bf16.msra.mxu0 %v1875
        %1899 = vmatmul.bf16.gmra.mxu0 %v1827
        %v1900 = vpop.f32.mrf.mxu0
        %v1901 = vadd.f32 0.0, %v1900
        %v1902 = vpop.f32.mrf.mxu0
        %v1903 = vadd.f32 0.0, %v1902
        %1904 = vmatmul.bf16.gmra.mxu0 %v1828
        %v1905 = vpop.f32.mrf.mxu0
        %v1906 = vadd.f32 0.0, %v1905
        %v1907 = vpop.f32.mrf.mxu0
        %v1908 = vadd.f32 0.0, %v1907
        %1909 = vmatmul.bf16.gmra.mxu0 %v1829
        %v1910 = vpop.f32.mrf.mxu0
        %v1911 = vadd.f32 0.0, %v1910
        %v1912 = vpop.f32.mrf.mxu0
        %v1913 = vadd.f32 0.0, %v1912
        %1914 = vmatmul.bf16.gmra.mxu0 %v1830
        %v1915 = vpop.f32.mrf.mxu0
        %v1916 = vadd.f32 0.0, %v1915
        %v1917 = vpop.f32.mrf.mxu0
        %v1918 = vadd.f32 0.0, %v1917
        %1919 = vmatmul.bf16.gmra.mxu0 %v1831
        %v1920 = vpop.f32.mrf.mxu0
        %v1921 = vadd.f32 0.0, %v1920
        %v1922 = vpop.f32.mrf.mxu0
        %v1923 = vadd.f32 0.0, %v1922
        %1924 = vmatmul.bf16.gmra.mxu0 %v1832
        %v1925 = vpop.f32.mrf.mxu0
        %v1926 = vadd.f32 0.0, %v1925
        %v1927 = vpop.f32.mrf.mxu0
        %v1928 = vadd.f32 0.0, %v1927
        %1929 = vmatmul.bf16.gmra.mxu0 %v1833
        %v1930 = vpop.f32.mrf.mxu0
        %v1931 = vadd.f32 0.0, %v1930
        %v1932 = vpop.f32.mrf.mxu0
        %v1933 = vadd.f32 0.0, %v1932
        %1934 = vmatmul.bf16.gmra.mxu0 %v1834
        %v1935 = vpop.f32.mrf.mxu0
        %v1936 = vadd.f32 0.0, %v1935
        %v1937 = vpop.f32.mrf.mxu0
        %v1938 = vadd.f32 0.0, %v1937
        %1939 = vdwg.mxu0
        %v1940 = vadd.f32 %v1746, %v1901
        %v1941 = vadd.f32 %v1747, %v1903
        %v1942 = vadd.f32 %v1748, %v1906
        %v1943 = vadd.f32 %v1749, %v1908
        %v1944 = vadd.f32 %v1750, %v1911
        %v1945 = vadd.f32 %v1751, %v1913
        %v1946 = vadd.f32 %v1752, %v1916
        %v1947 = vadd.f32 %v1753, %v1918
        %v1948 = vadd.f32 %v1754, %v1921
        %v1949 = vadd.f32 %v1755, %v1923
        %v1950 = vadd.f32 %v1756, %v1926
        %v1951 = vadd.f32 %v1757, %v1928
        %v1952 = vadd.f32 %v1758, %v1931
        %v1953 = vadd.f32 %v1759, %v1933
        %v1954 = vadd.f32 %v1760, %v1936
        %v1955 = vadd.f32 %v1761, %v1938
        %v1956 = vld [vmem:[#allocation2 + $0x10] sm:$0xf]
        %v1957 = vld [vmem:[#allocation2 + $0x14] sm:$0xf]
        %v1958 = vld [vmem:[#allocation2 + $0x18] sm:$0xf]
        %v1959 = vld [vmem:[#allocation2 + $0x1c] sm:$0xf]
        %v1960 = vld [vmem:[#allocation2 + $0x20] sm:$0xf]
        %v1961 = vld [vmem:[#allocation2 + $0x24] sm:$0xf]
        %v1962 = vld [vmem:[#allocation2 + $0x28] sm:$0xf]
        %v1963 = vld [vmem:[#allocation2 + $0x2c] sm:$0xf]
        %v1964 = vld [vmem:[#allocation2 + $0x30] sm:$0xf]
        %v1965 = vld [vmem:[#allocation2 + $0x34] sm:$0xf]
        %v1966 = vld [vmem:[#allocation2 + $0x38] sm:$0xf]
        %v1967 = vld [vmem:[#allocation2 + $0x3c] sm:$0xf]
        %v1968 = vld [vmem:[#allocation2 + $0x40] sm:$0xf]
        %v1969 = vld [vmem:[#allocation2 + $0x44] sm:$0xf]
        %v1970 = vld [vmem:[#allocation2 + $0x48] sm:$0xf]
        %v1971 = vld [vmem:[#allocation2 + $0x4c] sm:$0xf]
        %v1972 = vld [vmem:[#allocation2 + $0x50] sm:$0x1]
        %s1973 = scalar_lea.vmem [#allocation4], 448
        %v1974 = vld [vmem:[%s1973] sm:$0xf]
        %v1975 = vld [vmem:[%s1973 + $0x4] sm:$0xf]
        %v1976 = vld [vmem:[%s1973 + $0x8] sm:$0xf]
        %v1977 = vld [vmem:[%s1973 + $0xc] sm:$0xf]
        %v1978 = vld [vmem:[%s1973 + $0x10] sm:$0xf]
        %v1979 = vld [vmem:[%s1973 + $0x14] sm:$0xf]
        %v1980 = vld [vmem:[%s1973 + $0x18] sm:$0xf]
        %v1981 = vld [vmem:[%s1973 + $0x1c] sm:$0xf]
        %v1982 = vld [vmem:[%s1973 + $0x20] sm:$0xf]
        %v1983 = vld [vmem:[%s1973 + $0x24] sm:$0xf]
        %v1984 = vld [vmem:[%s1973 + $0x28] sm:$0xf]
        %v1985 = vld [vmem:[%s1973 + $0x2c] sm:$0xf]
        %v1986 = vld [vmem:[%s1973 + $0x30] sm:$0xf]
        %v1987 = vld [vmem:[%s1973 + $0x34] sm:$0xf]
        %v1988 = vld [vmem:[%s1973 + $0x38] sm:$0xf]
        %v1989 = vld [vmem:[%s1973 + $0x3c] sm:$0xf]
        %v2007 = vunpack.c.l.b16 %v1956
        %v2008 = vunpack.c.l.b16 %v1957
        %v2009 = vunpack.c.l.b16 %v1958
        %v2010 = vunpack.c.l.b16 %v1959
        %v2011 = vunpack.c.l.b16 %v1960
        %v2012 = vunpack.c.l.b16 %v1961
        %v2013 = vunpack.c.l.b16 %v1962
        %v2014 = vunpack.c.l.b16 %v1963
        %v2015 = vunpack.c.l.b16 %v1964
        %v2016 = vunpack.c.l.b16 %v1965
        %v2017 = vunpack.c.l.b16 %v1966
        %v2018 = vunpack.c.l.b16 %v1967
        %v2019 = vunpack.c.l.b16 %v1968
        %v2020 = vunpack.c.l.b16 %v1969
        %v2021 = vunpack.c.l.b16 %v1970
        %v2022 = vunpack.c.l.b16 %v1971
        %v2023 = vunpack.c.l.b16 %v1972
        %v2024 = vpack.c.b16 %v2008, %v2007
        %v2025 = vpack.c.b16 %v2010, %v2009
        %v2026 = vpack.c.b16 %v2012, %v2011
        %v2027 = vpack.c.b16 %v2014, %v2013
        %v2028 = vpack.c.b16 %v2016, %v2015
        %v2029 = vpack.c.b16 %v2018, %v2017
        %v2030 = vpack.c.b16 %v2020, %v2019
        %v2031 = vpack.c.b16 %v2022, %v2021
        %v2032 = vpack.c.b16 %v2023, %v2023
        %v2034 = vshrl.u32 %v2024, 16
        %v2036 = vshll.u32 %v2024, 16
        %v2038 = vrot.slane %v2036, 1
        %v2039 = vor.u32 %v2034, %v2038
        %v2041 = vshll.u32 %v2025, 16
        %v2043 = vrot.slane %v2041, 1
        %v2044 = vsel %vm704, %v2039, %v2043
        %v2045 = vshrl.u32 %v2025, 16
        %v2047 = vor.u32 %v2045, %v2043
        %v2049 = vshll.u32 %v2026, 16
        %v2051 = vrot.slane %v2049, 1
        %v2052 = vsel %vm704, %v2047, %v2051
        %v2053 = vshrl.u32 %v2026, 16
        %v2055 = vor.u32 %v2053, %v2051
        %v2057 = vshll.u32 %v2027, 16
        %v2059 = vrot.slane %v2057, 1
        %v2060 = vsel %vm704, %v2055, %v2059
        %v2061 = vshrl.u32 %v2027, 16
        %v2063 = vor.u32 %v2061, %v2059
        %v2065 = vshll.u32 %v2028, 16
        %v2067 = vrot.slane %v2065, 1
        %v2068 = vsel %vm704, %v2063, %v2067
        %v2069 = vshrl.u32 %v2028, 16
        %v2071 = vor.u32 %v2069, %v2067
        %v2073 = vshll.u32 %v2029, 16
        %v2075 = vrot.slane %v2073, 1
        %v2076 = vsel %vm704, %v2071, %v2075
        %v2077 = vshrl.u32 %v2029, 16
        %v2079 = vor.u32 %v2077, %v2075
        %v2081 = vshll.u32 %v2030, 16
        %v2083 = vrot.slane %v2081, 1
        %v2084 = vsel %vm704, %v2079, %v2083
        %v2085 = vshrl.u32 %v2030, 16
        %v2087 = vor.u32 %v2085, %v2083
        %v2089 = vshll.u32 %v2031, 16
        %v2091 = vrot.slane %v2089, 1
        %v2092 = vsel %vm704, %v2087, %v2091
        %v2093 = vshrl.u32 %v2031, 16
        %v2095 = vor.u32 %v2093, %v2091
        %v2097 = vshll.u32 %v2032, 16
        %v2099 = vrot.slane %v2097, 1
        %v2100 = vsel %vm704, %v2095, %v2099
        %v2125 = vunpack.c.l.b16 %v1974
        %v2126 = vunpack.c.l.b16 %v1975
        %v2127 = vunpack.c.l.b16 %v1976
        %v2128 = vunpack.c.l.b16 %v1977
        %v2129 = vunpack.c.l.b16 %v1978
        %v2130 = vunpack.c.l.b16 %v1979
        %v2131 = vunpack.c.l.b16 %v1980
        %v2132 = vunpack.c.l.b16 %v1981
        %v2133 = vunpack.c.l.b16 %v1982
        %v2134 = vunpack.c.l.b16 %v1983
        %v2135 = vunpack.c.l.b16 %v1984
        %v2136 = vunpack.c.l.b16 %v1985
        %v2137 = vunpack.c.l.b16 %v1986
        %v2138 = vunpack.c.l.b16 %v1987
        %v2139 = vunpack.c.l.b16 %v1988
        %v2140 = vunpack.c.l.b16 %v1989
        %v2141 = vpack.c.b16 %v2126, %v2125
        %v2142 = vpack.c.b16 %v2128, %v2127
        %v2143 = vpack.c.b16 %v2130, %v2129
        %v2144 = vpack.c.b16 %v2132, %v2131
        %v2145 = vpack.c.b16 %v2134, %v2133
        %v2146 = vpack.c.b16 %v2136, %v2135
        %v2147 = vpack.c.b16 %v2138, %v2137
        %v2148 = vpack.c.b16 %v2140, %v2139
        %2157 = vmatpush.bf16.msra.mxu0 %v2148
        %2158 = vmatpush.bf16.msra.mxu0 %v2147
        %2159 = vmatpush.bf16.msra.mxu0 %v2146
        %2160 = vmatpush.bf16.msra.mxu0 %v2145
        %2161 = vmatpush.bf16.msra.mxu0 %v2144
        %2162 = vmatpush.bf16.msra.mxu0 %v2143
        %2163 = vmatpush.bf16.msra.mxu0 %v2142
        %2164 = vmatpush.bf16.msra.mxu0 %v2141
        %2165 = vmatmul.bf16.gmra.mxu0 %v2044
        %v2166 = vpop.f32.mrf.mxu0
        %v2167 = vadd.f32 0.0, %v2166
        %v2168 = vpop.f32.mrf.mxu0
        %v2169 = vadd.f32 0.0, %v2168
        %2170 = vmatmul.bf16.gmra.mxu0 %v2052
        %v2171 = vpop.f32.mrf.mxu0
        %v2172 = vadd.f32 0.0, %v2171
        %v2173 = vpop.f32.mrf.mxu0
        %v2174 = vadd.f32 0.0, %v2173
        %2175 = vmatmul.bf16.gmra.mxu0 %v2060
        %v2176 = vpop.f32.mrf.mxu0
        %v2177 = vadd.f32 0.0, %v2176
        %v2178 = vpop.f32.mrf.mxu0
        %v2179 = vadd.f32 0.0, %v2178
        %2180 = vmatmul.bf16.gmra.mxu0 %v2068
        %v2181 = vpop.f32.mrf.mxu0
        %v2182 = vadd.f32 0.0, %v2181
        %v2183 = vpop.f32.mrf.mxu0
        %v2184 = vadd.f32 0.0, %v2183
        %2185 = vmatmul.bf16.gmra.mxu0 %v2076
        %v2186 = vpop.f32.mrf.mxu0
        %v2187 = vadd.f32 0.0, %v2186
        %v2188 = vpop.f32.mrf.mxu0
        %v2189 = vadd.f32 0.0, %v2188
        %2190 = vmatmul.bf16.gmra.mxu0 %v2084
        %v2191 = vpop.f32.mrf.mxu0
        %v2192 = vadd.f32 0.0, %v2191
        %v2193 = vpop.f32.mrf.mxu0
        %v2194 = vadd.f32 0.0, %v2193
        %2195 = vmatmul.bf16.gmra.mxu0 %v2092
        %v2196 = vpop.f32.mrf.mxu0
        %v2197 = vadd.f32 0.0, %v2196
        %v2198 = vpop.f32.mrf.mxu0
        %v2199 = vadd.f32 0.0, %v2198
        %2200 = vmatmul.bf16.gmra.mxu0 %v2100
        %v2201 = vpop.f32.mrf.mxu0
        %v2202 = vadd.f32 0.0, %v2201
        %v2203 = vpop.f32.mrf.mxu0
        %v2204 = vadd.f32 0.0, %v2203
        %2205 = vdwg.mxu0
        %v2206 = vadd.f32 %v1940, %v2167
        %v2207 = vadd.f32 %v1941, %v2169
        %v2208 = vadd.f32 %v1942, %v2172
        %v2209 = vadd.f32 %v1943, %v2174
        %v2210 = vadd.f32 %v1944, %v2177
        %v2211 = vadd.f32 %v1945, %v2179
        %v2212 = vadd.f32 %v1946, %v2182
        %v2213 = vadd.f32 %v1947, %v2184
        %v2214 = vadd.f32 %v1948, %v2187
        %v2215 = vadd.f32 %v1949, %v2189
        %v2216 = vadd.f32 %v1950, %v2192
        %v2217 = vadd.f32 %v1951, %v2194
        %v2218 = vadd.f32 %v1952, %v2197
        %v2219 = vadd.f32 %v1953, %v2199
        %v2220 = vadd.f32 %v1954, %v2202
        %v2221 = vadd.f32 %v1955, %v2204
        %v2222 = vld [vmem:[#allocation2 + $0x10] sm:$0xe]
        %s2223 = scalar_lea.vmem [#allocation4], 512
        %v2224 = vld [vmem:[%s2223] sm:$0xf]
        %v2225 = vld [vmem:[%s2223 + $0x4] sm:$0xf]
        %v2226 = vld [vmem:[%s2223 + $0x8] sm:$0xf]
        %v2227 = vld [vmem:[%s2223 + $0xc] sm:$0xf]
        %v2228 = vld [vmem:[%s2223 + $0x10] sm:$0xf]
        %v2229 = vld [vmem:[%s2223 + $0x14] sm:$0xf]
        %v2230 = vld [vmem:[%s2223 + $0x18] sm:$0xf]
        %v2231 = vld [vmem:[%s2223 + $0x1c] sm:$0xf]
        %v2232 = vld [vmem:[%s2223 + $0x20] sm:$0xf]
        %v2233 = vld [vmem:[%s2223 + $0x24] sm:$0xf]
        %v2234 = vld [vmem:[%s2223 + $0x28] sm:$0xf]
        %v2235 = vld [vmem:[%s2223 + $0x2c] sm:$0xf]
        %v2236 = vld [vmem:[%s2223 + $0x30] sm:$0xf]
        %v2237 = vld [vmem:[%s2223 + $0x34] sm:$0xf]
        %v2238 = vld [vmem:[%s2223 + $0x38] sm:$0xf]
        %v2239 = vld [vmem:[%s2223 + $0x3c] sm:$0xf]
        %v2241 = vunpack.c.l.b16 %v2222
        %v2242 = vpack.c.b16 %v2008, %v2241
        %v2243 = vrot.slane %v2242, 1
        %v2244 = vrot.slane %v2025, 1
        %v2245 = vsel %vm1004, %v2243, %v2244
        %v2246 = vrot.slane %v2026, 1
        %v2247 = vsel %vm1004, %v2244, %v2246
        %v2248 = vrot.slane %v2027, 1
        %v2249 = vsel %vm1004, %v2246, %v2248
        %v2250 = vrot.slane %v2028, 1
        %v2251 = vsel %vm1004, %v2248, %v2250
        %v2252 = vrot.slane %v2029, 1
        %v2253 = vsel %vm1004, %v2250, %v2252
        %v2254 = vrot.slane %v2030, 1
        %v2255 = vsel %vm1004, %v2252, %v2254
        %v2256 = vrot.slane %v2031, 1
        %v2257 = vsel %vm1004, %v2254, %v2256
        %v2258 = vrot.slane %v2032, 1
        %v2259 = vsel %vm1004, %v2256, %v2258
        %v2284 = vunpack.c.l.b16 %v2224
        %v2285 = vunpack.c.l.b16 %v2225
        %v2286 = vunpack.c.l.b16 %v2226
        %v2287 = vunpack.c.l.b16 %v2227
        %v2288 = vunpack.c.l.b16 %v2228
        %v2289 = vunpack.c.l.b16 %v2229
        %v2290 = vunpack.c.l.b16 %v2230
        %v2291 = vunpack.c.l.b16 %v2231
        %v2292 = vunpack.c.l.b16 %v2232
        %v2293 = vunpack.c.l.b16 %v2233
        %v2294 = vunpack.c.l.b16 %v2234
        %v2295 = vunpack.c.l.b16 %v2235
        %v2296 = vunpack.c.l.b16 %v2236
        %v2297 = vunpack.c.l.b16 %v2237
        %v2298 = vunpack.c.l.b16 %v2238
        %v2299 = vunpack.c.l.b16 %v2239
        %v2300 = vpack.c.b16 %v2285, %v2284
        %v2301 = vpack.c.b16 %v2287, %v2286
        %v2302 = vpack.c.b16 %v2289, %v2288
        %v2303 = vpack.c.b16 %v2291, %v2290
        %v2304 = vpack.c.b16 %v2293, %v2292
        %v2305 = vpack.c.b16 %v2295, %v2294
        %v2306 = vpack.c.b16 %v2297, %v2296
        %v2307 = vpack.c.b16 %v2299, %v2298
        %2316 = vmatpush.bf16.msra.mxu0 %v2307
        %2317 = vmatpush.bf16.msra.mxu0 %v2306
        %2318 = vmatpush.bf16.msra.mxu0 %v2305
        %2319 = vmatpush.bf16.msra.mxu0 %v2304
        %2320 = vmatpush.bf16.msra.mxu0 %v2303
        %2321 = vmatpush.bf16.msra.mxu0 %v2302
        %2322 = vmatpush.bf16.msra.mxu0 %v2301
        %2323 = vmatpush.bf16.msra.mxu0 %v2300
        %2324 = vmatmul.bf16.gmra.mxu0 %v2245
        %v2325 = vpop.f32.mrf.mxu0
        %v2326 = vadd.f32 0.0, %v2325
        %v2327 = vpop.f32.mrf.mxu0
        %v2328 = vadd.f32 0.0, %v2327
        %2329 = vmatmul.bf16.gmra.mxu0 %v2247
        %v2330 = vpop.f32.mrf.mxu0
        %v2331 = vadd.f32 0.0, %v2330
        %v2332 = vpop.f32.mrf.mxu0
        %v2333 = vadd.f32 0.0, %v2332
        %2334 = vmatmul.bf16.gmra.mxu0 %v2249
        %v2335 = vpop.f32.mrf.mxu0
        %v2336 = vadd.f32 0.0, %v2335
        %v2337 = vpop.f32.mrf.mxu0
        %v2338 = vadd.f32 0.0, %v2337
        %2339 = vmatmul.bf16.gmra.mxu0 %v2251
        %v2340 = vpop.f32.mrf.mxu0
        %v2341 = vadd.f32 0.0, %v2340
        %v2342 = vpop.f32.mrf.mxu0
        %v2343 = vadd.f32 0.0, %v2342
        %2344 = vmatmul.bf16.gmra.mxu0 %v2253
        %v2345 = vpop.f32.mrf.mxu0
        %v2346 = vadd.f32 0.0, %v2345
        %v2347 = vpop.f32.mrf.mxu0
        %v2348 = vadd.f32 0.0, %v2347
        %2349 = vmatmul.bf16.gmra.mxu0 %v2255
        %v2350 = vpop.f32.mrf.mxu0
        %v2351 = vadd.f32 0.0, %v2350
        %v2352 = vpop.f32.mrf.mxu0
        %v2353 = vadd.f32 0.0, %v2352
        %2354 = vmatmul.bf16.gmra.mxu0 %v2257
        %v2355 = vpop.f32.mrf.mxu0
        %v2356 = vadd.f32 0.0, %v2355
        %v2357 = vpop.f32.mrf.mxu0
        %v2358 = vadd.f32 0.0, %v2357
        %2359 = vmatmul.bf16.gmra.mxu0 %v2259
        %v2360 = vpop.f32.mrf.mxu0
        %v2361 = vadd.f32 0.0, %v2360
        %v2362 = vpop.f32.mrf.mxu0
        %v2363 = vadd.f32 0.0, %v2362
        %2364 = vdwg.mxu0
        %v2365 = vadd.f32 %v2206, %v2326
        %v2366 = vadd.f32 %v2207, %v2328
        %v2367 = vadd.f32 %v2208, %v2331
        %v2368 = vadd.f32 %v2209, %v2333
        %v2369 = vadd.f32 %v2210, %v2336
        %v2370 = vadd.f32 %v2211, %v2338
        %v2371 = vadd.f32 %v2212, %v2341
        %v2372 = vadd.f32 %v2213, %v2343
        %v2373 = vadd.f32 %v2214, %v2346
        %v2374 = vadd.f32 %v2215, %v2348
        %v2375 = vadd.f32 %v2216, %v2351
        %v2376 = vadd.f32 %v2217, %v2353
        %v2377 = vadd.f32 %v2218, %v2356
        %v2378 = vadd.f32 %v2219, %v2358
        %v2379 = vadd.f32 %v2220, %v2361
        %v2380 = vadd.f32 %v2221, %v2363
        %v2381 = vld [vmem:[%s4] sm:$0x1]
        %v2383 = vperm.slane %v2381, 0
        %v2385 = vadd.f32 %v2365, %v2383
        %v2386 = vadd.f32 %v2366, %v2383
        %v2387 = vadd.f32 %v2367, %v2383
        %v2388 = vadd.f32 %v2368, %v2383
        %v2389 = vadd.f32 %v2369, %v2383
        %v2390 = vadd.f32 %v2370, %v2383
        %v2391 = vadd.f32 %v2371, %v2383
        %v2392 = vadd.f32 %v2372, %v2383
        %v2393 = vadd.f32 %v2373, %v2383
        %v2394 = vadd.f32 %v2374, %v2383
        %v2395 = vadd.f32 %v2375, %v2383
        %v2396 = vadd.f32 %v2376, %v2383
        %v2397 = vadd.f32 %v2377, %v2383
        %v2398 = vadd.f32 %v2378, %v2383
        %v2399 = vadd.f32 %v2379, %v2383
        %v2400 = vadd.f32 %v2380, %v2383
        %v2401 = vmax.f32 %v2385, 0.0
        %v2402 = vmax.f32 %v2386, 0.0
        %v2403 = vmax.f32 %v2387, 0.0
        %v2404 = vmax.f32 %v2388, 0.0
        %v2405 = vmax.f32 %v2389, 0.0
        %v2406 = vmax.f32 %v2390, 0.0
        %v2407 = vmax.f32 %v2391, 0.0
        %v2408 = vmax.f32 %v2392, 0.0
        %v2409 = vmax.f32 %v2393, 0.0
        %v2410 = vmax.f32 %v2394, 0.0
        %v2411 = vmax.f32 %v2395, 0.0
        %v2412 = vmax.f32 %v2396, 0.0
        %v2413 = vmax.f32 %v2397, 0.0
        %v2414 = vmax.f32 %v2398, 0.0
        %v2415 = vmax.f32 %v2399, 0.0
        %v2416 = vmax.f32 %v2400, 0.0
        %2417 = vst [vmem:[#allocation3] sm:$0xff] %v2401
        %2418 = vst [vmem:[#allocation3 + $0x8] sm:$0xff] %v2402
        %2419 = vst [vmem:[#allocation3 + $0x10] sm:$0xff] %v2403
        %2420 = vst [vmem:[#allocation3 + $0x18] sm:$0xff] %v2404
        %2421 = vst [vmem:[#allocation3 + $0x20] sm:$0xff] %v2405
        %2422 = vst [vmem:[#allocation3 + $0x28] sm:$0xff] %v2406
        %2423 = vst [vmem:[#allocation3 + $0x30] sm:$0xff] %v2407
        %2424 = vst [vmem:[#allocation3 + $0x38] sm:$0xff] %v2408
        %2425 = vst [vmem:[#allocation3 + $0x40] sm:$0xff] %v2409
        %2426 = vst [vmem:[#allocation3 + $0x48] sm:$0xff] %v2410
        %2427 = vst [vmem:[#allocation3 + $0x50] sm:$0xff] %v2411
        %2428 = vst [vmem:[#allocation3 + $0x58] sm:$0xff] %v2412
        %2429 = vst [vmem:[#allocation3 + $0x60] sm:$0xff] %v2413
        %2430 = vst [vmem:[#allocation3 + $0x68] sm:$0xff] %v2414
        %2431 = vst [vmem:[#allocation3 + $0x70] sm:$0xff] %v2415
        %2432 = vst [vmem:[#allocation3 + $0x78] sm:$0xff] %v2416
        %v2433 = vld [vmem:[#allocation2 + $0x40] sm:$0xf]
        %v2434 = vld [vmem:[#allocation2 + $0x44] sm:$0xf]
        %v2435 = vld [vmem:[#allocation2 + $0x48] sm:$0xf]
        %v2436 = vld [vmem:[#allocation2 + $0x4c] sm:$0xf]
        %v2437 = vld [vmem:[#allocation2 + $0x50] sm:$0xf]
        %v2438 = vld [vmem:[#allocation2 + $0x54] sm:$0xf]
        %v2439 = vld [vmem:[#allocation2 + $0x58] sm:$0xf]
        %v2440 = vld [vmem:[#allocation2 + $0x5c] sm:$0x3]
        %v2441 = vld [vmem:[#allocation4] sm:$0xf]
        %v2442 = vld [vmem:[#allocation4 + $0x4] sm:$0xf]
        %v2443 = vld [vmem:[#allocation4 + $0x8] sm:$0xf]
        %v2444 = vld [vmem:[#allocation4 + $0xc] sm:$0xf]
        %v2445 = vld [vmem:[#allocation4 + $0x10] sm:$0xf]
        %v2446 = vld [vmem:[#allocation4 + $0x14] sm:$0xf]
        %v2447 = vld [vmem:[#allocation4 + $0x18] sm:$0xf]
        %v2448 = vld [vmem:[#allocation4 + $0x1c] sm:$0xf]
        %v2449 = vld [vmem:[#allocation4 + $0x20] sm:$0xf]
        %v2450 = vld [vmem:[#allocation4 + $0x24] sm:$0xf]
        %v2451 = vld [vmem:[#allocation4 + $0x28] sm:$0xf]
        %v2452 = vld [vmem:[#allocation4 + $0x2c] sm:$0xf]
        %v2453 = vld [vmem:[#allocation4 + $0x30] sm:$0xf]
        %v2454 = vld [vmem:[#allocation4 + $0x34] sm:$0xf]
        %v2455 = vld [vmem:[#allocation4 + $0x38] sm:$0xf]
        %v2456 = vld [vmem:[#allocation4 + $0x3c] sm:$0xf]
        %v2457 = vld [vmem:[#allocation2 + $0x5c] sm:$0x7]
        %v2458 = vld [vmem:[%s644] sm:$0xf]
        %v2459 = vld [vmem:[%s644 + $0x4] sm:$0xf]
        %v2460 = vld [vmem:[%s644 + $0x8] sm:$0xf]
        %v2461 = vld [vmem:[%s644 + $0xc] sm:$0xf]
        %v2462 = vld [vmem:[%s644 + $0x10] sm:$0xf]
        %v2463 = vld [vmem:[%s644 + $0x14] sm:$0xf]
        %v2464 = vld [vmem:[%s644 + $0x18] sm:$0xf]
        %v2465 = vld [vmem:[%s644 + $0x1c] sm:$0xf]
        %v2466 = vld [vmem:[%s644 + $0x20] sm:$0xf]
        %v2467 = vld [vmem:[%s644 + $0x24] sm:$0xf]
        %v2468 = vld [vmem:[%s644 + $0x28] sm:$0xf]
        %v2469 = vld [vmem:[%s644 + $0x2c] sm:$0xf]
        %v2470 = vld [vmem:[%s644 + $0x30] sm:$0xf]
        %v2471 = vld [vmem:[%s644 + $0x34] sm:$0xf]
        %v2472 = vld [vmem:[%s644 + $0x38] sm:$0xf]
        %v2473 = vld [vmem:[%s644 + $0x3c] sm:$0xf]
        %v2482 = vunpack.c.l.b16 %v2433
        %v2483 = vunpack.c.l.b16 %v2434
        %v2484 = vunpack.c.l.b16 %v2435
        %v2485 = vunpack.c.l.b16 %v2436
        %v2486 = vunpack.c.l.b16 %v2437
        %v2487 = vunpack.c.l.b16 %v2438
        %v2488 = vunpack.c.l.b16 %v2439
        %v2489 = vunpack.c.l.b16 %v2457
        %v2490 = vpack.c.b16 %v2483, %v2482
        %v2491 = vpack.c.b16 %v2485, %v2484
        %v2492 = vpack.c.b16 %v2487, %v2486
        %v2493 = vpack.c.b16 %v2489, %v2488
        %v2495 = vshrl.u32 %v2490, 16
        %v2497 = vshll.u32 %v2490, 16
        %v2499 = vrot.slane %v2497, 1
        %v2500 = vor.u32 %v2495, %v2499
        %v2502 = vshll.u32 %v2491, 16
        %v2504 = vrot.slane %v2502, 1
        %v2505 = vsel %vm704, %v2500, %v2504
        %v2506 = vshrl.u32 %v2491, 16
        %v2508 = vor.u32 %v2506, %v2504
        %v2510 = vshll.u32 %v2492, 16
        %v2512 = vrot.slane %v2510, 1
        %v2513 = vsel %vm704, %v2508, %v2512
        %v2514 = vshrl.u32 %v2492, 16
        %v2516 = vor.u32 %v2514, %v2512
        %v2518 = vshll.u32 %v2493, 16
        %v2520 = vrot.slane %v2518, 1
        %v2521 = vsel %vm704, %v2516, %v2520
        %v2522 = vshrl.u32 %v2493, 16
        %v2524 = vor.u32 %v2522, %v2520
        %v2545 = vunpack.c.l.b16 %v2458
        %v2546 = vunpack.c.l.b16 %v2459
        %v2547 = vunpack.c.l.b16 %v2460
        %v2548 = vunpack.c.l.b16 %v2461
        %v2549 = vunpack.c.l.b16 %v2462
        %v2550 = vunpack.c.l.b16 %v2463
        %v2551 = vunpack.c.l.b16 %v2464
        %v2552 = vunpack.c.l.b16 %v2465
        %v2553 = vunpack.c.l.b16 %v2466
        %v2554 = vunpack.c.l.b16 %v2467
        %v2555 = vunpack.c.l.b16 %v2468
        %v2556 = vunpack.c.l.b16 %v2469
        %v2557 = vunpack.c.l.b16 %v2470
        %v2558 = vunpack.c.l.b16 %v2471
        %v2559 = vunpack.c.l.b16 %v2472
        %v2560 = vunpack.c.l.b16 %v2473
        %v2561 = vpack.c.b16 %v2546, %v2545
        %v2562 = vpack.c.b16 %v2548, %v2547
        %v2563 = vpack.c.b16 %v2550, %v2549
        %v2564 = vpack.c.b16 %v2552, %v2551
        %v2565 = vpack.c.b16 %v2554, %v2553
        %v2566 = vpack.c.b16 %v2556, %v2555
        %v2567 = vpack.c.b16 %v2558, %v2557
        %v2568 = vpack.c.b16 %v2560, %v2559
        %2577 = vmatpush.bf16.msra.mxu0 %v2568
        %2578 = vmatpush.bf16.msra.mxu0 %v2567
        %2579 = vmatpush.bf16.msra.mxu0 %v2566
        %2580 = vmatpush.bf16.msra.mxu0 %v2565
        %2581 = vmatpush.bf16.msra.mxu0 %v2564
        %2582 = vmatpush.bf16.msra.mxu0 %v2563
        %2583 = vmatpush.bf16.msra.mxu0 %v2562
        %2584 = vmatpush.bf16.msra.mxu0 %v2561
        %2585 = vmatmul.bf16.gmra.mxu0 %v2505
        %v2586 = vpop.f32.mrf.mxu0
        %v2587 = vadd.f32 0.0, %v2586
        %v2588 = vpop.f32.mrf.mxu0
        %v2589 = vadd.f32 0.0, %v2588
        %2590 = vmatmul.bf16.gmra.mxu0 %v2513
        %v2591 = vpop.f32.mrf.mxu0
        %v2592 = vadd.f32 0.0, %v2591
        %v2593 = vpop.f32.mrf.mxu0
        %v2594 = vadd.f32 0.0, %v2593
        %2595 = vmatmul.bf16.gmra.mxu0 %v2521
        %v2596 = vpop.f32.mrf.mxu0
        %v2597 = vadd.f32 0.0, %v2596
        %v2598 = vpop.f32.mrf.mxu0
        %v2599 = vadd.f32 0.0, %v2598
        %2600 = vmatmul.bf16.gmra.mxu0 %v2524
        %v2601 = vpop.f32.mrf.mxu0
        %v2602 = vadd.f32 0.0, %v2601
        %v2603 = vpop.f32.mrf.mxu0
        %v2604 = vadd.f32 0.0, %v2603
        %2605 = vdwg.mxu0
        %v2607 = vunpack.c.l.b16 %v2440
        %v2608 = vpack.c.b16 %v2607, %v2488
        %v2629 = vunpack.c.l.b16 %v2441
        %v2630 = vunpack.c.l.b16 %v2442
        %v2631 = vunpack.c.l.b16 %v2443
        %v2632 = vunpack.c.l.b16 %v2444
        %v2633 = vunpack.c.l.b16 %v2445
        %v2634 = vunpack.c.l.b16 %v2446
        %v2635 = vunpack.c.l.b16 %v2447
        %v2636 = vunpack.c.l.b16 %v2448
        %v2637 = vunpack.c.l.b16 %v2449
        %v2638 = vunpack.c.l.b16 %v2450
        %v2639 = vunpack.c.l.b16 %v2451
        %v2640 = vunpack.c.l.b16 %v2452
        %v2641 = vunpack.c.l.b16 %v2453
        %v2642 = vunpack.c.l.b16 %v2454
        %v2643 = vunpack.c.l.b16 %v2455
        %v2644 = vunpack.c.l.b16 %v2456
        %v2645 = vpack.c.b16 %v2630, %v2629
        %v2646 = vpack.c.b16 %v2632, %v2631
        %v2647 = vpack.c.b16 %v2634, %v2633
        %v2648 = vpack.c.b16 %v2636, %v2635
        %v2649 = vpack.c.b16 %v2638, %v2637
        %v2650 = vpack.c.b16 %v2640, %v2639
        %v2651 = vpack.c.b16 %v2642, %v2641
        %v2652 = vpack.c.b16 %v2644, %v2643
        %2661 = vmatpush.bf16.msra.mxu0 %v2652
        %2662 = vmatpush.bf16.msra.mxu0 %v2651
        %2663 = vmatpush.bf16.msra.mxu0 %v2650
        %2664 = vmatpush.bf16.msra.mxu0 %v2649
        %2665 = vmatpush.bf16.msra.mxu0 %v2648
        %2666 = vmatpush.bf16.msra.mxu0 %v2647
        %2667 = vmatpush.bf16.msra.mxu0 %v2646
        %2668 = vmatpush.bf16.msra.mxu0 %v2645
        %2669 = vmatmul.bf16.gmra.mxu0 %v2490
        %v2670 = vpop.f32.mrf.mxu0
        %v2671 = vadd.f32 %v2587, %v2670
        %v2672 = vpop.f32.mrf.mxu0
        %v2673 = vadd.f32 %v2589, %v2672
        %2674 = vmatmul.bf16.gmra.mxu0 %v2491
        %v2675 = vpop.f32.mrf.mxu0
        %v2676 = vadd.f32 %v2592, %v2675
        %v2677 = vpop.f32.mrf.mxu0
        %v2678 = vadd.f32 %v2594, %v2677
        %2679 = vmatmul.bf16.gmra.mxu0 %v2492
        %v2680 = vpop.f32.mrf.mxu0
        %v2681 = vadd.f32 %v2597, %v2680
        %v2682 = vpop.f32.mrf.mxu0
        %v2683 = vadd.f32 %v2599, %v2682
        %2684 = vmatmul.bf16.gmra.mxu0 %v2608
        %v2685 = vpop.f32.mrf.mxu0
        %v2686 = vadd.f32 %v2602, %v2685
        %v2687 = vpop.f32.mrf.mxu0
        %v2688 = vadd.f32 %v2604, %v2687
        %2689 = vdwg.mxu0
        %v2690 = vld [vmem:[#allocation2 + $0x40] sm:$0xe]
        %v2691 = vld [vmem:[%s984] sm:$0xf]
        %v2692 = vld [vmem:[%s984 + $0x4] sm:$0xf]
        %v2693 = vld [vmem:[%s984 + $0x8] sm:$0xf]
        %v2694 = vld [vmem:[%s984 + $0xc] sm:$0xf]
        %v2695 = vld [vmem:[%s984 + $0x10] sm:$0xf]
        %v2696 = vld [vmem:[%s984 + $0x14] sm:$0xf]
        %v2697 = vld [vmem:[%s984 + $0x18] sm:$0xf]
        %v2698 = vld [vmem:[%s984 + $0x1c] sm:$0xf]
        %v2699 = vld [vmem:[%s984 + $0x20] sm:$0xf]
        %v2700 = vld [vmem:[%s984 + $0x24] sm:$0xf]
        %v2701 = vld [vmem:[%s984 + $0x28] sm:$0xf]
        %v2702 = vld [vmem:[%s984 + $0x2c] sm:$0xf]
        %v2703 = vld [vmem:[%s984 + $0x30] sm:$0xf]
        %v2704 = vld [vmem:[%s984 + $0x34] sm:$0xf]
        %v2705 = vld [vmem:[%s984 + $0x38] sm:$0xf]
        %v2706 = vld [vmem:[%s984 + $0x3c] sm:$0xf]
        %v2708 = vunpack.c.l.b16 %v2690
        %v2709 = vpack.c.b16 %v2483, %v2708
        %v2710 = vrot.slane %v2709, 1
        %v2711 = vrot.slane %v2491, 1
        %v2712 = vsel %vm1004, %v2710, %v2711
        %v2713 = vrot.slane %v2492, 1
        %v2714 = vsel %vm1004, %v2711, %v2713
        %v2715 = vrot.slane %v2493, 1
        %v2716 = vsel %vm1004, %v2713, %v2715
        %v2737 = vunpack.c.l.b16 %v2691
        %v2738 = vunpack.c.l.b16 %v2692
        %v2739 = vunpack.c.l.b16 %v2693
        %v2740 = vunpack.c.l.b16 %v2694
        %v2741 = vunpack.c.l.b16 %v2695
        %v2742 = vunpack.c.l.b16 %v2696
        %v2743 = vunpack.c.l.b16 %v2697
        %v2744 = vunpack.c.l.b16 %v2698
        %v2745 = vunpack.c.l.b16 %v2699
        %v2746 = vunpack.c.l.b16 %v2700
        %v2747 = vunpack.c.l.b16 %v2701
        %v2748 = vunpack.c.l.b16 %v2702
        %v2749 = vunpack.c.l.b16 %v2703
        %v2750 = vunpack.c.l.b16 %v2704
        %v2751 = vunpack.c.l.b16 %v2705
        %v2752 = vunpack.c.l.b16 %v2706
        %v2753 = vpack.c.b16 %v2738, %v2737
        %v2754 = vpack.c.b16 %v2740, %v2739
        %v2755 = vpack.c.b16 %v2742, %v2741
        %v2756 = vpack.c.b16 %v2744, %v2743
        %v2757 = vpack.c.b16 %v2746, %v2745
        %v2758 = vpack.c.b16 %v2748, %v2747
        %v2759 = vpack.c.b16 %v2750, %v2749
        %v2760 = vpack.c.b16 %v2752, %v2751
        %2769 = vmatpush.bf16.msra.mxu0 %v2760
        %2770 = vmatpush.bf16.msra.mxu0 %v2759
        %2771 = vmatpush.bf16.msra.mxu0 %v2758
        %2772 = vmatpush.bf16.msra.mxu0 %v2757
        %2773 = vmatpush.bf16.msra.mxu0 %v2756
        %2774 = vmatpush.bf16.msra.mxu0 %v2755
        %2775 = vmatpush.bf16.msra.mxu0 %v2754
        %2776 = vmatpush.bf16.msra.mxu0 %v2753
        %2777 = vmatmul.bf16.gmra.mxu0 %v2712
        %v2778 = vpop.f32.mrf.mxu0
        %v2779 = vadd.f32 0.0, %v2778
        %v2780 = vpop.f32.mrf.mxu0
        %v2781 = vadd.f32 0.0, %v2780
        %2782 = vmatmul.bf16.gmra.mxu0 %v2714
        %v2783 = vpop.f32.mrf.mxu0
        %v2784 = vadd.f32 0.0, %v2783
        %v2785 = vpop.f32.mrf.mxu0
        %v2786 = vadd.f32 0.0, %v2785
        %2787 = vmatmul.bf16.gmra.mxu0 %v2716
        %v2788 = vpop.f32.mrf.mxu0
        %v2789 = vadd.f32 0.0, %v2788
        %v2790 = vpop.f32.mrf.mxu0
        %v2791 = vadd.f32 0.0, %v2790
        %2792 = vmatmul.bf16.gmra.mxu0 %v2715
        %v2793 = vpop.f32.mrf.mxu0
        %v2794 = vadd.f32 0.0, %v2793
        %v2795 = vpop.f32.mrf.mxu0
        %v2796 = vadd.f32 0.0, %v2795
        %2797 = vdwg.mxu0
        %v2798 = vadd.f32 %v2671, %v2779
        %v2799 = vadd.f32 %v2673, %v2781
        %v2800 = vadd.f32 %v2676, %v2784
        %v2801 = vadd.f32 %v2678, %v2786
        %v2802 = vadd.f32 %v2681, %v2789
        %v2803 = vadd.f32 %v2683, %v2791
        %v2804 = vadd.f32 %v2686, %v2794
        %v2805 = vadd.f32 %v2688, %v2796
        %v2806 = vld [vmem:[#allocation2 + $0x48] sm:$0xf]
        %v2807 = vld [vmem:[#allocation2 + $0x4c] sm:$0xf]
        %v2808 = vld [vmem:[#allocation2 + $0x50] sm:$0xf]
        %v2809 = vld [vmem:[#allocation2 + $0x54] sm:$0xf]
        %v2810 = vld [vmem:[#allocation2 + $0x58] sm:$0xf]
        %v2811 = vld [vmem:[#allocation2 + $0x5c] sm:$0xf]
        %v2812 = vld [vmem:[#allocation2 + $0x60] sm:$0xf]
        %v2813 = vld [vmem:[#allocation2 + $0x64] sm:$0x3]
        %v2814 = vld [vmem:[%s1159] sm:$0xf]
        %v2815 = vld [vmem:[%s1159 + $0x4] sm:$0xf]
        %v2816 = vld [vmem:[%s1159 + $0x8] sm:$0xf]
        %v2817 = vld [vmem:[%s1159 + $0xc] sm:$0xf]
        %v2818 = vld [vmem:[%s1159 + $0x10] sm:$0xf]
        %v2819 = vld [vmem:[%s1159 + $0x14] sm:$0xf]
        %v2820 = vld [vmem:[%s1159 + $0x18] sm:$0xf]
        %v2821 = vld [vmem:[%s1159 + $0x1c] sm:$0xf]
        %v2822 = vld [vmem:[%s1159 + $0x20] sm:$0xf]
        %v2823 = vld [vmem:[%s1159 + $0x24] sm:$0xf]
        %v2824 = vld [vmem:[%s1159 + $0x28] sm:$0xf]
        %v2825 = vld [vmem:[%s1159 + $0x2c] sm:$0xf]
        %v2826 = vld [vmem:[%s1159 + $0x30] sm:$0xf]
        %v2827 = vld [vmem:[%s1159 + $0x34] sm:$0xf]
        %v2828 = vld [vmem:[%s1159 + $0x38] sm:$0xf]
        %v2829 = vld [vmem:[%s1159 + $0x3c] sm:$0xf]
        %v2838 = vunpack.c.l.b16 %v2806
        %v2839 = vunpack.c.l.b16 %v2807
        %v2840 = vunpack.c.l.b16 %v2808
        %v2841 = vunpack.c.l.b16 %v2809
        %v2842 = vunpack.c.l.b16 %v2810
        %v2843 = vunpack.c.l.b16 %v2811
        %v2844 = vunpack.c.l.b16 %v2812
        %v2845 = vunpack.c.l.b16 %v2813
        %v2846 = vpack.c.b16 %v2839, %v2838
        %v2847 = vpack.c.b16 %v2841, %v2840
        %v2848 = vpack.c.b16 %v2843, %v2842
        %v2849 = vpack.c.b16 %v2845, %v2844
        %v2870 = vunpack.c.l.b16 %v2814
        %v2871 = vunpack.c.l.b16 %v2815
        %v2872 = vunpack.c.l.b16 %v2816
        %v2873 = vunpack.c.l.b16 %v2817
        %v2874 = vunpack.c.l.b16 %v2818
        %v2875 = vunpack.c.l.b16 %v2819
        %v2876 = vunpack.c.l.b16 %v2820
        %v2877 = vunpack.c.l.b16 %v2821
        %v2878 = vunpack.c.l.b16 %v2822
        %v2879 = vunpack.c.l.b16 %v2823
        %v2880 = vunpack.c.l.b16 %v2824
        %v2881 = vunpack.c.l.b16 %v2825
        %v2882 = vunpack.c.l.b16 %v2826
        %v2883 = vunpack.c.l.b16 %v2827
        %v2884 = vunpack.c.l.b16 %v2828
        %v2885 = vunpack.c.l.b16 %v2829
        %v2886 = vpack.c.b16 %v2871, %v2870
        %v2887 = vpack.c.b16 %v2873, %v2872
        %v2888 = vpack.c.b16 %v2875, %v2874
        %v2889 = vpack.c.b16 %v2877, %v2876
        %v2890 = vpack.c.b16 %v2879, %v2878
        %v2891 = vpack.c.b16 %v2881, %v2880
        %v2892 = vpack.c.b16 %v2883, %v2882
        %v2893 = vpack.c.b16 %v2885, %v2884
        %2902 = vmatpush.bf16.msra.mxu0 %v2893
        %2903 = vmatpush.bf16.msra.mxu0 %v2892
        %2904 = vmatpush.bf16.msra.mxu0 %v2891
        %2905 = vmatpush.bf16.msra.mxu0 %v2890
        %2906 = vmatpush.bf16.msra.mxu0 %v2889
        %2907 = vmatpush.bf16.msra.mxu0 %v2888
        %2908 = vmatpush.bf16.msra.mxu0 %v2887
        %2909 = vmatpush.bf16.msra.mxu0 %v2886
        %2910 = vmatmul.bf16.gmra.mxu0 %v2846
        %v2911 = vpop.f32.mrf.mxu0
        %v2912 = vadd.f32 0.0, %v2911
        %v2913 = vpop.f32.mrf.mxu0
        %v2914 = vadd.f32 0.0, %v2913
        %2915 = vmatmul.bf16.gmra.mxu0 %v2847
        %v2916 = vpop.f32.mrf.mxu0
        %v2917 = vadd.f32 0.0, %v2916
        %v2918 = vpop.f32.mrf.mxu0
        %v2919 = vadd.f32 0.0, %v2918
        %2920 = vmatmul.bf16.gmra.mxu0 %v2848
        %v2921 = vpop.f32.mrf.mxu0
        %v2922 = vadd.f32 0.0, %v2921
        %v2923 = vpop.f32.mrf.mxu0
        %v2924 = vadd.f32 0.0, %v2923
        %2925 = vmatmul.bf16.gmra.mxu0 %v2849
        %v2926 = vpop.f32.mrf.mxu0
        %v2927 = vadd.f32 0.0, %v2926
        %v2928 = vpop.f32.mrf.mxu0
        %v2929 = vadd.f32 0.0, %v2928
        %2930 = vdwg.mxu0
        %v2931 = vadd.f32 %v2798, %v2912
        %v2932 = vadd.f32 %v2799, %v2914
        %v2933 = vadd.f32 %v2800, %v2917
        %v2934 = vadd.f32 %v2801, %v2919
        %v2935 = vadd.f32 %v2802, %v2922
        %v2936 = vadd.f32 %v2803, %v2924
        %v2937 = vadd.f32 %v2804, %v2927
        %v2938 = vadd.f32 %v2805, %v2929
        %v2939 = vld [vmem:[#allocation2 + $0x64] sm:$0x7]
        %v2940 = vld [vmem:[%s1354] sm:$0xf]
        %v2941 = vld [vmem:[%s1354 + $0x4] sm:$0xf]
        %v2942 = vld [vmem:[%s1354 + $0x8] sm:$0xf]
        %v2943 = vld [vmem:[%s1354 + $0xc] sm:$0xf]
        %v2944 = vld [vmem:[%s1354 + $0x10] sm:$0xf]
        %v2945 = vld [vmem:[%s1354 + $0x14] sm:$0xf]
        %v2946 = vld [vmem:[%s1354 + $0x18] sm:$0xf]
        %v2947 = vld [vmem:[%s1354 + $0x1c] sm:$0xf]
        %v2948 = vld [vmem:[%s1354 + $0x20] sm:$0xf]
        %v2949 = vld [vmem:[%s1354 + $0x24] sm:$0xf]
        %v2950 = vld [vmem:[%s1354 + $0x28] sm:$0xf]
        %v2951 = vld [vmem:[%s1354 + $0x2c] sm:$0xf]
        %v2952 = vld [vmem:[%s1354 + $0x30] sm:$0xf]
        %v2953 = vld [vmem:[%s1354 + $0x34] sm:$0xf]
        %v2954 = vld [vmem:[%s1354 + $0x38] sm:$0xf]
        %v2955 = vld [vmem:[%s1354 + $0x3c] sm:$0xf]
        %v2957 = vunpack.c.l.b16 %v2939
        %v2958 = vpack.c.b16 %v2957, %v2844
        %v2960 = vshrl.u32 %v2846, 16
        %v2962 = vshll.u32 %v2846, 16
        %v2964 = vrot.slane %v2962, 1
        %v2965 = vor.u32 %v2960, %v2964
        %v2967 = vshll.u32 %v2847, 16
        %v2969 = vrot.slane %v2967, 1
        %v2970 = vsel %vm704, %v2965, %v2969
        %v2971 = vshrl.u32 %v2847, 16
        %v2973 = vor.u32 %v2971, %v2969
        %v2975 = vshll.u32 %v2848, 16
        %v2977 = vrot.slane %v2975, 1
        %v2978 = vsel %vm704, %v2973, %v2977
        %v2979 = vshrl.u32 %v2848, 16
        %v2981 = vor.u32 %v2979, %v2977
        %v2983 = vshll.u32 %v2958, 16
        %v2985 = vrot.slane %v2983, 1
        %v2986 = vsel %vm704, %v2981, %v2985
        %v2987 = vshrl.u32 %v2958, 16
        %v2989 = vor.u32 %v2987, %v2985
        %v3010 = vunpack.c.l.b16 %v2940
        %v3011 = vunpack.c.l.b16 %v2941
        %v3012 = vunpack.c.l.b16 %v2942
        %v3013 = vunpack.c.l.b16 %v2943
        %v3014 = vunpack.c.l.b16 %v2944
        %v3015 = vunpack.c.l.b16 %v2945
        %v3016 = vunpack.c.l.b16 %v2946
        %v3017 = vunpack.c.l.b16 %v2947
        %v3018 = vunpack.c.l.b16 %v2948
        %v3019 = vunpack.c.l.b16 %v2949
        %v3020 = vunpack.c.l.b16 %v2950
        %v3021 = vunpack.c.l.b16 %v2951
        %v3022 = vunpack.c.l.b16 %v2952
        %v3023 = vunpack.c.l.b16 %v2953
        %v3024 = vunpack.c.l.b16 %v2954
        %v3025 = vunpack.c.l.b16 %v2955
        %v3026 = vpack.c.b16 %v3011, %v3010
        %v3027 = vpack.c.b16 %v3013, %v3012
        %v3028 = vpack.c.b16 %v3015, %v3014
        %v3029 = vpack.c.b16 %v3017, %v3016
        %v3030 = vpack.c.b16 %v3019, %v3018
        %v3031 = vpack.c.b16 %v3021, %v3020
        %v3032 = vpack.c.b16 %v3023, %v3022
        %v3033 = vpack.c.b16 %v3025, %v3024
        %3042 = vmatpush.bf16.msra.mxu0 %v3033
        %3043 = vmatpush.bf16.msra.mxu0 %v3032
        %3044 = vmatpush.bf16.msra.mxu0 %v3031
        %3045 = vmatpush.bf16.msra.mxu0 %v3030
        %3046 = vmatpush.bf16.msra.mxu0 %v3029
        %3047 = vmatpush.bf16.msra.mxu0 %v3028
        %3048 = vmatpush.bf16.msra.mxu0 %v3027
        %3049 = vmatpush.bf16.msra.mxu0 %v3026
        %3050 = vmatmul.bf16.gmra.mxu0 %v2970
        %v3051 = vpop.f32.mrf.mxu0
        %v3052 = vadd.f32 0.0, %v3051
        %v3053 = vpop.f32.mrf.mxu0
        %v3054 = vadd.f32 0.0, %v3053
        %3055 = vmatmul.bf16.gmra.mxu0 %v2978
        %v3056 = vpop.f32.mrf.mxu0
        %v3057 = vadd.f32 0.0, %v3056
        %v3058 = vpop.f32.mrf.mxu0
        %v3059 = vadd.f32 0.0, %v3058
        %3060 = vmatmul.bf16.gmra.mxu0 %v2986
        %v3061 = vpop.f32.mrf.mxu0
        %v3062 = vadd.f32 0.0, %v3061
        %v3063 = vpop.f32.mrf.mxu0
        %v3064 = vadd.f32 0.0, %v3063
        %3065 = vmatmul.bf16.gmra.mxu0 %v2989
        %v3066 = vpop.f32.mrf.mxu0
        %v3067 = vadd.f32 0.0, %v3066
        %v3068 = vpop.f32.mrf.mxu0
        %v3069 = vadd.f32 0.0, %v3068
        %3070 = vdwg.mxu0
        %v3071 = vadd.f32 %v2931, %v3052
        %v3072 = vadd.f32 %v2932, %v3054
        %v3073 = vadd.f32 %v2933, %v3057
        %v3074 = vadd.f32 %v2934, %v3059
        %v3075 = vadd.f32 %v2935, %v3062
        %v3076 = vadd.f32 %v2936, %v3064
        %v3077 = vadd.f32 %v2937, %v3067
        %v3078 = vadd.f32 %v2938, %v3069
        %v3079 = vld [vmem:[#allocation2 + $0x48] sm:$0xe]
        %v3080 = vld [vmem:[%s1604] sm:$0xf]
        %v3081 = vld [vmem:[%s1604 + $0x4] sm:$0xf]
        %v3082 = vld [vmem:[%s1604 + $0x8] sm:$0xf]
        %v3083 = vld [vmem:[%s1604 + $0xc] sm:$0xf]
        %v3084 = vld [vmem:[%s1604 + $0x10] sm:$0xf]
        %v3085 = vld [vmem:[%s1604 + $0x14] sm:$0xf]
        %v3086 = vld [vmem:[%s1604 + $0x18] sm:$0xf]
        %v3087 = vld [vmem:[%s1604 + $0x1c] sm:$0xf]
        %v3088 = vld [vmem:[%s1604 + $0x20] sm:$0xf]
        %v3089 = vld [vmem:[%s1604 + $0x24] sm:$0xf]
        %v3090 = vld [vmem:[%s1604 + $0x28] sm:$0xf]
        %v3091 = vld [vmem:[%s1604 + $0x2c] sm:$0xf]
        %v3092 = vld [vmem:[%s1604 + $0x30] sm:$0xf]
        %v3093 = vld [vmem:[%s1604 + $0x34] sm:$0xf]
        %v3094 = vld [vmem:[%s1604 + $0x38] sm:$0xf]
        %v3095 = vld [vmem:[%s1604 + $0x3c] sm:$0xf]
        %v3097 = vunpack.c.l.b16 %v3079
        %v3098 = vpack.c.b16 %v2839, %v3097
        %v3099 = vrot.slane %v3098, 1
        %v3100 = vrot.slane %v2847, 1
        %v3101 = vsel %vm1004, %v3099, %v3100
        %v3102 = vrot.slane %v2848, 1
        %v3103 = vsel %vm1004, %v3100, %v3102
        %v3104 = vrot.slane %v2958, 1
        %v3105 = vsel %vm1004, %v3102, %v3104
        %v3126 = vunpack.c.l.b16 %v3080
        %v3127 = vunpack.c.l.b16 %v3081
        %v3128 = vunpack.c.l.b16 %v3082
        %v3129 = vunpack.c.l.b16 %v3083
        %v3130 = vunpack.c.l.b16 %v3084
        %v3131 = vunpack.c.l.b16 %v3085
        %v3132 = vunpack.c.l.b16 %v3086
        %v3133 = vunpack.c.l.b16 %v3087
        %v3134 = vunpack.c.l.b16 %v3088
        %v3135 = vunpack.c.l.b16 %v3089
        %v3136 = vunpack.c.l.b16 %v3090
        %v3137 = vunpack.c.l.b16 %v3091
        %v3138 = vunpack.c.l.b16 %v3092
        %v3139 = vunpack.c.l.b16 %v3093
        %v3140 = vunpack.c.l.b16 %v3094
        %v3141 = vunpack.c.l.b16 %v3095
        %v3142 = vpack.c.b16 %v3127, %v3126
        %v3143 = vpack.c.b16 %v3129, %v3128
        %v3144 = vpack.c.b16 %v3131, %v3130
        %v3145 = vpack.c.b16 %v3133, %v3132
        %v3146 = vpack.c.b16 %v3135, %v3134
        %v3147 = vpack.c.b16 %v3137, %v3136
        %v3148 = vpack.c.b16 %v3139, %v3138
        %v3149 = vpack.c.b16 %v3141, %v3140
        %3158 = vmatpush.bf16.msra.mxu0 %v3149
        %3159 = vmatpush.bf16.msra.mxu0 %v3148
        %3160 = vmatpush.bf16.msra.mxu0 %v3147
        %3161 = vmatpush.bf16.msra.mxu0 %v3146
        %3162 = vmatpush.bf16.msra.mxu0 %v3145
        %3163 = vmatpush.bf16.msra.mxu0 %v3144
        %3164 = vmatpush.bf16.msra.mxu0 %v3143
        %3165 = vmatpush.bf16.msra.mxu0 %v3142
        %3166 = vmatmul.bf16.gmra.mxu0 %v3101
        %v3167 = vpop.f32.mrf.mxu0
        %v3168 = vadd.f32 0.0, %v3167
        %v3169 = vpop.f32.mrf.mxu0
        %v3170 = vadd.f32 0.0, %v3169
        %3171 = vmatmul.bf16.gmra.mxu0 %v3103
        %v3172 = vpop.f32.mrf.mxu0
        %v3173 = vadd.f32 0.0, %v3172
        %v3174 = vpop.f32.mrf.mxu0
        %v3175 = vadd.f32 0.0, %v3174
        %3176 = vmatmul.bf16.gmra.mxu0 %v3105
        %v3177 = vpop.f32.mrf.mxu0
        %v3178 = vadd.f32 0.0, %v3177
        %v3179 = vpop.f32.mrf.mxu0
        %v3180 = vadd.f32 0.0, %v3179
        %3181 = vmatmul.bf16.gmra.mxu0 %v3104
        %v3182 = vpop.f32.mrf.mxu0
        %v3183 = vadd.f32 0.0, %v3182
        %v3184 = vpop.f32.mrf.mxu0
        %v3185 = vadd.f32 0.0, %v3184
        %3186 = vdwg.mxu0
        %v3187 = vadd.f32 %v3071, %v3168
        %v3188 = vadd.f32 %v3072, %v3170
        %v3189 = vadd.f32 %v3073, %v3173
        %v3190 = vadd.f32 %v3074, %v3175
        %v3191 = vadd.f32 %v3075, %v3178
        %v3192 = vadd.f32 %v3076, %v3180
        %v3193 = vadd.f32 %v3077, %v3183
        %v3194 = vadd.f32 %v3078, %v3185
        %v3195 = vld [vmem:[#allocation2 + $0x50] sm:$0xf]
        %v3196 = vld [vmem:[#allocation2 + $0x54] sm:$0xf]
        %v3197 = vld [vmem:[#allocation2 + $0x58] sm:$0xf]
        %v3198 = vld [vmem:[#allocation2 + $0x5c] sm:$0xf]
        %v3199 = vld [vmem:[#allocation2 + $0x60] sm:$0xf]
        %v3200 = vld [vmem:[#allocation2 + $0x64] sm:$0xf]
        %v3201 = vld [vmem:[#allocation2 + $0x68] sm:$0xf]
        %v3202 = vld [vmem:[#allocation2 + $0x6c] sm:$0x3]
        %v3203 = vld [vmem:[%s1778] sm:$0xf]
        %v3204 = vld [vmem:[%s1778 + $0x4] sm:$0xf]
        %v3205 = vld [vmem:[%s1778 + $0x8] sm:$0xf]
        %v3206 = vld [vmem:[%s1778 + $0xc] sm:$0xf]
        %v3207 = vld [vmem:[%s1778 + $0x10] sm:$0xf]
        %v3208 = vld [vmem:[%s1778 + $0x14] sm:$0xf]
        %v3209 = vld [vmem:[%s1778 + $0x18] sm:$0xf]
        %v3210 = vld [vmem:[%s1778 + $0x1c] sm:$0xf]
        %v3211 = vld [vmem:[%s1778 + $0x20] sm:$0xf]
        %v3212 = vld [vmem:[%s1778 + $0x24] sm:$0xf]
        %v3213 = vld [vmem:[%s1778 + $0x28] sm:$0xf]
        %v3214 = vld [vmem:[%s1778 + $0x2c] sm:$0xf]
        %v3215 = vld [vmem:[%s1778 + $0x30] sm:$0xf]
        %v3216 = vld [vmem:[%s1778 + $0x34] sm:$0xf]
        %v3217 = vld [vmem:[%s1778 + $0x38] sm:$0xf]
        %v3218 = vld [vmem:[%s1778 + $0x3c] sm:$0xf]
        %v3227 = vunpack.c.l.b16 %v3195
        %v3228 = vunpack.c.l.b16 %v3196
        %v3229 = vunpack.c.l.b16 %v3197
        %v3230 = vunpack.c.l.b16 %v3198
        %v3231 = vunpack.c.l.b16 %v3199
        %v3232 = vunpack.c.l.b16 %v3200
        %v3233 = vunpack.c.l.b16 %v3201
        %v3234 = vunpack.c.l.b16 %v3202
        %v3235 = vpack.c.b16 %v3228, %v3227
        %v3236 = vpack.c.b16 %v3230, %v3229
        %v3237 = vpack.c.b16 %v3232, %v3231
        %v3238 = vpack.c.b16 %v3234, %v3233
        %v3259 = vunpack.c.l.b16 %v3203
        %v3260 = vunpack.c.l.b16 %v3204
        %v3261 = vunpack.c.l.b16 %v3205
        %v3262 = vunpack.c.l.b16 %v3206
        %v3263 = vunpack.c.l.b16 %v3207
        %v3264 = vunpack.c.l.b16 %v3208
        %v3265 = vunpack.c.l.b16 %v3209
        %v3266 = vunpack.c.l.b16 %v3210
        %v3267 = vunpack.c.l.b16 %v3211
        %v3268 = vunpack.c.l.b16 %v3212
        %v3269 = vunpack.c.l.b16 %v3213
        %v3270 = vunpack.c.l.b16 %v3214
        %v3271 = vunpack.c.l.b16 %v3215
        %v3272 = vunpack.c.l.b16 %v3216
        %v3273 = vunpack.c.l.b16 %v3217
        %v3274 = vunpack.c.l.b16 %v3218
        %v3275 = vpack.c.b16 %v3260, %v3259
        %v3276 = vpack.c.b16 %v3262, %v3261
        %v3277 = vpack.c.b16 %v3264, %v3263
        %v3278 = vpack.c.b16 %v3266, %v3265
        %v3279 = vpack.c.b16 %v3268, %v3267
        %v3280 = vpack.c.b16 %v3270, %v3269
        %v3281 = vpack.c.b16 %v3272, %v3271
        %v3282 = vpack.c.b16 %v3274, %v3273
        %3291 = vmatpush.bf16.msra.mxu0 %v3282
        %3292 = vmatpush.bf16.msra.mxu0 %v3281
        %3293 = vmatpush.bf16.msra.mxu0 %v3280
        %3294 = vmatpush.bf16.msra.mxu0 %v3279
        %3295 = vmatpush.bf16.msra.mxu0 %v3278
        %3296 = vmatpush.bf16.msra.mxu0 %v3277
        %3297 = vmatpush.bf16.msra.mxu0 %v3276
        %3298 = vmatpush.bf16.msra.mxu0 %v3275
        %3299 = vmatmul.bf16.gmra.mxu0 %v3235
        %v3300 = vpop.f32.mrf.mxu0
        %v3301 = vadd.f32 0.0, %v3300
        %v3302 = vpop.f32.mrf.mxu0
        %v3303 = vadd.f32 0.0, %v3302
        %3304 = vmatmul.bf16.gmra.mxu0 %v3236
        %v3305 = vpop.f32.mrf.mxu0
        %v3306 = vadd.f32 0.0, %v3305
        %v3307 = vpop.f32.mrf.mxu0
        %v3308 = vadd.f32 0.0, %v3307
        %3309 = vmatmul.bf16.gmra.mxu0 %v3237
        %v3310 = vpop.f32.mrf.mxu0
        %v3311 = vadd.f32 0.0, %v3310
        %v3312 = vpop.f32.mrf.mxu0
        %v3313 = vadd.f32 0.0, %v3312
        %3314 = vmatmul.bf16.gmra.mxu0 %v3238
        %v3315 = vpop.f32.mrf.mxu0
        %v3316 = vadd.f32 0.0, %v3315
        %v3317 = vpop.f32.mrf.mxu0
        %v3318 = vadd.f32 0.0, %v3317
        %3319 = vdwg.mxu0
        %v3320 = vadd.f32 %v3187, %v3301
        %v3321 = vadd.f32 %v3188, %v3303
        %v3322 = vadd.f32 %v3189, %v3306
        %v3323 = vadd.f32 %v3190, %v3308
        %v3324 = vadd.f32 %v3191, %v3311
        %v3325 = vadd.f32 %v3192, %v3313
        %v3326 = vadd.f32 %v3193, %v3316
        %v3327 = vadd.f32 %v3194, %v3318
        %v3328 = vld [vmem:[#allocation2 + $0x6c] sm:$0x7]
        %v3329 = vld [vmem:[%s1973] sm:$0xf]
        %v3330 = vld [vmem:[%s1973 + $0x4] sm:$0xf]
        %v3331 = vld [vmem:[%s1973 + $0x8] sm:$0xf]
        %v3332 = vld [vmem:[%s1973 + $0xc] sm:$0xf]
        %v3333 = vld [vmem:[%s1973 + $0x10] sm:$0xf]
        %v3334 = vld [vmem:[%s1973 + $0x14] sm:$0xf]
        %v3335 = vld [vmem:[%s1973 + $0x18] sm:$0xf]
        %v3336 = vld [vmem:[%s1973 + $0x1c] sm:$0xf]
        %v3337 = vld [vmem:[%s1973 + $0x20] sm:$0xf]
        %v3338 = vld [vmem:[%s1973 + $0x24] sm:$0xf]
        %v3339 = vld [vmem:[%s1973 + $0x28] sm:$0xf]
        %v3340 = vld [vmem:[%s1973 + $0x2c] sm:$0xf]
        %v3341 = vld [vmem:[%s1973 + $0x30] sm:$0xf]
        %v3342 = vld [vmem:[%s1973 + $0x34] sm:$0xf]
        %v3343 = vld [vmem:[%s1973 + $0x38] sm:$0xf]
        %v3344 = vld [vmem:[%s1973 + $0x3c] sm:$0xf]
        %v3346 = vunpack.c.l.b16 %v3328
        %v3347 = vpack.c.b16 %v3346, %v3233
        %v3349 = vshrl.u32 %v3235, 16
        %v3351 = vshll.u32 %v3235, 16
        %v3353 = vrot.slane %v3351, 1
        %v3354 = vor.u32 %v3349, %v3353
        %v3356 = vshll.u32 %v3236, 16
        %v3358 = vrot.slane %v3356, 1
        %v3359 = vsel %vm704, %v3354, %v3358
        %v3360 = vshrl.u32 %v3236, 16
        %v3362 = vor.u32 %v3360, %v3358
        %v3364 = vshll.u32 %v3237, 16
        %v3366 = vrot.slane %v3364, 1
        %v3367 = vsel %vm704, %v3362, %v3366
        %v3368 = vshrl.u32 %v3237, 16
        %v3370 = vor.u32 %v3368, %v3366
        %v3372 = vshll.u32 %v3347, 16
        %v3374 = vrot.slane %v3372, 1
        %v3375 = vsel %vm704, %v3370, %v3374
        %v3376 = vshrl.u32 %v3347, 16
        %v3378 = vor.u32 %v3376, %v3374
        %v3399 = vunpack.c.l.b16 %v3329
        %v3400 = vunpack.c.l.b16 %v3330
        %v3401 = vunpack.c.l.b16 %v3331
        %v3402 = vunpack.c.l.b16 %v3332
        %v3403 = vunpack.c.l.b16 %v3333
        %v3404 = vunpack.c.l.b16 %v3334
        %v3405 = vunpack.c.l.b16 %v3335
        %v3406 = vunpack.c.l.b16 %v3336
        %v3407 = vunpack.c.l.b16 %v3337
        %v3408 = vunpack.c.l.b16 %v3338
        %v3409 = vunpack.c.l.b16 %v3339
        %v3410 = vunpack.c.l.b16 %v3340
        %v3411 = vunpack.c.l.b16 %v3341
        %v3412 = vunpack.c.l.b16 %v3342
        %v3413 = vunpack.c.l.b16 %v3343
        %v3414 = vunpack.c.l.b16 %v3344
        %v3415 = vpack.c.b16 %v3400, %v3399
        %v3416 = vpack.c.b16 %v3402, %v3401
        %v3417 = vpack.c.b16 %v3404, %v3403
        %v3418 = vpack.c.b16 %v3406, %v3405
        %v3419 = vpack.c.b16 %v3408, %v3407
        %v3420 = vpack.c.b16 %v3410, %v3409
        %v3421 = vpack.c.b16 %v3412, %v3411
        %v3422 = vpack.c.b16 %v3414, %v3413
        %3431 = vmatpush.bf16.msra.mxu0 %v3422
        %3432 = vmatpush.bf16.msra.mxu0 %v3421
        %3433 = vmatpush.bf16.msra.mxu0 %v3420
        %3434 = vmatpush.bf16.msra.mxu0 %v3419
        %3435 = vmatpush.bf16.msra.mxu0 %v3418
        %3436 = vmatpush.bf16.msra.mxu0 %v3417
        %3437 = vmatpush.bf16.msra.mxu0 %v3416
        %3438 = vmatpush.bf16.msra.mxu0 %v3415
        %3439 = vmatmul.bf16.gmra.mxu0 %v3359
        %v3440 = vpop.f32.mrf.mxu0
        %v3441 = vadd.f32 0.0, %v3440
        %v3442 = vpop.f32.mrf.mxu0
        %v3443 = vadd.f32 0.0, %v3442
        %3444 = vmatmul.bf16.gmra.mxu0 %v3367
        %v3445 = vpop.f32.mrf.mxu0
        %v3446 = vadd.f32 0.0, %v3445
        %v3447 = vpop.f32.mrf.mxu0
        %v3448 = vadd.f32 0.0, %v3447
        %3449 = vmatmul.bf16.gmra.mxu0 %v3375
        %v3450 = vpop.f32.mrf.mxu0
        %v3451 = vadd.f32 0.0, %v3450
        %v3452 = vpop.f32.mrf.mxu0
        %v3453 = vadd.f32 0.0, %v3452
        %3454 = vmatmul.bf16.gmra.mxu0 %v3378
        %v3455 = vpop.f32.mrf.mxu0
        %v3456 = vadd.f32 0.0, %v3455
        %v3457 = vpop.f32.mrf.mxu0
        %v3458 = vadd.f32 0.0, %v3457
        %3459 = vdwg.mxu0
        %v3460 = vadd.f32 %v3320, %v3441
        %v3461 = vadd.f32 %v3321, %v3443
        %v3462 = vadd.f32 %v3322, %v3446
        %v3463 = vadd.f32 %v3323, %v3448
        %v3464 = vadd.f32 %v3324, %v3451
        %v3465 = vadd.f32 %v3325, %v3453
        %v3466 = vadd.f32 %v3326, %v3456
        %v3467 = vadd.f32 %v3327, %v3458
        %v3468 = vld [vmem:[#allocation2 + $0x50] sm:$0xe]
        %v3469 = vld [vmem:[%s2223] sm:$0xf]
        %v3470 = vld [vmem:[%s2223 + $0x4] sm:$0xf]
        %v3471 = vld [vmem:[%s2223 + $0x8] sm:$0xf]
        %v3472 = vld [vmem:[%s2223 + $0xc] sm:$0xf]
        %v3473 = vld [vmem:[%s2223 + $0x10] sm:$0xf]
        %v3474 = vld [vmem:[%s2223 + $0x14] sm:$0xf]
        %v3475 = vld [vmem:[%s2223 + $0x18] sm:$0xf]
        %v3476 = vld [vmem:[%s2223 + $0x1c] sm:$0xf]
        %v3477 = vld [vmem:[%s2223 + $0x20] sm:$0xf]
        %v3478 = vld [vmem:[%s2223 + $0x24] sm:$0xf]
        %v3479 = vld [vmem:[%s2223 + $0x28] sm:$0xf]
        %v3480 = vld [vmem:[%s2223 + $0x2c] sm:$0xf]
        %v3481 = vld [vmem:[%s2223 + $0x30] sm:$0xf]
        %v3482 = vld [vmem:[%s2223 + $0x34] sm:$0xf]
        %v3483 = vld [vmem:[%s2223 + $0x38] sm:$0xf]
        %v3484 = vld [vmem:[%s2223 + $0x3c] sm:$0xf]
        %v3486 = vunpack.c.l.b16 %v3468
        %v3487 = vpack.c.b16 %v3228, %v3486
        %v3488 = vrot.slane %v3487, 1
        %v3489 = vrot.slane %v3236, 1
        %v3490 = vsel %vm1004, %v3488, %v3489
        %v3491 = vrot.slane %v3237, 1
        %v3492 = vsel %vm1004, %v3489, %v3491
        %v3493 = vrot.slane %v3347, 1
        %v3494 = vsel %vm1004, %v3491, %v3493
        %v3515 = vunpack.c.l.b16 %v3469
        %v3516 = vunpack.c.l.b16 %v3470
        %v3517 = vunpack.c.l.b16 %v3471
        %v3518 = vunpack.c.l.b16 %v3472
        %v3519 = vunpack.c.l.b16 %v3473
        %v3520 = vunpack.c.l.b16 %v3474
        %v3521 = vunpack.c.l.b16 %v3475
        %v3522 = vunpack.c.l.b16 %v3476
        %v3523 = vunpack.c.l.b16 %v3477
        %v3524 = vunpack.c.l.b16 %v3478
        %v3525 = vunpack.c.l.b16 %v3479
        %v3526 = vunpack.c.l.b16 %v3480
        %v3527 = vunpack.c.l.b16 %v3481
        %v3528 = vunpack.c.l.b16 %v3482
        %v3529 = vunpack.c.l.b16 %v3483
        %v3530 = vunpack.c.l.b16 %v3484
        %v3531 = vpack.c.b16 %v3516, %v3515
        %v3532 = vpack.c.b16 %v3518, %v3517
        %v3533 = vpack.c.b16 %v3520, %v3519
        %v3534 = vpack.c.b16 %v3522, %v3521
        %v3535 = vpack.c.b16 %v3524, %v3523
        %v3536 = vpack.c.b16 %v3526, %v3525
        %v3537 = vpack.c.b16 %v3528, %v3527
        %v3538 = vpack.c.b16 %v3530, %v3529
        %3547 = vmatpush.bf16.msra.mxu0 %v3538
        %3548 = vmatpush.bf16.msra.mxu0 %v3537
        %3549 = vmatpush.bf16.msra.mxu0 %v3536
        %3550 = vmatpush.bf16.msra.mxu0 %v3535
        %3551 = vmatpush.bf16.msra.mxu0 %v3534
        %3552 = vmatpush.bf16.msra.mxu0 %v3533
        %3553 = vmatpush.bf16.msra.mxu0 %v3532
        %3554 = vmatpush.bf16.msra.mxu0 %v3531
        %3555 = vmatmul.bf16.gmra.mxu0 %v3490
        %v3556 = vpop.f32.mrf.mxu0
        %v3557 = vadd.f32 0.0, %v3556
        %v3558 = vpop.f32.mrf.mxu0
        %v3559 = vadd.f32 0.0, %v3558
        %3560 = vmatmul.bf16.gmra.mxu0 %v3492
        %v3561 = vpop.f32.mrf.mxu0
        %v3562 = vadd.f32 0.0, %v3561
        %v3563 = vpop.f32.mrf.mxu0
        %v3564 = vadd.f32 0.0, %v3563
        %3565 = vmatmul.bf16.gmra.mxu0 %v3494
        %v3566 = vpop.f32.mrf.mxu0
        %v3567 = vadd.f32 0.0, %v3566
        %v3568 = vpop.f32.mrf.mxu0
        %v3569 = vadd.f32 0.0, %v3568
        %3570 = vmatmul.bf16.gmra.mxu0 %v3493
        %v3571 = vpop.f32.mrf.mxu0
        %v3572 = vadd.f32 0.0, %v3571
        %v3573 = vpop.f32.mrf.mxu0
        %v3574 = vadd.f32 0.0, %v3573
        %3575 = vdwg.mxu0
        %v3576 = vadd.f32 %v3460, %v3557
        %v3577 = vadd.f32 %v3461, %v3559
        %v3578 = vadd.f32 %v3462, %v3562
        %v3579 = vadd.f32 %v3463, %v3564
        %v3580 = vadd.f32 %v3464, %v3567
        %v3581 = vadd.f32 %v3465, %v3569
        %v3582 = vadd.f32 %v3466, %v3572
        %v3583 = vadd.f32 %v3467, %v3574
        %v3584 = vld [vmem:[%s4] sm:$0x1]
        %v3586 = vperm.slane %v3584, 0
        %v3588 = vadd.f32 %v3576, %v3586
        %v3589 = vadd.f32 %v3577, %v3586
        %v3590 = vadd.f32 %v3578, %v3586
        %v3591 = vadd.f32 %v3579, %v3586
        %v3592 = vadd.f32 %v3580, %v3586
        %v3593 = vadd.f32 %v3581, %v3586
        %v3594 = vadd.f32 %v3582, %v3586
        %v3595 = vadd.f32 %v3583, %v3586
        %v3596 = vmax.f32 %v3588, 0.0
        %v3597 = vmax.f32 %v3589, 0.0
        %v3598 = vmax.f32 %v3590, 0.0
        %v3599 = vmax.f32 %v3591, 0.0
        %v3600 = vmax.f32 %v3592, 0.0
        %v3601 = vmax.f32 %v3593, 0.0
        %v3602 = vmax.f32 %v3594, 0.0
        %v3603 = vmax.f32 %v3595, 0.0
        %3604 = vst [vmem:[#allocation3 + $0x80] sm:$0xff] %v3596
        %3605 = vst [vmem:[#allocation3 + $0x88] sm:$0xff] %v3597
        %3606 = vst [vmem:[#allocation3 + $0x90] sm:$0xff] %v3598
        %3607 = vst [vmem:[#allocation3 + $0x98] sm:$0xff] %v3599
        %3608 = vst [vmem:[#allocation3 + $0xa0] sm:$0xff] %v3600
        %3609 = vst [vmem:[#allocation3 + $0xa8] sm:$0xff] %v3601
        %3610 = vst [vmem:[#allocation3 + $0xb0] sm:$0xff] %v3602
        %3611 = vst [vmem:[#allocation3 + $0xb8] sm:$0xf] %v3603
        %v3612 = vld [vmem:[#allocation3] ss:$2 sm:$0x3f]
        %s3613 = scalar_lea.vmem [#allocation3], 1
        %v3614 = vld [vmem:[%s3613] ss:$2 sm:$0x3f]
        %v3615 = vmax.f32 %v3612, %v3614
        %s3616 = scalar_lea.vmem [#allocation3], 16
        %v3617 = vld [vmem:[%s3616] ss:$2 sm:$0x3f]
        %s3618 = scalar_lea.vmem [#allocation3], 17
        %v3619 = vld [vmem:[%s3618] ss:$2 sm:$0x3f]
        %v3620 = vmax.f32 %v3617, %v3619
        %v3621 = vmax.f32 %v3615, %v3620
        %v3622 = vpack.c.bf16 %v3621, %v3621
        %3623 = vst [vmem:[%s241] sm:$0x7] %v3622
        %s3624 = scalar_lea.vmem [#allocation3], 32
        %v3625 = vld [vmem:[%s3624] ss:$2 sm:$0x3f]
        %s3626 = scalar_lea.vmem [#allocation3], 33
        %v3627 = vld [vmem:[%s3626] ss:$2 sm:$0x3f]
        %v3628 = vmax.f32 %v3625, %v3627
        %s3629 = scalar_lea.vmem [#allocation3], 48
        %v3630 = vld [vmem:[%s3629] ss:$2 sm:$0x3f]
        %s3631 = scalar_lea.vmem [#allocation3], 49
        %v3632 = vld [vmem:[%s3631] ss:$2 sm:$0x3f]
        %v3633 = vmax.f32 %v3630, %v3632
        %v3634 = vmax.f32 %v3628, %v3633
        %v3635 = vpack.c.bf16 %v3634, %v3634
        %s3636 = scalar_lea.vmem %s241, 4
        %3637 = vst [vmem:[%s3636] sm:$0x7] %v3635
        %s3638 = scalar_lea.vmem [#allocation3], 64
        %v3639 = vld [vmem:[%s3638] ss:$2 sm:$0x3f]
        %s3640 = scalar_lea.vmem [#allocation3], 65
        %v3641 = vld [vmem:[%s3640] ss:$2 sm:$0x3f]
        %v3642 = vmax.f32 %v3639, %v3641
        %s3643 = scalar_lea.vmem [#allocation3], 80
        %v3644 = vld [vmem:[%s3643] ss:$2 sm:$0x3f]
        %s3645 = scalar_lea.vmem [#allocation3], 81
        %v3646 = vld [vmem:[%s3645] ss:$2 sm:$0x3f]
        %v3647 = vmax.f32 %v3644, %v3646
        %v3648 = vmax.f32 %v3642, %v3647
        %v3649 = vpack.c.bf16 %v3648, %v3648
        %s3650 = scalar_lea.vmem %s241, 8
        %3651 = vst [vmem:[%s3650] sm:$0x7] %v3649
        %s3652 = scalar_lea.vmem [#allocation3], 96
        %v3653 = vld [vmem:[%s3652] ss:$2 sm:$0x3f]
        %s3654 = scalar_lea.vmem [#allocation3], 97
        %v3655 = vld [vmem:[%s3654] ss:$2 sm:$0x3f]
        %v3656 = vmax.f32 %v3653, %v3655
        %s3657 = scalar_lea.vmem [#allocation3], 112
        %v3658 = vld [vmem:[%s3657] ss:$2 sm:$0x3f]
        %s3659 = scalar_lea.vmem [#allocation3], 113
        %v3660 = vld [vmem:[%s3659] ss:$2 sm:$0x3f]
        %v3661 = vmax.f32 %v3658, %v3660
        %v3662 = vmax.f32 %v3656, %v3661
        %v3663 = vpack.c.bf16 %v3662, %v3662
        %s3664 = scalar_lea.vmem %s241, 12
        %3665 = vst [vmem:[%s3664] sm:$0x7] %v3663
        %s3666 = scalar_lea.vmem [#allocation3], 128
        %v3667 = vld [vmem:[%s3666] ss:$2 sm:$0x3f]
        %s3668 = scalar_lea.vmem [#allocation3], 129
        %v3669 = vld [vmem:[%s3668] ss:$2 sm:$0x3f]
        %v3670 = vmax.f32 %v3667, %v3669
        %s3671 = scalar_lea.vmem [#allocation3], 144
        %v3672 = vld [vmem:[%s3671] ss:$2 sm:$0x3f]
        %s3673 = scalar_lea.vmem [#allocation3], 145
        %v3674 = vld [vmem:[%s3673] ss:$2 sm:$0x3f]
        %v3675 = vmax.f32 %v3672, %v3674
        %v3676 = vmax.f32 %v3670, %v3675
        %v3677 = vpack.c.bf16 %v3676, %v3676
        %s3678 = scalar_lea.vmem %s241, 16
        %3679 = vst [vmem:[%s3678] sm:$0x7] %v3677
        %s3680 = scalar_lea.vmem [#allocation3], 160
        %v3681 = vld [vmem:[%s3680] ss:$2 sm:$0x3f]
        %s3682 = scalar_lea.vmem [#allocation3], 161
        %v3683 = vld [vmem:[%s3682] ss:$2 sm:$0x3f]
        %v3684 = vmax.f32 %v3681, %v3683
        %s3685 = scalar_lea.vmem [#allocation3], 176
        %v3686 = vld [vmem:[%s3685] ss:$2 sm:$0x3f]
        %s3687 = scalar_lea.vmem [#allocation3], 177
        %v3688 = vld [vmem:[%s3687] ss:$2 sm:$0x3f]
        %v3689 = vmax.f32 %v3686, %v3688
        %v3690 = vmax.f32 %v3684, %v3689
        %v3691 = vpack.c.bf16 %v3690, %v3690
        %s3692 = scalar_lea.vmem %s241, 20
        %3693 = vst [vmem:[%s3692] sm:$0x7] %v3691
        %p3694 = scmp.lt.s32.totalorder %s17, 1
        %s3695 = scalar_select %p3694, %s17, 1
        %s3696 = smul.addr %s3695, 6
        %s3697 = smul.addr %s3696, 4
        %s3698 = scalar_lea.vmem %s5, %s3697
        // Predicated region
        $region45: #{tpu_custom_call.1} parent=39 // pred_check
          %p3699 = pneg %p145
        $region46: #{tpu_custom_call.1} parent=39 // pred_check_branch
          %3701 = sbr.rel (%p3699) target = $region48
        $region47: #{tpu_custom_call.1} parent=39 // pred_region
          _
        $region48: #{tpu_custom_call.1} parent=39 // pred_fallthru
          _
      $region40: #{tpu_custom_call.1} parent=5 // pred_fallthru
        _
      %p3702 = scmp.le.s32.totalorder 2, %s12
      // Predicated region
      $region49: #{tpu_custom_call.1} parent=5 // pred_check
        %p3703 = pneg %p3702
      $region50: #{tpu_custom_call.1} parent=5 // pred_check_branch
        %3705 = sbr.rel (%p3703) target = $region52
      $region51: #{tpu_custom_call.1} parent=5 // pred_region
        %s3706 = ssub.s32 %s12, 2
        // Predicated region
        $region53: #{tpu_custom_call.1} parent=51 // pred_check
          %p3707 = pneg %p151
        $region54: #{tpu_custom_call.1} parent=51 // pred_check_branch
          %3709 = sbr.rel (%p3707) target = $region56
        $region55: #{tpu_custom_call.1} parent=51 // pred_region
          %p3710 = scmp.lt.s32.totalorder %s18, 1
          %s3711 = scalar_select %p3710, %s18, 1
          %s3712 = smul.addr %s3711, 6
          %s3713 = smul.addr %s3712, 4
          %s3714 = scalar_lea.vmem %s5, %s3713
        $region56: #{tpu_custom_call.1} parent=51 // pred_fallthru
          _
      $region52: #{tpu_custom_call.1} parent=5 // pred_fallthru
        _
    $region6: #{tpu_custom_call.1} parent=1 // loop_footer
      %s16 = sadd.s32 1, %s12
    $region7: #{tpu_custom_call.1} parent=1 // loop_footer_branch
      %11 = sbr.rel target = $region3
    $region8: #{tpu_custom_call.1} parent=1 // loop_exit
      _
    %3715 = vsyncpa [#allocation5], 1
    %s3716 = scalar_lea.sflag [#allocation5], 1
    %3717 = vsyncpa %s3716, 1

</llo_original>
